<compile_context>
chip_gen: v6e
topology: v6e:2x2x1
jax: 0.10.0
libtpu: 0.0.40
codegen_flags: <defaults>
</compile_context>

<pallas_src>
import jax
import jax.numpy as jnp
from jax.experimental import pallas as pl
from jax.experimental.pallas import tpu as pltpu

EPS = 1e-5


def _residual_block_kernel(x_ref, w1_ref, b1_ref, g1_ref, be1_ref,
                           w2_ref, b2_ref, g2_ref, be2_ref,
                           out_ref, pad_ref):
    """Fused: x + ConvBlock2(ConvBlock1(x)) for ONE sample (block = (1, H, W, C))."""
    _, H, W, C = x_ref.shape
    HW = H * W
    inv_hw = 1.0 / float(HW)

    x = x_ref[0]                                     # (H, W, C) f32

    # Zero the halo; the interior is (over)written below.  Re-zeroing every grid step keeps
    # each (possibly megacore-sharded) core's scratch valid.
    pad_ref[...] = jnp.zeros_like(pad_ref)

    def conv_in(w_ref_, b_ref_, g_ref_, be_ref_, relu):
        """3x3/s1/p1 conv + bias -> InstanceNorm(affine) -> optional ReLU.
        Reads the padded input from pad_ref; returns a flat (H*W, C) f32 tile."""
        xp = pad_ref[...]                            # (H+2, W+2, C)
        # im2col: fold the 9 taps into the contraction dim -> one K=9*C matmul on the MXU.
        taps = [xp[kh:kh + H, kw:kw + W, :].reshape(HW, C)
                for kh in range(3) for kw in range(3)]
        pat = jnp.concatenate(taps, axis=1)          # (H*W, 9*C)
        y = jnp.dot(pat, w_ref_[...], preferred_element_type=jnp.float32)
        y = y + b_ref_[...]                          # bias, (1, C) broadcast

        # One-pass per-channel stats over H*W (biased variance), f32.
        s = jnp.sum(y, axis=0, keepdims=True)
        ss = jnp.sum(y * y, axis=0, keepdims=True)
        mean = s * inv_hw
        var = jnp.maximum(ss * inv_hw - mean * mean, 0.0)
        y = (y - mean) * jax.lax.rsqrt(var + EPS)
        y = y * g_ref_[...] + be_ref_[...]
        if relu:
            y = jnp.maximum(y, 0.0)
        return y                                     # (H*W, C)

    # --- block 1: conv -> IN -> ReLU ---
    pad_ref[1:H + 1, 1:W + 1, :] = x
    h = conv_in(w1_ref, b1_ref, g1_ref, be1_ref, relu=True)

    # --- block 2: conv -> IN (no activation); `h` stays in VMEM ---
    pad_ref[1:H + 1, 1:W + 1, :] = h.reshape(H, W, C)
    y = conv_in(w2_ref, b2_ref, g2_ref, be2_ref, relu=False)

    # --- residual skip ---
    out_ref[0] = y.reshape(H, W, C) + x


def residual_block_nhwc(x_nhwc, params):
    """Primary (NHWC) entry point: x + ConvBlock(None)(ConvBlock(relu)(x))."""
    N, H, W, C = x_nhwc.shape
    Cout = params["w1"].shape[-1]
    assert Cout == C, "ResidualBlock requires in_channels == out_channels"
    x_nhwc = x_nhwc.astype(jnp.float32)

    def wmat(w):   # HWIO (3,3,Cin,Cout) -> (9*Cin, Cout); row order (kh, kw, ci)
        return w.reshape(9 * C, Cout).astype(jnp.float32)

    def vrow(v):   # (Cout,) -> (1, Cout)
        return v.reshape(1, Cout).astype(jnp.float32)

    args = (x_nhwc,
            wmat(params["w1"]), vrow(params["b1"]), vrow(params["g1"]), vrow(params["be1"]),
            wmat(params["w2"]), vrow(params["b2"]), vrow(params["g2"]), vrow(params["be2"]))

    sample_spec = pl.BlockSpec((1, H, W, C), lambda n: (n, 0, 0, 0))

    def full_spec(a):
        nd = a.ndim
        return pl.BlockSpec(a.shape, lambda n, _nd=nd: (0,) * _nd)

    return pl.pallas_call(
        _residual_block_kernel,
        out_shape=jax.ShapeDtypeStruct((N, H, W, C), jnp.float32),
        grid=(N,),
        in_specs=[sample_spec] + [full_spec(a) for a in args[1:]],
        out_specs=sample_spec,
        scratch_shapes=[pltpu.VMEM((H + 2, W + 2, C), jnp.float32)],
        compiler_params=pltpu.CompilerParams(dimension_semantics=("parallel",)),
    )(*args)


def residual_block(x_nchw, params):
    """NCHW adapter matching the PyTorch module's convention."""
    x = jnp.transpose(x_nchw, (0, 2, 3, 1))          # NCHW -> NHWC (boundary only)
    y = residual_block_nhwc(x, params)
    return jnp.transpose(y, (0, 3, 1, 2))            # NHWC -> NCHW


# --- pure-JAX reference (for correctness check) ---
def _residual_block_ref(x_nchw, params):
    x = x_nchw.astype(jnp.float32)

    def block(h, w, b, g, be, relu):
        out = jax.lax.conv_general_dilated(
            h, w, window_strides=(1, 1), padding=((1, 1), (1, 1)),
            dimension_numbers=("NCHW", "HWIO", "NCHW"))
        out = out + b.reshape(1, -1, 1, 1)
        m = out.mean(axis=(2, 3), keepdims=True)
        v = jnp.square(out - m).mean(axis=(2, 3), keepdims=True)
        out = (out - m) * jax.lax.rsqrt(v + EPS)
        out = out * g.reshape(1, -1, 1, 1) + be.reshape(1, -1, 1, 1)
        if relu:
            out = jnp.maximum(out, 0.0)
        return out

    h = block(x, params["w1"], params["b1"], params["g1"], params["be1"], True)
    h = block(h, params["w2"], params["b2"], params["g2"], params["be2"], False)
    return x + h


def init_params(key, in_channels, out_channels, kernel_size=3):
    ks = jax.random.split(key, 8)
    shp_w = (kernel_size, kernel_size, in_channels, out_channels)  # HWIO
    return {
        "w1": 0.1 * jax.random.normal(ks[0], shp_w, jnp.float32),
        "b1": 0.1 * jax.random.normal(ks[1], (out_channels,), jnp.float32),
        "g1": 1.0 + 0.1 * jax.random.normal(ks[2], (out_channels,), jnp.float32),
        "be1": 0.1 * jax.random.normal(ks[3], (out_channels,), jnp.float32),
        "w2": 0.1 * jax.random.normal(ks[4], shp_w, jnp.float32),
        "b2": 0.1 * jax.random.normal(ks[5], (out_channels,), jnp.float32),
        "g2": 1.0 + 0.1 * jax.random.normal(ks[6], (out_channels,), jnp.float32),
        "be2": 0.1 * jax.random.normal(ks[7], (out_channels,), jnp.float32),
    }


if __name__ == "__main__":
    key = jax.random.PRNGKey(0)
    k_x, k_p = jax.random.split(key)

    N, C, H, W = 2, 4, 16, 16          # ResidualBlock needs in_channels == out_channels
    x = jax.random.normal(k_x, (N, C, H, W), jnp.float32)   # NCHW, like PyTorch
    params = init_params(k_p, C, C)

    out = jax.block_until_ready(residual_block(x, params))
    ref = jax.block_until_ready(_residual_block_ref(x, params))

    assert out.shape == (N, C, H, W)
    max_err = float(jnp.max(jnp.abs(out - ref)))
    assert jnp.allclose(out, ref, atol=1e-4, rtol=1e-4), max_err
    print("KERNEL_OK")
</pallas_src>

<mosaic_0001>
module attributes {stable_mosaic.version = 11 : i64} {
  func.func @_residual_block_kernel(%arg0: i32, %arg1: memref<1x16x16x4xf32, #tpu.memory_space<vmem>>, %arg2: memref<36x4xf32, #tpu.memory_space<vmem>>, %arg3: memref<1x4xf32, #tpu.memory_space<vmem>>, %arg4: memref<1x4xf32, #tpu.memory_space<vmem>>, %arg5: memref<1x4xf32, #tpu.memory_space<vmem>>, %arg6: memref<36x4xf32, #tpu.memory_space<vmem>>, %arg7: memref<1x4xf32, #tpu.memory_space<vmem>>, %arg8: memref<1x4xf32, #tpu.memory_space<vmem>>, %arg9: memref<1x4xf32, #tpu.memory_space<vmem>>, %arg10: memref<1x16x16x4xf32, #tpu.memory_space<vmem>>, %arg11: memref<18x18x4xf32, #tpu.memory_space<vmem>>) attributes {dimension_semantics = [#tpu.dimension_semantics<parallel>], iteration_bounds = array<i64: 2>, scalar_prefetch = 0 : i64, scratch_operands = 1 : i64, tpu.core_type = #tpu.core_type<tc>, window_params = [{transform_indices = @transform_0, window_bounds = array<i64: 1, 16, 16, 4>}, {pipeline_mode = #tpu.pipeline_mode<synchronous>, transform_indices = @transform_1, window_bounds = array<i64: 36, 4>}, {pipeline_mode = #tpu.pipeline_mode<synchronous>, transform_indices = @transform_2, window_bounds = array<i64: 1, 4>}, {pipeline_mode = #tpu.pipeline_mode<synchronous>, transform_indices = @transform_3, window_bounds = array<i64: 1, 4>}, {pipeline_mode = #tpu.pipeline_mode<synchronous>, transform_indices = @transform_4, window_bounds = array<i64: 1, 4>}, {pipeline_mode = #tpu.pipeline_mode<synchronous>, transform_indices = @transform_5, window_bounds = array<i64: 36, 4>}, {pipeline_mode = #tpu.pipeline_mode<synchronous>, transform_indices = @transform_6, window_bounds = array<i64: 1, 4>}, {pipeline_mode = #tpu.pipeline_mode<synchronous>, transform_indices = @transform_7, window_bounds = array<i64: 1, 4>}, {pipeline_mode = #tpu.pipeline_mode<synchronous>, transform_indices = @transform_8, window_bounds = array<i64: 1, 4>}, {transform_indices = @transform_9, window_bounds = array<i64: 1, 16, 16, 4>}]} {
    %c0 = arith.constant 0 : index
    %c0_0 = arith.constant 0 : index
    %c0_1 = arith.constant 0 : index
    %c0_2 = arith.constant 0 : index
    %0 = vector.load %arg1[%c0, %c0_0, %c0_1, %c0_2] : memref<1x16x16x4xf32, #tpu.memory_space<vmem>>, vector<1x16x16x4xf32>
    %1 = vector.shape_cast %0 : vector<1x16x16x4xf32> to vector<16x16x4xf32>
    %cst = arith.constant 0.000000e+00 : f32
    %2 = vector.broadcast %cst : f32 to vector<18x18x4xf32>
    %c0_3 = arith.constant 0 : index
    %c0_4 = arith.constant 0 : index
    %c0_5 = arith.constant 0 : index
    %3 = vector.load %arg11[%c0_3, %c0_4, %c0_5] : memref<18x18x4xf32, #tpu.memory_space<vmem>>, vector<18x18x4xf32>
    tpu.vector_store %arg11[%c0_3, %c0_4, %c0_5], %2 {strides = array<i32>} : memref<18x18x4xf32, #tpu.memory_space<vmem>>, vector<18x18x4xf32>,
    %c1 = arith.constant 1 : index
    %c1_6 = arith.constant 1 : index
    %c0_7 = arith.constant 0 : index
    %4 = vector.load %arg11[%c1, %c1_6, %c0_7] : memref<18x18x4xf32, #tpu.memory_space<vmem>>, vector<16x16x4xf32>
    tpu.vector_store %arg11[%c1, %c1_6, %c0_7], %1 {strides = array<i32>} : memref<18x18x4xf32, #tpu.memory_space<vmem>>, vector<16x16x4xf32>,
    %c0_8 = arith.constant 0 : index
    %c0_9 = arith.constant 0 : index
    %c0_10 = arith.constant 0 : index
    %5 = vector.load %arg11[%c0_8, %c0_9, %c0_10] : memref<18x18x4xf32, #tpu.memory_space<vmem>>, vector<18x18x4xf32>
    %6 = vector.extract_strided_slice %5 {offsets = [0, 0, 0], sizes = [16, 16, 4], strides = [1, 1, 1]} : vector<18x18x4xf32> to vector<16x16x4xf32>
    %7 = vector.shape_cast %6 : vector<16x16x4xf32> to vector<256x4xf32>
    %8 = vector.extract_strided_slice %5 {offsets = [0, 1, 0], sizes = [16, 16, 4], strides = [1, 1, 1]} : vector<18x18x4xf32> to vector<16x16x4xf32>
    %9 = vector.shape_cast %8 : vector<16x16x4xf32> to vector<256x4xf32>
    %10 = vector.extract_strided_slice %5 {offsets = [0, 2, 0], sizes = [16, 16, 4], strides = [1, 1, 1]} : vector<18x18x4xf32> to vector<16x16x4xf32>
    %11 = vector.shape_cast %10 : vector<16x16x4xf32> to vector<256x4xf32>
    %12 = vector.extract_strided_slice %5 {offsets = [1, 0, 0], sizes = [16, 16, 4], strides = [1, 1, 1]} : vector<18x18x4xf32> to vector<16x16x4xf32>
    %13 = vector.shape_cast %12 : vector<16x16x4xf32> to vector<256x4xf32>
    %14 = vector.extract_strided_slice %5 {offsets = [1, 1, 0], sizes = [16, 16, 4], strides = [1, 1, 1]} : vector<18x18x4xf32> to vector<16x16x4xf32>
    %15 = vector.shape_cast %14 : vector<16x16x4xf32> to vector<256x4xf32>
    %16 = vector.extract_strided_slice %5 {offsets = [1, 2, 0], sizes = [16, 16, 4], strides = [1, 1, 1]} : vector<18x18x4xf32> to vector<16x16x4xf32>
    %17 = vector.shape_cast %16 : vector<16x16x4xf32> to vector<256x4xf32>
    %18 = vector.extract_strided_slice %5 {offsets = [2, 0, 0], sizes = [16, 16, 4], strides = [1, 1, 1]} : vector<18x18x4xf32> to vector<16x16x4xf32>
    %19 = vector.shape_cast %18 : vector<16x16x4xf32> to vector<256x4xf32>
    %20 = vector.extract_strided_slice %5 {offsets = [2, 1, 0], sizes = [16, 16, 4], strides = [1, 1, 1]} : vector<18x18x4xf32> to vector<16x16x4xf32>
    %21 = vector.shape_cast %20 : vector<16x16x4xf32> to vector<256x4xf32>
    %22 = vector.extract_strided_slice %5 {offsets = [2, 2, 0], sizes = [16, 16, 4], strides = [1, 1, 1]} : vector<18x18x4xf32> to vector<16x16x4xf32>
    %23 = vector.shape_cast %22 : vector<16x16x4xf32> to vector<256x4xf32>
    %24 = tpu.concatenate %7, %9, %11, %13, %15, %17, %19, %21, %23 in 1 : vector<256x4xf32>, vector<256x4xf32>, vector<256x4xf32>, vector<256x4xf32>, vector<256x4xf32>, vector<256x4xf32>, vector<256x4xf32>, vector<256x4xf32>, vector<256x4xf32> -> vector<256x36xf32>
    %c0_11 = arith.constant 0 : index
    %c0_12 = arith.constant 0 : index
    %25 = vector.load %arg2[%c0_11, %c0_12] : memref<36x4xf32, #tpu.memory_space<vmem>>, vector<36x4xf32>
    %cst_13 = arith.constant dense<0.000000e+00> : vector<256x4xf32>
    %26 = tpu.matmul %24, %25, %cst_13 {dimension_numbers = #tpu.dot_dimension_numbers<[1], [0], [0], [1], [0, 0, 1, 1], [], []>} : vector<256x36xf32>, vector<36x4xf32>, vector<256x4xf32> -> vector<256x4xf32>
    %c0_14 = arith.constant 0 : index
    %c0_15 = arith.constant 0 : index
    %27 = vector.load %arg3[%c0_14, %c0_15] : memref<1x4xf32, #tpu.memory_space<vmem>>, vector<1x4xf32>
    %28 = vector.broadcast %27 : vector<1x4xf32> to vector<256x4xf32>
    %29 = arith.addf %26, %28 : vector<256x4xf32>
    %cst_16 = arith.constant dense<0.000000e+00> : vector<4xf32>
    %30 = vector.multi_reduction <add>, %29, %cst_16 [0] : vector<256x4xf32> to vector<4xf32>
    %31 = vector.shape_cast %30 : vector<4xf32> to vector<1x4xf32>
    %32 = arith.mulf %29, %29 : vector<256x4xf32>
    %cst_17 = arith.constant dense<0.000000e+00> : vector<4xf32>
    %33 = vector.multi_reduction <add>, %32, %cst_17 [0] : vector<256x4xf32> to vector<4xf32>
    %34 = vector.shape_cast %33 : vector<4xf32> to vector<1x4xf32>
    %cst_18 = arith.constant 3.906250e-03 : f32
    %35 = vector.broadcast %cst_18 : f32 to vector<1x4xf32>
    %36 = arith.mulf %31, %35 : vector<1x4xf32>
    %cst_19 = arith.constant 3.906250e-03 : f32
    %37 = vector.broadcast %cst_19 : f32 to vector<1x4xf32>
    %38 = arith.mulf %34, %37 : vector<1x4xf32>
    %39 = arith.mulf %36, %36 : vector<1x4xf32>
    %40 = arith.subf %38, %39 : vector<1x4xf32>
    %cst_20 = arith.constant 0.000000e+00 : f32
    %41 = vector.broadcast %cst_20 : f32 to vector<1x4xf32>
    %42 = arith.maximumf %40, %41 : vector<1x4xf32>
    %43 = vector.broadcast %36 : vector<1x4xf32> to vector<256x4xf32>
    %44 = arith.subf %29, %43 : vector<256x4xf32>
    %cst_21 = arith.constant 9.99999974E-6 : f32
    %45 = vector.broadcast %cst_21 : f32 to vector<1x4xf32>
    %46 = arith.addf %42, %45 : vector<1x4xf32>
    %47 = math.rsqrt %46 : vector<1x4xf32>
    %48 = vector.broadcast %47 : vector<1x4xf32> to vector<256x4xf32>
    %49 = arith.mulf %44, %48 : vector<256x4xf32>
    %c0_22 = arith.constant 0 : index
    %c0_23 = arith.constant 0 : index
    %50 = vector.load %arg4[%c0_22, %c0_23] : memref<1x4xf32, #tpu.memory_space<vmem>>, vector<1x4xf32>
    %51 = vector.broadcast %50 : vector<1x4xf32> to vector<256x4xf32>
    %52 = arith.mulf %49, %51 : vector<256x4xf32>
    %c0_24 = arith.constant 0 : index
    %c0_25 = arith.constant 0 : index
    %53 = vector.load %arg5[%c0_24, %c0_25] : memref<1x4xf32, #tpu.memory_space<vmem>>, vector<1x4xf32>
    %54 = vector.broadcast %53 : vector<1x4xf32> to vector<256x4xf32>
    %55 = arith.addf %52, %54 : vector<256x4xf32>
    %cst_26 = arith.constant 0.000000e+00 : f32
    %56 = vector.broadcast %cst_26 : f32 to vector<256x4xf32>
    %57 = arith.maximumf %55, %56 : vector<256x4xf32>
    %58 = vector.shape_cast %57 : vector<256x4xf32> to vector<16x16x4xf32>
    %c1_27 = arith.constant 1 : index
    %c1_28 = arith.constant 1 : index
    %c0_29 = arith.constant 0 : index
    %59 = vector.load %arg11[%c1_27, %c1_28, %c0_29] : memref<18x18x4xf32, #tpu.memory_space<vmem>>, vector<16x16x4xf32>
    tpu.vector_store %arg11[%c1_27, %c1_28, %c0_29], %58 {strides = array<i32>} : memref<18x18x4xf32, #tpu.memory_space<vmem>>, vector<16x16x4xf32>,
    %c0_30 = arith.constant 0 : index
    %c0_31 = arith.constant 0 : index
    %c0_32 = arith.constant 0 : index
    %60 = vector.load %arg11[%c0_30, %c0_31, %c0_32] : memref<18x18x4xf32, #tpu.memory_space<vmem>>, vector<18x18x4xf32>
    %61 = vector.extract_strided_slice %60 {offsets = [0, 0, 0], sizes = [16, 16, 4], strides = [1, 1, 1]} : vector<18x18x4xf32> to vector<16x16x4xf32>
    %62 = vector.shape_cast %61 : vector<16x16x4xf32> to vector<256x4xf32>
    %63 = vector.extract_strided_slice %60 {offsets = [0, 1, 0], sizes = [16, 16, 4], strides = [1, 1, 1]} : vector<18x18x4xf32> to vector<16x16x4xf32>
    %64 = vector.shape_cast %63 : vector<16x16x4xf32> to vector<256x4xf32>
    %65 = vector.extract_strided_slice %60 {offsets = [0, 2, 0], sizes = [16, 16, 4], strides = [1, 1, 1]} : vector<18x18x4xf32> to vector<16x16x4xf32>
    %66 = vector.shape_cast %65 : vector<16x16x4xf32> to vector<256x4xf32>
    %67 = vector.extract_strided_slice %60 {offsets = [1, 0, 0], sizes = [16, 16, 4], strides = [1, 1, 1]} : vector<18x18x4xf32> to vector<16x16x4xf32>
    %68 = vector.shape_cast %67 : vector<16x16x4xf32> to vector<256x4xf32>
    %69 = vector.extract_strided_slice %60 {offsets = [1, 1, 0], sizes = [16, 16, 4], strides = [1, 1, 1]} : vector<18x18x4xf32> to vector<16x16x4xf32>
    %70 = vector.shape_cast %69 : vector<16x16x4xf32> to vector<256x4xf32>
    %71 = vector.extract_strided_slice %60 {offsets = [1, 2, 0], sizes = [16, 16, 4], strides = [1, 1, 1]} : vector<18x18x4xf32> to vector<16x16x4xf32>
    %72 = vector.shape_cast %71 : vector<16x16x4xf32> to vector<256x4xf32>
    %73 = vector.extract_strided_slice %60 {offsets = [2, 0, 0], sizes = [16, 16, 4], strides = [1, 1, 1]} : vector<18x18x4xf32> to vector<16x16x4xf32>
    %74 = vector.shape_cast %73 : vector<16x16x4xf32> to vector<256x4xf32>
    %75 = vector.extract_strided_slice %60 {offsets = [2, 1, 0], sizes = [16, 16, 4], strides = [1, 1, 1]} : vector<18x18x4xf32> to vector<16x16x4xf32>
    %76 = vector.shape_cast %75 : vector<16x16x4xf32> to vector<256x4xf32>
    %77 = vector.extract_strided_slice %60 {offsets = [2, 2, 0], sizes = [16, 16, 4], strides = [1, 1, 1]} : vector<18x18x4xf32> to vector<16x16x4xf32>
    %78 = vector.shape_cast %77 : vector<16x16x4xf32> to vector<256x4xf32>
    %79 = tpu.concatenate %62, %64, %66, %68, %70, %72, %74, %76, %78 in 1 : vector<256x4xf32>, vector<256x4xf32>, vector<256x4xf32>, vector<256x4xf32>, vector<256x4xf32>, vector<256x4xf32>, vector<256x4xf32>, vector<256x4xf32>, vector<256x4xf32> -> vector<256x36xf32>
    %c0_33 = arith.constant 0 : index
    %c0_34 = arith.constant 0 : index
    %80 = vector.load %arg6[%c0_33, %c0_34] : memref<36x4xf32, #tpu.memory_space<vmem>>, vector<36x4xf32>
    %cst_35 = arith.constant dense<0.000000e+00> : vector<256x4xf32>
    %81 = tpu.matmul %79, %80, %cst_35 {dimension_numbers = #tpu.dot_dimension_numbers<[1], [0], [0], [1], [0, 0, 1, 1], [], []>} : vector<256x36xf32>, vector<36x4xf32>, vector<256x4xf32> -> vector<256x4xf32>
    %c0_36 = arith.constant 0 : index
    %c0_37 = arith.constant 0 : index
    %82 = vector.load %arg7[%c0_36, %c0_37] : memref<1x4xf32, #tpu.memory_space<vmem>>, vector<1x4xf32>
    %83 = vector.broadcast %82 : vector<1x4xf32> to vector<256x4xf32>
    %84 = arith.addf %81, %83 : vector<256x4xf32>
    %cst_38 = arith.constant dense<0.000000e+00> : vector<4xf32>
    %85 = vector.multi_reduction <add>, %84, %cst_38 [0] : vector<256x4xf32> to vector<4xf32>
    %86 = vector.shape_cast %85 : vector<4xf32> to vector<1x4xf32>
    %87 = arith.mulf %84, %84 : vector<256x4xf32>
    %cst_39 = arith.constant dense<0.000000e+00> : vector<4xf32>
    %88 = vector.multi_reduction <add>, %87, %cst_39 [0] : vector<256x4xf32> to vector<4xf32>
    %89 = vector.shape_cast %88 : vector<4xf32> to vector<1x4xf32>
    %cst_40 = arith.constant 3.906250e-03 : f32
    %90 = vector.broadcast %cst_40 : f32 to vector<1x4xf32>
    %91 = arith.mulf %86, %90 : vector<1x4xf32>
    %cst_41 = arith.constant 3.906250e-03 : f32
    %92 = vector.broadcast %cst_41 : f32 to vector<1x4xf32>
    %93 = arith.mulf %89, %92 : vector<1x4xf32>
    %94 = arith.mulf %91, %91 : vector<1x4xf32>
    %95 = arith.subf %93, %94 : vector<1x4xf32>
    %cst_42 = arith.constant 0.000000e+00 : f32
    %96 = vector.broadcast %cst_42 : f32 to vector<1x4xf32>
    %97 = arith.maximumf %95, %96 : vector<1x4xf32>
    %98 = vector.broadcast %91 : vector<1x4xf32> to vector<256x4xf32>
    %99 = arith.subf %84, %98 : vector<256x4xf32>
    %cst_43 = arith.constant 9.99999974E-6 : f32
    %100 = vector.broadcast %cst_43 : f32 to vector<1x4xf32>
    %101 = arith.addf %97, %100 : vector<1x4xf32>
    %102 = math.rsqrt %101 : vector<1x4xf32>
    %103 = vector.broadcast %102 : vector<1x4xf32> to vector<256x4xf32>
    %104 = arith.mulf %99, %103 : vector<256x4xf32>
    %c0_44 = arith.constant 0 : index
    %c0_45 = arith.constant 0 : index
    %105 = vector.load %arg8[%c0_44, %c0_45] : memref<1x4xf32, #tpu.memory_space<vmem>>, vector<1x4xf32>
    %106 = vector.broadcast %105 : vector<1x4xf32> to vector<256x4xf32>
    %107 = arith.mulf %104, %106 : vector<256x4xf32>
    %c0_46 = arith.constant 0 : index
    %c0_47 = arith.constant 0 : index
    %108 = vector.load %arg9[%c0_46, %c0_47] : memref<1x4xf32, #tpu.memory_space<vmem>>, vector<1x4xf32>
    %109 = vector.broadcast %108 : vector<1x4xf32> to vector<256x4xf32>
    %110 = arith.addf %107, %109 : vector<256x4xf32>
    %111 = vector.shape_cast %110 : vector<256x4xf32> to vector<16x16x4xf32>
    %112 = arith.addf %111, %1 : vector<16x16x4xf32>
    %c0_48 = arith.constant 0 : index
    %c0_49 = arith.constant 0 : index
    %c0_50 = arith.constant 0 : index
    %c0_51 = arith.constant 0 : index
    %113 = vector.load %arg10[%c0_48, %c0_49, %c0_50, %c0_51] : memref<1x16x16x4xf32, #tpu.memory_space<vmem>>, vector<1x16x16x4xf32>
    %114 = vector.shape_cast %113 : vector<1x16x16x4xf32> to vector<16x16x4xf32>
    %115 = vector.shape_cast %112 : vector<16x16x4xf32> to vector<1x16x16x4xf32>
    tpu.vector_store %arg10[%c0_48, %c0_49, %c0_50, %c0_51], %115 {strides = array<i32>} : memref<1x16x16x4xf32, #tpu.memory_space<vmem>>, vector<1x16x16x4xf32>,
    return
  }
  func.func @transform_0(%arg0: i32) -> (i32, i32, i32, i32) {
    %c0_i32 = arith.constant 0 : i32
    %c0_i32_0 = arith.constant 0 : i32
    %c0_i32_1 = arith.constant 0 : i32
    %c0_i32_2 = arith.constant 0 : i32
    return %arg0, %c0_i32, %c0_i32_0, %c0_i32_1 : i32, i32, i32, i32
  }
  func.func @transform_1(%arg0: i32) -> (i32, i32) {
    %c0_i32 = arith.constant 0 : i32
    %c0_i32_0 = arith.constant 0 : i32
    %c0_i32_1 = arith.constant 0 : i32
    return %c0_i32, %c0_i32_0 : i32, i32
  }
  func.func @transform_2(%arg0: i32) -> (i32, i32) {
    %c0_i32 = arith.constant 0 : i32
    %c0_i32_0 = arith.constant 0 : i32
    %c0_i32_1 = arith.constant 0 : i32
    return %c0_i32, %c0_i32_0 : i32, i32
  }
  func.func @transform_3(%arg0: i32) -> (i32, i32) {
    %c0_i32 = arith.constant 0 : i32
    %c0_i32_0 = arith.constant 0 : i32
    %c0_i32_1 = arith.constant 0 : i32
    return %c0_i32, %c0_i32_0 : i32, i32
  }
  func.func @transform_4(%arg0: i32) -> (i32, i32) {
    %c0_i32 = arith.constant 0 : i32
    %c0_i32_0 = arith.constant 0 : i32
    %c0_i32_1 = arith.constant 0 : i32
    return %c0_i32, %c0_i32_0 : i32, i32
  }
  func.func @transform_5(%arg0: i32) -> (i32, i32) {
    %c0_i32 = arith.constant 0 : i32
    %c0_i32_0 = arith.constant 0 : i32
    %c0_i32_1 = arith.constant 0 : i32
    return %c0_i32, %c0_i32_0 : i32, i32
  }
  func.func @transform_6(%arg0: i32) -> (i32, i32) {
    %c0_i32 = arith.constant 0 : i32
    %c0_i32_0 = arith.constant 0 : i32
    %c0_i32_1 = arith.constant 0 : i32
    return %c0_i32, %c0_i32_0 : i32, i32
  }
  func.func @transform_7(%arg0: i32) -> (i32, i32) {
    %c0_i32 = arith.constant 0 : i32
    %c0_i32_0 = arith.constant 0 : i32
    %c0_i32_1 = arith.constant 0 : i32
    return %c0_i32, %c0_i32_0 : i32, i32
  }
  func.func @transform_8(%arg0: i32) -> (i32, i32) {
    %c0_i32 = arith.constant 0 : i32
    %c0_i32_0 = arith.constant 0 : i32
    %c0_i32_1 = arith.constant 0 : i32
    return %c0_i32, %c0_i32_0 : i32, i32
  }
  func.func @transform_9(%arg0: i32) -> (i32, i32, i32, i32) {
    %c0_i32 = arith.constant 0 : i32
    %c0_i32_0 = arith.constant 0 : i32
    %c0_i32_1 = arith.constant 0 : i32
    %c0_i32_2 = arith.constant 0 : i32
    return %arg0, %c0_i32, %c0_i32_0, %c0_i32_1 : i32, i32, i32, i32
  }
}

</mosaic_0001>

<llo_original>
// kernel: tpu_custom_call.1
$region0: #{tpu_custom_call.1}
  #allocation0 [shape = 'u32[]', space=smem, size = 0x4, offset = 0x4, fixed_abs, tag = 'smem constant byte address 0x4 - core index']
  #allocation1 [shape = 'u32[144,128]{1,0:T(1,128)}', space=vmem, size = 0x12000, scoped, tag = 'internal scratch']
  #allocation2 [shape = 'f32[18,18,4]{2,1,0:T(8,128)}', space=vmem, size = 0x36000, scoped, tag = 'scratch operand']
  %s0 = inlined_call_operand.vmem [shape: f32[2,16,16,4], index: 0, kind: input, shape index: {}]
  %s1 = inlined_call_operand.vmem [shape: f32[36,4], index: 1, kind: input, shape index: {}]
  %s2 = inlined_call_operand.vmem [shape: f32[1,4], index: 2, kind: input, shape index: {}]
  %s3 = inlined_call_operand.vmem [shape: f32[1,4], index: 3, kind: input, shape index: {}]
  %s4 = inlined_call_operand.vmem [shape: f32[1,4], index: 4, kind: input, shape index: {}]
  %s5 = inlined_call_operand.vmem [shape: f32[36,4], index: 5, kind: input, shape index: {}]
  %s6 = inlined_call_operand.vmem [shape: f32[1,4], index: 6, kind: input, shape index: {}]
  %s7 = inlined_call_operand.vmem [shape: f32[1,4], index: 7, kind: input, shape index: {}]
  %s8 = inlined_call_operand.vmem [shape: f32[1,4], index: 8, kind: input, shape index: {}]
  %s9 = inlined_call_operand.vmem [shape: f32[2,16,16,4], index: 9, kind: output, shape index: {}]
  %s10 = sld [smem:[#allocation0]]
  $region69: #{tpu_custom_call.1} parent=0
    _
  %s12 = ssub.s32 1, %s10
  %s13 = scalar_select 0, %s12, %s10
  loop: start=0, step=1, limit=4
  $region2: #{tpu_custom_call.1} parent=0 // loop_pre_header
    _
  $region3: #{tpu_custom_call.1} parent=0 // loop_header
    %s15 = sphi 0, %s19
    %p16 = scmp.ge.s32.totalorder %s15, 4
    %s25 = sphi 0, %s27
    %s28 = sphi 0, %s25
    %s29 = sphi 0, %s28
    %s45 = sphi 0, %s29
    %s49 = sphi 0, %s49
    %s51 = sphi 0, %s49
    %s52 = sphi 0, %s51
    %s66 = sphi 0, %s52
    %s70 = sphi 0, %s70
    %s72 = sphi 0, %s70
    %s73 = sphi 0, %s72
    %s87 = sphi 0, %s73
    %s91 = sphi 0, %s91
    %s93 = sphi 0, %s91
    %s94 = sphi 0, %s93
    %s108 = sphi 0, %s94
    %s112 = sphi 0, %s112
    %s114 = sphi 0, %s112
    %s115 = sphi 0, %s114
    %s129 = sphi 0, %s115
    %s133 = sphi 0, %s133
    %s135 = sphi 0, %s133
    %s136 = sphi 0, %s135
    %s150 = sphi 0, %s136
    %s154 = sphi 0, %s154
    %s156 = sphi 0, %s154
    %s157 = sphi 0, %s156
    %s171 = sphi 0, %s157
    %s175 = sphi 0, %s175
    %s177 = sphi 0, %s175
    %s178 = sphi 0, %s177
    %s192 = sphi 0, %s178
    %s196 = sphi 0, %s196
    %s198 = sphi 0, %s196
    %s199 = sphi 0, %s198
    %s213 = sphi 0, %s199
    %s219 = sphi 0, %s221
    %s222 = sphi 0, %s219
    %s223 = sphi 0, %s222
    %s239 = sphi 0, %s223
  $region4: #{tpu_custom_call.1} parent=0 // loop_header_branch
    %18 = sbr.rel (%p16) target = $region8
  $region5: #{tpu_custom_call.1} parent=0 // loop_body
    %s20 = ssub.s32 %s15, 1
    %s21 = ssub.s32 %s15, 2
    %s22 = sadd.s32 %s15, 1
    %s23 = ssub.s32 %s15, %s22
    %p24 = scmp.eq.s32.totalorder %s23, 0
    %s26 = sadd.s32 %s25, 1
    %s27 = scalar_select %p24, %s25, %s26
    %p30 = pneg %p24
    %p31 = scmp.eq.s32.totalorder %s15, 1
    %p32 = por %p30, %p31
    %p33 = scmp.ne.s32.totalorder %s25, %s28
    %p34 = scmp.eq.s32.totalorder %s15, 0
    %p35 = por %p33, %p34
    %p36 = scmp.ne.s32.totalorder %s25, %s28
    %p37 = scmp.eq.s32.totalorder %s20, 1
    %p38 = por %p36, %p37
    %p39 = scmp.ne.s32.totalorder %s28, %s29
    %p40 = scmp.eq.s32.totalorder %s20, 0
    %p41 = por %p39, %p40
    %p42 = scmp.ne.s32.totalorder %s28, %s29
    %p43 = scmp.eq.s32.totalorder %s21, 1
    %p44 = por %p42, %p43
    %p46 = scmp.ne.s32.totalorder %s29, %s45
    %p47 = scmp.eq.s32.totalorder %s21, 0
    %p48 = por %p46, %p47
    %s50 = sadd.s32 %s49, 1
    %p53 = scmp.eq.s32.totalorder %s15, 1
    %p54 = scmp.ne.s32.totalorder %s49, %s51
    %p55 = scmp.eq.s32.totalorder %s15, 0
    %p56 = por %p54, %p55
    %p57 = scmp.ne.s32.totalorder %s49, %s51
    %p58 = scmp.eq.s32.totalorder %s20, 1
    %p59 = por %p57, %p58
    %p60 = scmp.ne.s32.totalorder %s51, %s52
    %p61 = scmp.eq.s32.totalorder %s20, 0
    %p62 = por %p60, %p61
    %p63 = scmp.ne.s32.totalorder %s51, %s52
    %p64 = scmp.eq.s32.totalorder %s21, 1
    %p65 = por %p63, %p64
    %p67 = scmp.ne.s32.totalorder %s52, %s66
    %p68 = scmp.eq.s32.totalorder %s21, 0
    %p69 = por %p67, %p68
    %s71 = sadd.s32 %s70, 1
    %p74 = scmp.eq.s32.totalorder %s15, 1
    %p75 = scmp.ne.s32.totalorder %s70, %s72
    %p76 = scmp.eq.s32.totalorder %s15, 0
    %p77 = por %p75, %p76
    %p78 = scmp.ne.s32.totalorder %s70, %s72
    %p79 = scmp.eq.s32.totalorder %s20, 1
    %p80 = por %p78, %p79
    %p81 = scmp.ne.s32.totalorder %s72, %s73
    %p82 = scmp.eq.s32.totalorder %s20, 0
    %p83 = por %p81, %p82
    %p84 = scmp.ne.s32.totalorder %s72, %s73
    %p85 = scmp.eq.s32.totalorder %s21, 1
    %p86 = por %p84, %p85
    %p88 = scmp.ne.s32.totalorder %s73, %s87
    %p89 = scmp.eq.s32.totalorder %s21, 0
    %p90 = por %p88, %p89
    %s92 = sadd.s32 %s91, 1
    %p95 = scmp.eq.s32.totalorder %s15, 1
    %p96 = scmp.ne.s32.totalorder %s91, %s93
    %p97 = scmp.eq.s32.totalorder %s15, 0
    %p98 = por %p96, %p97
    %p99 = scmp.ne.s32.totalorder %s91, %s93
    %p100 = scmp.eq.s32.totalorder %s20, 1
    %p101 = por %p99, %p100
    %p102 = scmp.ne.s32.totalorder %s93, %s94
    %p103 = scmp.eq.s32.totalorder %s20, 0
    %p104 = por %p102, %p103
    %p105 = scmp.ne.s32.totalorder %s93, %s94
    %p106 = scmp.eq.s32.totalorder %s21, 1
    %p107 = por %p105, %p106
    %p109 = scmp.ne.s32.totalorder %s94, %s108
    %p110 = scmp.eq.s32.totalorder %s21, 0
    %p111 = por %p109, %p110
    %s113 = sadd.s32 %s112, 1
    %p116 = scmp.eq.s32.totalorder %s15, 1
    %p117 = scmp.ne.s32.totalorder %s112, %s114
    %p118 = scmp.eq.s32.totalorder %s15, 0
    %p119 = por %p117, %p118
    %p120 = scmp.ne.s32.totalorder %s112, %s114
    %p121 = scmp.eq.s32.totalorder %s20, 1
    %p122 = por %p120, %p121
    %p123 = scmp.ne.s32.totalorder %s114, %s115
    %p124 = scmp.eq.s32.totalorder %s20, 0
    %p125 = por %p123, %p124
    %p126 = scmp.ne.s32.totalorder %s114, %s115
    %p127 = scmp.eq.s32.totalorder %s21, 1
    %p128 = por %p126, %p127
    %p130 = scmp.ne.s32.totalorder %s115, %s129
    %p131 = scmp.eq.s32.totalorder %s21, 0
    %p132 = por %p130, %p131
    %s134 = sadd.s32 %s133, 1
    %p137 = scmp.eq.s32.totalorder %s15, 1
    %p138 = scmp.ne.s32.totalorder %s133, %s135
    %p139 = scmp.eq.s32.totalorder %s15, 0
    %p140 = por %p138, %p139
    %p141 = scmp.ne.s32.totalorder %s133, %s135
    %p142 = scmp.eq.s32.totalorder %s20, 1
    %p143 = por %p141, %p142
    %p144 = scmp.ne.s32.totalorder %s135, %s136
    %p145 = scmp.eq.s32.totalorder %s20, 0
    %p146 = por %p144, %p145
    %p147 = scmp.ne.s32.totalorder %s135, %s136
    %p148 = scmp.eq.s32.totalorder %s21, 1
    %p149 = por %p147, %p148
    %p151 = scmp.ne.s32.totalorder %s136, %s150
    %p152 = scmp.eq.s32.totalorder %s21, 0
    %p153 = por %p151, %p152
    %s155 = sadd.s32 %s154, 1
    %p158 = scmp.eq.s32.totalorder %s15, 1
    %p159 = scmp.ne.s32.totalorder %s154, %s156
    %p160 = scmp.eq.s32.totalorder %s15, 0
    %p161 = por %p159, %p160
    %p162 = scmp.ne.s32.totalorder %s154, %s156
    %p163 = scmp.eq.s32.totalorder %s20, 1
    %p164 = por %p162, %p163
    %p165 = scmp.ne.s32.totalorder %s156, %s157
    %p166 = scmp.eq.s32.totalorder %s20, 0
    %p167 = por %p165, %p166
    %p168 = scmp.ne.s32.totalorder %s156, %s157
    %p169 = scmp.eq.s32.totalorder %s21, 1
    %p170 = por %p168, %p169
    %p172 = scmp.ne.s32.totalorder %s157, %s171
    %p173 = scmp.eq.s32.totalorder %s21, 0
    %p174 = por %p172, %p173
    %s176 = sadd.s32 %s175, 1
    %p179 = scmp.eq.s32.totalorder %s15, 1
    %p180 = scmp.ne.s32.totalorder %s175, %s177
    %p181 = scmp.eq.s32.totalorder %s15, 0
    %p182 = por %p180, %p181
    %p183 = scmp.ne.s32.totalorder %s175, %s177
    %p184 = scmp.eq.s32.totalorder %s20, 1
    %p185 = por %p183, %p184
    %p186 = scmp.ne.s32.totalorder %s177, %s178
    %p187 = scmp.eq.s32.totalorder %s20, 0
    %p188 = por %p186, %p187
    %p189 = scmp.ne.s32.totalorder %s177, %s178
    %p190 = scmp.eq.s32.totalorder %s21, 1
    %p191 = por %p189, %p190
    %p193 = scmp.ne.s32.totalorder %s178, %s192
    %p194 = scmp.eq.s32.totalorder %s21, 0
    %p195 = por %p193, %p194
    %s197 = sadd.s32 %s196, 1
    %p200 = scmp.eq.s32.totalorder %s15, 1
    %p201 = scmp.ne.s32.totalorder %s196, %s198
    %p202 = scmp.eq.s32.totalorder %s15, 0
    %p203 = por %p201, %p202
    %p204 = scmp.ne.s32.totalorder %s196, %s198
    %p205 = scmp.eq.s32.totalorder %s20, 1
    %p206 = por %p204, %p205
    %p207 = scmp.ne.s32.totalorder %s198, %s199
    %p208 = scmp.eq.s32.totalorder %s20, 0
    %p209 = por %p207, %p208
    %p210 = scmp.ne.s32.totalorder %s198, %s199
    %p211 = scmp.eq.s32.totalorder %s21, 1
    %p212 = por %p210, %p211
    %p214 = scmp.ne.s32.totalorder %s199, %s213
    %p215 = scmp.eq.s32.totalorder %s21, 0
    %p216 = por %p214, %p215
    %s217 = ssub.s32 %s15, %s22
    %p218 = scmp.eq.s32.totalorder %s217, 0
    %s220 = sadd.s32 %s219, 1
    %s221 = scalar_select %p218, %s219, %s220
    %p224 = pneg %p218
    %p225 = scmp.eq.s32.totalorder %s15, 1
    %p226 = por %p224, %p225
    %p227 = scmp.ne.s32.totalorder %s219, %s222
    %p228 = scmp.eq.s32.totalorder %s15, 0
    %p229 = por %p227, %p228
    %p230 = scmp.ne.s32.totalorder %s219, %s222
    %p231 = scmp.eq.s32.totalorder %s20, 1
    %p232 = por %p230, %p231
    %p233 = scmp.ne.s32.totalorder %s222, %s223
    %p234 = scmp.eq.s32.totalorder %s20, 0
    %p235 = por %p233, %p234
    %p236 = scmp.ne.s32.totalorder %s222, %s223
    %p237 = scmp.eq.s32.totalorder %s21, 1
    %p238 = por %p236, %p237
    %p240 = scmp.ne.s32.totalorder %s223, %s239
    %p241 = scmp.eq.s32.totalorder %s21, 0
    %p242 = por %p240, %p241
    %p243 = scmp.le.s32.totalorder 1, %s15
    %p244 = scmp.lt.s32.totalorder %s15, 3
    %p245 = pnand %p243, %p244
    %p246 = pneg %p245
    // Predicated region
    $region9: #{tpu_custom_call.1} parent=5 // pred_check
      _
    $region10: #{tpu_custom_call.1} parent=5 // pred_check_branch
      %248 = sbr.rel (%p245) target = $region12
    $region11: #{tpu_custom_call.1} parent=5 // pred_region
      %s249 = ssub.s32 %s15, 1
      // Predicated region
      $region13: #{tpu_custom_call.1} parent=11 // pred_check
        %p250 = pneg %p62
      $region14: #{tpu_custom_call.1} parent=11 // pred_check_branch
        %252 = sbr.rel (%p250) target = $region16
      $region15: #{tpu_custom_call.1} parent=11 // pred_region
        _
      $region16: #{tpu_custom_call.1} parent=11 // pred_fallthru
        _
      // Predicated region
      $region17: #{tpu_custom_call.1} parent=11 // pred_check
        %p253 = pneg %p83
      $region18: #{tpu_custom_call.1} parent=11 // pred_check_branch
        %255 = sbr.rel (%p253) target = $region20
      $region19: #{tpu_custom_call.1} parent=11 // pred_region
        _
      $region20: #{tpu_custom_call.1} parent=11 // pred_fallthru
        _
      // Predicated region
      $region21: #{tpu_custom_call.1} parent=11 // pred_check
        %p256 = pneg %p104
      $region22: #{tpu_custom_call.1} parent=11 // pred_check_branch
        %258 = sbr.rel (%p256) target = $region24
      $region23: #{tpu_custom_call.1} parent=11 // pred_region
        _
      $region24: #{tpu_custom_call.1} parent=11 // pred_fallthru
        _
      // Predicated region
      $region25: #{tpu_custom_call.1} parent=11 // pred_check
        %p259 = pneg %p125
      $region26: #{tpu_custom_call.1} parent=11 // pred_check_branch
        %261 = sbr.rel (%p259) target = $region28
      $region27: #{tpu_custom_call.1} parent=11 // pred_region
        _
      $region28: #{tpu_custom_call.1} parent=11 // pred_fallthru
        _
      // Predicated region
      $region29: #{tpu_custom_call.1} parent=11 // pred_check
        %p262 = pneg %p146
      $region30: #{tpu_custom_call.1} parent=11 // pred_check_branch
        %264 = sbr.rel (%p262) target = $region32
      $region31: #{tpu_custom_call.1} parent=11 // pred_region
        _
      $region32: #{tpu_custom_call.1} parent=11 // pred_fallthru
        _
      // Predicated region
      $region33: #{tpu_custom_call.1} parent=11 // pred_check
        %p265 = pneg %p167
      $region34: #{tpu_custom_call.1} parent=11 // pred_check_branch
        %267 = sbr.rel (%p265) target = $region36
      $region35: #{tpu_custom_call.1} parent=11 // pred_region
        _
      $region36: #{tpu_custom_call.1} parent=11 // pred_fallthru
        _
      // Predicated region
      $region37: #{tpu_custom_call.1} parent=11 // pred_check
        %p268 = pneg %p188
      $region38: #{tpu_custom_call.1} parent=11 // pred_check_branch
        %270 = sbr.rel (%p268) target = $region40
      $region39: #{tpu_custom_call.1} parent=11 // pred_region
        _
      $region40: #{tpu_custom_call.1} parent=11 // pred_fallthru
        _
      // Predicated region
      $region41: #{tpu_custom_call.1} parent=11 // pred_check
        %p271 = pneg %p209
      $region42: #{tpu_custom_call.1} parent=11 // pred_check_branch
        %273 = sbr.rel (%p271) target = $region44
      $region43: #{tpu_custom_call.1} parent=11 // pred_region
        _
      $region44: #{tpu_custom_call.1} parent=11 // pred_fallthru
        _
    $region12: #{tpu_custom_call.1} parent=5 // pred_fallthru
      _
    %p274 = scmp.lt.s32.totalorder %s15, 2
    // Predicated region
    $region45: #{tpu_custom_call.1} parent=5 // pred_check
      %p275 = pneg %p274
    $region46: #{tpu_custom_call.1} parent=5 // pred_check_branch
      %277 = sbr.rel (%p275) target = $region48
    $region47: #{tpu_custom_call.1} parent=5 // pred_region
      // Predicated region
      $region49: #{tpu_custom_call.1} parent=47 // pred_check
        %p278 = pneg %p35
      $region50: #{tpu_custom_call.1} parent=47 // pred_check_branch
        %280 = sbr.rel (%p278) target = $region52
      $region51: #{tpu_custom_call.1} parent=47 // pred_region
        %p281 = scmp.lt.s32.totalorder %s15, 1
        %s282 = scalar_select %p281, %s15, 1
        %s283 = smul.addr %s282, 32
        %s284 = smul.addr %s283, 8
        %s285 = scalar_lea.vmem %s0, %s284
      $region52: #{tpu_custom_call.1} parent=47 // pred_fallthru
        _
    $region48: #{tpu_custom_call.1} parent=5 // pred_fallthru
      _
    %p286 = scmp.le.s32.totalorder 1, %s15
    %p287 = scmp.lt.s32.totalorder %s15, 3
    %p288 = pnand %p286, %p287
    %p289 = pneg %p288
    // Predicated region
    $region53: #{tpu_custom_call.1} parent=5 // pred_check
      _
    $region54: #{tpu_custom_call.1} parent=5 // pred_check_branch
      %291 = sbr.rel (%p288) target = $region56
    $region55: #{tpu_custom_call.1} parent=5 // pred_region
      %s292 = ssub.s32 %s15, 1
      %p293 = scmp.lt.s32.totalorder %s20, 1
      %s294 = scalar_select %p293, %s20, 1
      %s295 = smul.addr %s294, 32
      %s296 = smul.addr %s295, 8
      %s297 = scalar_lea.vmem %s0, %s296
      %p298 = pneg %p41
      %p299 = pneg %p38
      %p300 = pneg %p62
      %p301 = pneg %p59
      %p302 = pneg %p83
      %p303 = pneg %p80
      %p304 = pneg %p104
      %p305 = pneg %p101
      %p306 = pneg %p125
      %p307 = pneg %p122
      %p308 = pneg %p146
      %p309 = pneg %p143
      %p310 = pneg %p167
      %p311 = pneg %p164
      %p312 = pneg %p188
      %p313 = pneg %p185
      %p314 = pneg %p209
      %p315 = pneg %p206
      %p316 = pneg %p235
      %p317 = pneg %p232
      %p318 = scmp.lt.s32.totalorder %s20, 1
      %s319 = scalar_select %p318, %s20, 1
      %s320 = smul.addr %s319, 32
      %s321 = smul.addr %s320, 8
      %s322 = scalar_lea.vmem %s9, %s321
      %p323 = scmp.lt.s32.totalorder %s20, 1
      %s324 = scalar_select %p323, %s20, 1
      %s325 = smul.addr %s324, 32
      %s326 = smul.addr %s325, 8
      %s327 = scalar_lea.vmem %s0, %s326
      %p328 = scmp.lt.s32.totalorder %s20, 1
      %s329 = scalar_select %p328, %s20, 1
      %s330 = smul.addr %s329, 32
      %s331 = smul.addr %s330, 8
      %s332 = scalar_lea.vmem %s9, %s331
      %v333 = vld [vmem:[%s327] sm:$0xff]
      %v334 = vld [vmem:[%s327 + $0x8] sm:$0xff]
      %v335 = vld [vmem:[%s327 + $0x10] sm:$0xff]
      %v336 = vld [vmem:[%s327 + $0x18] sm:$0xff]
      %v337 = vld [vmem:[%s327 + $0x20] sm:$0xff]
      %v338 = vld [vmem:[%s327 + $0x28] sm:$0xff]
      %v339 = vld [vmem:[%s327 + $0x30] sm:$0xff]
      %v340 = vld [vmem:[%s327 + $0x38] sm:$0xff]
      %v341 = vld [vmem:[%s327 + $0x40] sm:$0xff]
      %v342 = vld [vmem:[%s327 + $0x48] sm:$0xff]
      %v343 = vld [vmem:[%s327 + $0x50] sm:$0xff]
      %v344 = vld [vmem:[%s327 + $0x58] sm:$0xff]
      %v345 = vld [vmem:[%s327 + $0x60] sm:$0xff]
      %v346 = vld [vmem:[%s327 + $0x68] sm:$0xff]
      %v347 = vld [vmem:[%s327 + $0x70] sm:$0xff]
      %v348 = vld [vmem:[%s327 + $0x78] sm:$0xff]
      %v349 = vld [vmem:[%s327 + $0x80] sm:$0xff]
      %v350 = vld [vmem:[%s327 + $0x88] sm:$0xff]
      %v351 = vld [vmem:[%s327 + $0x90] sm:$0xff]
      %v352 = vld [vmem:[%s327 + $0x98] sm:$0xff]
      %v353 = vld [vmem:[%s327 + $0xa0] sm:$0xff]
      %v354 = vld [vmem:[%s327 + $0xa8] sm:$0xff]
      %v355 = vld [vmem:[%s327 + $0xb0] sm:$0xff]
      %v356 = vld [vmem:[%s327 + $0xb8] sm:$0xff]
      %v357 = vld [vmem:[%s327 + $0xc0] sm:$0xff]
      %v358 = vld [vmem:[%s327 + $0xc8] sm:$0xff]
      %v359 = vld [vmem:[%s327 + $0xd0] sm:$0xff]
      %v360 = vld [vmem:[%s327 + $0xd8] sm:$0xff]
      %v361 = vld [vmem:[%s327 + $0xe0] sm:$0xff]
      %v362 = vld [vmem:[%s327 + $0xe8] sm:$0xff]
      %v363 = vld [vmem:[%s327 + $0xf0] sm:$0xff]
      %v364 = vld [vmem:[%s327 + $0xf8] sm:$0xff]
      %vm365 = vcmask 31744
      %366 = vst.msk [vmem:[#allocation2] sm:$0xff] %vm365, 0.0
      %367 = vst.msk [vmem:[#allocation2 + $0x8] sm:$0xff] %vm365, 0.0
      %vm368 = vcmask 25600
      %369 = vst.msk [vmem:[#allocation2 + $0x10] sm:$0x3] %vm368, 0.0
      %370 = vst.msk [vmem:[#allocation2 + $0x18] sm:$0xff] %vm365, 0.0
      %371 = vst.msk [vmem:[#allocation2 + $0x20] sm:$0xff] %vm365, 0.0
      %372 = vst.msk [vmem:[#allocation2 + $0x28] sm:$0x3] %vm368, 0.0
      %373 = vst.msk [vmem:[#allocation2 + $0x30] sm:$0xff] %vm365, 0.0
      %374 = vst.msk [vmem:[#allocation2 + $0x38] sm:$0xff] %vm365, 0.0
      %375 = vst.msk [vmem:[#allocation2 + $0x40] sm:$0x3] %vm368, 0.0
      %376 = vst.msk [vmem:[#allocation2 + $0x48] sm:$0xff] %vm365, 0.0
      %377 = vst.msk [vmem:[#allocation2 + $0x50] sm:$0xff] %vm365, 0.0
      %378 = vst.msk [vmem:[#allocation2 + $0x58] sm:$0x3] %vm368, 0.0
      %379 = vst.msk [vmem:[#allocation2 + $0x60] sm:$0xff] %vm365, 0.0
      %380 = vst.msk [vmem:[#allocation2 + $0x68] sm:$0xff] %vm365, 0.0
      %381 = vst.msk [vmem:[#allocation2 + $0x70] sm:$0x3] %vm368, 0.0
      %382 = vst.msk [vmem:[#allocation2 + $0x78] sm:$0xff] %vm365, 0.0
      %383 = vst.msk [vmem:[#allocation2 + $0x80] sm:$0xff] %vm365, 0.0
      %384 = vst.msk [vmem:[#allocation2 + $0x88] sm:$0x3] %vm368, 0.0
      %385 = vst.msk [vmem:[#allocation2 + $0x90] sm:$0xff] %vm365, 0.0
      %386 = vst.msk [vmem:[#allocation2 + $0x98] sm:$0xff] %vm365, 0.0
      %387 = vst.msk [vmem:[#allocation2 + $0xa0] sm:$0x3] %vm368, 0.0
      %388 = vst.msk [vmem:[#allocation2 + $0xa8] sm:$0xff] %vm365, 0.0
      %389 = vst.msk [vmem:[#allocation2 + $0xb0] sm:$0xff] %vm365, 0.0
      %390 = vst.msk [vmem:[#allocation2 + $0xb8] sm:$0x3] %vm368, 0.0
      %391 = vst.msk [vmem:[#allocation2 + $0xc0] sm:$0xff] %vm365, 0.0
      %392 = vst.msk [vmem:[#allocation2 + $0xc8] sm:$0xff] %vm365, 0.0
      %393 = vst.msk [vmem:[#allocation2 + $0xd0] sm:$0x3] %vm368, 0.0
      %394 = vst.msk [vmem:[#allocation2 + $0xd8] sm:$0xff] %vm365, 0.0
      %395 = vst.msk [vmem:[#allocation2 + $0xe0] sm:$0xff] %vm365, 0.0
      %396 = vst.msk [vmem:[#allocation2 + $0xe8] sm:$0x3] %vm368, 0.0
      %397 = vst.msk [vmem:[#allocation2 + $0xf0] sm:$0xff] %vm365, 0.0
      %398 = vst.msk [vmem:[#allocation2 + $0xf8] sm:$0xff] %vm365, 0.0
      %399 = vst.msk [vmem:[#allocation2 + $0x100] sm:$0x3] %vm368, 0.0
      %400 = vst.msk [vmem:[#allocation2 + $0x108] sm:$0xff] %vm365, 0.0
      %401 = vst.msk [vmem:[#allocation2 + $0x110] sm:$0xff] %vm365, 0.0
      %402 = vst.msk [vmem:[#allocation2 + $0x118] sm:$0x3] %vm368, 0.0
      %403 = vst.msk [vmem:[#allocation2 + $0x120] sm:$0xff] %vm365, 0.0
      %404 = vst.msk [vmem:[#allocation2 + $0x128] sm:$0xff] %vm365, 0.0
      %405 = vst.msk [vmem:[#allocation2 + $0x130] sm:$0x3] %vm368, 0.0
      %406 = vst.msk [vmem:[#allocation2 + $0x138] sm:$0xff] %vm365, 0.0
      %407 = vst.msk [vmem:[#allocation2 + $0x140] sm:$0xff] %vm365, 0.0
      %408 = vst.msk [vmem:[#allocation2 + $0x148] sm:$0x3] %vm368, 0.0
      %409 = vst.msk [vmem:[#allocation2 + $0x150] sm:$0xff] %vm365, 0.0
      %410 = vst.msk [vmem:[#allocation2 + $0x158] sm:$0xff] %vm365, 0.0
      %411 = vst.msk [vmem:[#allocation2 + $0x160] sm:$0x3] %vm368, 0.0
      %412 = vst.msk [vmem:[#allocation2 + $0x168] sm:$0xff] %vm365, 0.0
      %413 = vst.msk [vmem:[#allocation2 + $0x170] sm:$0xff] %vm365, 0.0
      %414 = vst.msk [vmem:[#allocation2 + $0x178] sm:$0x3] %vm368, 0.0
      %415 = vst.msk [vmem:[#allocation2 + $0x180] sm:$0xff] %vm365, 0.0
      %416 = vst.msk [vmem:[#allocation2 + $0x188] sm:$0xff] %vm365, 0.0
      %417 = vst.msk [vmem:[#allocation2 + $0x190] sm:$0x3] %vm368, 0.0
      %418 = vst.msk [vmem:[#allocation2 + $0x198] sm:$0xff] %vm365, 0.0
      %419 = vst.msk [vmem:[#allocation2 + $0x1a0] sm:$0xff] %vm365, 0.0
      %420 = vst.msk [vmem:[#allocation2 + $0x1a8] sm:$0x3] %vm368, 0.0
      %s421 = scalar_lea.vmem [#allocation2], 24
      %422 = vst.msk [vmem:[%s421 + $0x1] sm:$0xff] %vm365, %v333
      %423 = vst.msk [vmem:[%s421 + $0x9] sm:$0xff] %vm365, %v334
      %424 = vst.msk [vmem:[%s421 + $0x19] sm:$0xff] %vm365, %v335
      %425 = vst.msk [vmem:[%s421 + $0x21] sm:$0xff] %vm365, %v336
      %426 = vst.msk [vmem:[%s421 + $0x31] sm:$0xff] %vm365, %v337
      %427 = vst.msk [vmem:[%s421 + $0x39] sm:$0xff] %vm365, %v338
      %428 = vst.msk [vmem:[%s421 + $0x49] sm:$0xff] %vm365, %v339
      %429 = vst.msk [vmem:[%s421 + $0x51] sm:$0xff] %vm365, %v340
      %430 = vst.msk [vmem:[%s421 + $0x61] sm:$0xff] %vm365, %v341
      %431 = vst.msk [vmem:[%s421 + $0x69] sm:$0xff] %vm365, %v342
      %432 = vst.msk [vmem:[%s421 + $0x79] sm:$0xff] %vm365, %v343
      %433 = vst.msk [vmem:[%s421 + $0x81] sm:$0xff] %vm365, %v344
      %434 = vst.msk [vmem:[%s421 + $0x91] sm:$0xff] %vm365, %v345
      %435 = vst.msk [vmem:[%s421 + $0x99] sm:$0xff] %vm365, %v346
      %436 = vst.msk [vmem:[%s421 + $0xa9] sm:$0xff] %vm365, %v347
      %437 = vst.msk [vmem:[%s421 + $0xb1] sm:$0xff] %vm365, %v348
      %438 = vst.msk [vmem:[%s421 + $0xc1] sm:$0xff] %vm365, %v349
      %439 = vst.msk [vmem:[%s421 + $0xc9] sm:$0xff] %vm365, %v350
      %440 = vst.msk [vmem:[%s421 + $0xd9] sm:$0xff] %vm365, %v351
      %441 = vst.msk [vmem:[%s421 + $0xe1] sm:$0xff] %vm365, %v352
      %442 = vst.msk [vmem:[%s421 + $0xf1] sm:$0xff] %vm365, %v353
      %443 = vst.msk [vmem:[%s421 + $0xf9] sm:$0xff] %vm365, %v354
      %444 = vst.msk [vmem:[%s421 + $0x109] sm:$0xff] %vm365, %v355
      %445 = vst.msk [vmem:[%s421 + $0x111] sm:$0xff] %vm365, %v356
      %446 = vst.msk [vmem:[%s421 + $0x121] sm:$0xff] %vm365, %v357
      %447 = vst.msk [vmem:[%s421 + $0x129] sm:$0xff] %vm365, %v358
      %448 = vst.msk [vmem:[%s421 + $0x139] sm:$0xff] %vm365, %v359
      %449 = vst.msk [vmem:[%s421 + $0x141] sm:$0xff] %vm365, %v360
      %450 = vst.msk [vmem:[%s421 + $0x151] sm:$0xff] %vm365, %v361
      %451 = vst.msk [vmem:[%s421 + $0x159] sm:$0xff] %vm365, %v362
      %452 = vst.msk [vmem:[%s421 + $0x169] sm:$0xff] %vm365, %v363
      %453 = vst.msk [vmem:[%s421 + $0x171] sm:$0xff] %vm365, %v364
      %v454 = vld [vmem:[#allocation2] sm:$0xff]
      %v455 = vld [vmem:[#allocation2 + $0x8] sm:$0xff]
      %v456 = vld [vmem:[#allocation2 + $0x10] sm:$0x3]
      %v457 = vld [vmem:[#allocation2 + $0x18] sm:$0xff]
      %v458 = vld [vmem:[#allocation2 + $0x20] sm:$0xff]
      %v459 = vld [vmem:[#allocation2 + $0x28] sm:$0x3]
      %v460 = vld [vmem:[#allocation2 + $0x30] sm:$0xff]
      %v461 = vld [vmem:[#allocation2 + $0x38] sm:$0xff]
      %v462 = vld [vmem:[#allocation2 + $0x40] sm:$0x3]
      %v463 = vld [vmem:[#allocation2 + $0x48] sm:$0xff]
      %v464 = vld [vmem:[#allocation2 + $0x50] sm:$0xff]
      %v465 = vld [vmem:[#allocation2 + $0x58] sm:$0x3]
      %v466 = vld [vmem:[#allocation2 + $0x60] sm:$0xff]
      %v467 = vld [vmem:[#allocation2 + $0x68] sm:$0xff]
      %v468 = vld [vmem:[#allocation2 + $0x70] sm:$0x3]
      %v469 = vld [vmem:[#allocation2 + $0x78] sm:$0xff]
      %v470 = vld [vmem:[#allocation2 + $0x80] sm:$0xff]
      %v471 = vld [vmem:[#allocation2 + $0x88] sm:$0x3]
      %v472 = vld [vmem:[#allocation2 + $0x90] sm:$0xff]
      %v473 = vld [vmem:[#allocation2 + $0x98] sm:$0xff]
      %v474 = vld [vmem:[#allocation2 + $0xa0] sm:$0x3]
      %v475 = vld [vmem:[#allocation2 + $0xa8] sm:$0xff]
      %v476 = vld [vmem:[#allocation2 + $0xb0] sm:$0xff]
      %v477 = vld [vmem:[#allocation2 + $0xb8] sm:$0x3]
      %v478 = vld [vmem:[#allocation2 + $0xc0] sm:$0xff]
      %v479 = vld [vmem:[#allocation2 + $0xc8] sm:$0xff]
      %v480 = vld [vmem:[#allocation2 + $0xd0] sm:$0x3]
      %v481 = vld [vmem:[#allocation2 + $0xd8] sm:$0xff]
      %v482 = vld [vmem:[#allocation2 + $0xe0] sm:$0xff]
      %v483 = vld [vmem:[#allocation2 + $0xe8] sm:$0x3]
      %v484 = vld [vmem:[#allocation2 + $0xf0] sm:$0xff]
      %v485 = vld [vmem:[#allocation2 + $0xf8] sm:$0xff]
      %v486 = vld [vmem:[#allocation2 + $0x100] sm:$0x3]
      %v487 = vld [vmem:[#allocation2 + $0x108] sm:$0xff]
      %v488 = vld [vmem:[#allocation2 + $0x110] sm:$0xff]
      %v489 = vld [vmem:[#allocation2 + $0x118] sm:$0x3]
      %v490 = vld [vmem:[#allocation2 + $0x120] sm:$0xff]
      %v491 = vld [vmem:[#allocation2 + $0x128] sm:$0xff]
      %v492 = vld [vmem:[#allocation2 + $0x130] sm:$0x3]
      %v493 = vld [vmem:[#allocation2 + $0x138] sm:$0xff]
      %v494 = vld [vmem:[#allocation2 + $0x140] sm:$0xff]
      %v495 = vld [vmem:[#allocation2 + $0x148] sm:$0x3]
      %v496 = vld [vmem:[#allocation2 + $0x150] sm:$0xff]
      %v497 = vld [vmem:[#allocation2 + $0x158] sm:$0xff]
      %v498 = vld [vmem:[#allocation2 + $0x160] sm:$0x3]
      %v499 = vld [vmem:[#allocation2 + $0x168] sm:$0xff]
      %v500 = vld [vmem:[#allocation2 + $0x170] sm:$0xff]
      %v501 = vld [vmem:[#allocation2 + $0x178] sm:$0x3]
      %v502 = vld [vmem:[#allocation2 + $0x180] sm:$0xff]
      %v503 = vld [vmem:[#allocation2 + $0x188] sm:$0xff]
      %v504 = vld [vmem:[#allocation2 + $0x190] sm:$0x3]
      %v505 = vld [vmem:[#allocation2 + $0x198] sm:$0xff]
      %v506 = vld [vmem:[#allocation2 + $0x1a0] sm:$0xff]
      %v507 = vld [vmem:[#allocation2 + $0x1a8] sm:$0x3]
      %vm556 = vcmask 1046528
      %v557 = vrot.slane %v454, 1
      %v558 = vrot.slane %v455, 1
      %v559 = vsel %vm556, %v557, %v558
      %v560 = vrot.slane %v456, 1
      %v561 = vsel %vm556, %v558, %v560
      %v562 = vrot.slane %v457, 1
      %v563 = vrot.slane %v458, 1
      %v564 = vsel %vm556, %v562, %v563
      %v565 = vrot.slane %v459, 1
      %v566 = vsel %vm556, %v563, %v565
      %v567 = vrot.slane %v460, 1
      %v568 = vrot.slane %v461, 1
      %v569 = vsel %vm556, %v567, %v568
      %v570 = vrot.slane %v462, 1
      %v571 = vsel %vm556, %v568, %v570
      %v572 = vrot.slane %v463, 1
      %v573 = vrot.slane %v464, 1
      %v574 = vsel %vm556, %v572, %v573
      %v575 = vrot.slane %v465, 1
      %v576 = vsel %vm556, %v573, %v575
      %v577 = vrot.slane %v466, 1
      %v578 = vrot.slane %v467, 1
      %v579 = vsel %vm556, %v577, %v578
      %v580 = vrot.slane %v468, 1
      %v581 = vsel %vm556, %v578, %v580
      %v582 = vrot.slane %v469, 1
      %v583 = vrot.slane %v470, 1
      %v584 = vsel %vm556, %v582, %v583
      %v585 = vrot.slane %v471, 1
      %v586 = vsel %vm556, %v583, %v585
      %v587 = vrot.slane %v472, 1
      %v588 = vrot.slane %v473, 1
      %v589 = vsel %vm556, %v587, %v588
      %v590 = vrot.slane %v474, 1
      %v591 = vsel %vm556, %v588, %v590
      %v592 = vrot.slane %v475, 1
      %v593 = vrot.slane %v476, 1
      %v594 = vsel %vm556, %v592, %v593
      %v595 = vrot.slane %v477, 1
      %v596 = vsel %vm556, %v593, %v595
      %v597 = vrot.slane %v478, 1
      %v598 = vrot.slane %v479, 1
      %v599 = vsel %vm556, %v597, %v598
      %v600 = vrot.slane %v480, 1
      %v601 = vsel %vm556, %v598, %v600
      %v602 = vrot.slane %v481, 1
      %v603 = vrot.slane %v482, 1
      %v604 = vsel %vm556, %v602, %v603
      %v605 = vrot.slane %v483, 1
      %v606 = vsel %vm556, %v603, %v605
      %v607 = vrot.slane %v484, 1
      %v608 = vrot.slane %v485, 1
      %v609 = vsel %vm556, %v607, %v608
      %v610 = vrot.slane %v486, 1
      %v611 = vsel %vm556, %v608, %v610
      %v612 = vrot.slane %v487, 1
      %v613 = vrot.slane %v488, 1
      %v614 = vsel %vm556, %v612, %v613
      %v615 = vrot.slane %v489, 1
      %v616 = vsel %vm556, %v613, %v615
      %v617 = vrot.slane %v490, 1
      %v618 = vrot.slane %v491, 1
      %v619 = vsel %vm556, %v617, %v618
      %v620 = vrot.slane %v492, 1
      %v621 = vsel %vm556, %v618, %v620
      %v622 = vrot.slane %v493, 1
      %v623 = vrot.slane %v494, 1
      %v624 = vsel %vm556, %v622, %v623
      %v625 = vrot.slane %v495, 1
      %v626 = vsel %vm556, %v623, %v625
      %v627 = vrot.slane %v496, 1
      %v628 = vrot.slane %v497, 1
      %v629 = vsel %vm556, %v627, %v628
      %v630 = vrot.slane %v498, 1
      %v631 = vsel %vm556, %v628, %v630
      %v632 = vrot.slane %v499, 1
      %v633 = vrot.slane %v500, 1
      %v634 = vsel %vm556, %v632, %v633
      %v635 = vrot.slane %v501, 1
      %v636 = vsel %vm556, %v633, %v635
      %vm637 = vcmask 1045504
      %v638 = vrot.slane %v454, 2
      %v639 = vrot.slane %v455, 2
      %v640 = vsel %vm637, %v638, %v639
      %v641 = vrot.slane %v456, 2
      %v642 = vsel %vm637, %v639, %v641
      %v643 = vrot.slane %v457, 2
      %v644 = vrot.slane %v458, 2
      %v645 = vsel %vm637, %v643, %v644
      %v646 = vrot.slane %v459, 2
      %v647 = vsel %vm637, %v644, %v646
      %v648 = vrot.slane %v460, 2
      %v649 = vrot.slane %v461, 2
      %v650 = vsel %vm637, %v648, %v649
      %v651 = vrot.slane %v462, 2
      %v652 = vsel %vm637, %v649, %v651
      %v653 = vrot.slane %v463, 2
      %v654 = vrot.slane %v464, 2
      %v655 = vsel %vm637, %v653, %v654
      %v656 = vrot.slane %v465, 2
      %v657 = vsel %vm637, %v654, %v656
      %v658 = vrot.slane %v466, 2
      %v659 = vrot.slane %v467, 2
      %v660 = vsel %vm637, %v658, %v659
      %v661 = vrot.slane %v468, 2
      %v662 = vsel %vm637, %v659, %v661
      %v663 = vrot.slane %v469, 2
      %v664 = vrot.slane %v470, 2
      %v665 = vsel %vm637, %v663, %v664
      %v666 = vrot.slane %v471, 2
      %v667 = vsel %vm637, %v664, %v666
      %v668 = vrot.slane %v472, 2
      %v669 = vrot.slane %v473, 2
      %v670 = vsel %vm637, %v668, %v669
      %v671 = vrot.slane %v474, 2
      %v672 = vsel %vm637, %v669, %v671
      %v673 = vrot.slane %v475, 2
      %v674 = vrot.slane %v476, 2
      %v675 = vsel %vm637, %v673, %v674
      %v676 = vrot.slane %v477, 2
      %v677 = vsel %vm637, %v674, %v676
      %v678 = vrot.slane %v478, 2
      %v679 = vrot.slane %v479, 2
      %v680 = vsel %vm637, %v678, %v679
      %v681 = vrot.slane %v480, 2
      %v682 = vsel %vm637, %v679, %v681
      %v683 = vrot.slane %v481, 2
      %v684 = vrot.slane %v482, 2
      %v685 = vsel %vm637, %v683, %v684
      %v686 = vrot.slane %v483, 2
      %v687 = vsel %vm637, %v684, %v686
      %v688 = vrot.slane %v484, 2
      %v689 = vrot.slane %v485, 2
      %v690 = vsel %vm637, %v688, %v689
      %v691 = vrot.slane %v486, 2
      %v692 = vsel %vm637, %v689, %v691
      %v693 = vrot.slane %v487, 2
      %v694 = vrot.slane %v488, 2
      %v695 = vsel %vm637, %v693, %v694
      %v696 = vrot.slane %v489, 2
      %v697 = vsel %vm637, %v694, %v696
      %v698 = vrot.slane %v490, 2
      %v699 = vrot.slane %v491, 2
      %v700 = vsel %vm637, %v698, %v699
      %v701 = vrot.slane %v492, 2
      %v702 = vsel %vm637, %v699, %v701
      %v703 = vrot.slane %v493, 2
      %v704 = vrot.slane %v494, 2
      %v705 = vsel %vm637, %v703, %v704
      %v706 = vrot.slane %v495, 2
      %v707 = vsel %vm637, %v704, %v706
      %v708 = vrot.slane %v496, 2
      %v709 = vrot.slane %v497, 2
      %v710 = vsel %vm637, %v708, %v709
      %v711 = vrot.slane %v498, 2
      %v712 = vsel %vm637, %v709, %v711
      %v713 = vrot.slane %v499, 2
      %v714 = vrot.slane %v500, 2
      %v715 = vsel %vm637, %v713, %v714
      %v716 = vrot.slane %v501, 2
      %v717 = vsel %vm637, %v714, %v716
      %v721 = vrot.slane %v502, 1
      %v722 = vrot.slane %v503, 1
      %v723 = vsel %vm556, %v721, %v722
      %v724 = vrot.slane %v504, 1
      %v725 = vsel %vm556, %v722, %v724
      %v726 = vrot.slane %v502, 2
      %v727 = vrot.slane %v503, 2
      %v728 = vsel %vm637, %v726, %v727
      %v729 = vrot.slane %v504, 2
      %v730 = vsel %vm637, %v727, %v729
      %v734 = vrot.slane %v505, 1
      %v735 = vrot.slane %v506, 1
      %v736 = vsel %vm556, %v734, %v735
      %v737 = vrot.slane %v507, 1
      %v738 = vsel %vm556, %v735, %v737
      %v739 = vrot.slane %v505, 2
      %v740 = vrot.slane %v506, 2
      %v741 = vsel %vm637, %v739, %v740
      %v742 = vrot.slane %v507, 2
      %v743 = vsel %vm637, %v740, %v742
      %744 = vrot.lane.b32.xlu0 %v559, 4
      %v745 = vpop.permute.xlu0 %744
      %746 = vrot.lane.b32.xlu0 %v561, 4
      %v747 = vpop.permute.xlu0 %746
      %748 = vrot.lane.b32.xlu0 %v564, 4
      %v749 = vpop.permute.xlu0 %748
      %750 = vrot.lane.b32.xlu0 %v566, 4
      %v751 = vpop.permute.xlu0 %750
      %752 = vrot.lane.b32.xlu0 %v569, 4
      %v753 = vpop.permute.xlu0 %752
      %754 = vrot.lane.b32.xlu0 %v571, 4
      %v755 = vpop.permute.xlu0 %754
      %756 = vrot.lane.b32.xlu0 %v574, 4
      %v757 = vpop.permute.xlu0 %756
      %758 = vrot.lane.b32.xlu0 %v576, 4
      %v759 = vpop.permute.xlu0 %758
      %760 = vrot.lane.b32.xlu0 %v579, 4
      %v761 = vpop.permute.xlu0 %760
      %762 = vrot.lane.b32.xlu0 %v581, 4
      %v763 = vpop.permute.xlu0 %762
      %764 = vrot.lane.b32.xlu0 %v584, 4
      %v765 = vpop.permute.xlu0 %764
      %766 = vrot.lane.b32.xlu0 %v586, 4
      %v767 = vpop.permute.xlu0 %766
      %768 = vrot.lane.b32.xlu0 %v589, 4
      %v769 = vpop.permute.xlu0 %768
      %770 = vrot.lane.b32.xlu0 %v591, 4
      %v771 = vpop.permute.xlu0 %770
      %772 = vrot.lane.b32.xlu0 %v594, 4
      %v773 = vpop.permute.xlu0 %772
      %774 = vrot.lane.b32.xlu0 %v596, 4
      %v775 = vpop.permute.xlu0 %774
      %776 = vrot.lane.b32.xlu0 %v599, 4
      %v777 = vpop.permute.xlu0 %776
      %778 = vrot.lane.b32.xlu0 %v601, 4
      %v779 = vpop.permute.xlu0 %778
      %780 = vrot.lane.b32.xlu0 %v604, 4
      %v781 = vpop.permute.xlu0 %780
      %782 = vrot.lane.b32.xlu0 %v606, 4
      %v783 = vpop.permute.xlu0 %782
      %784 = vrot.lane.b32.xlu0 %v609, 4
      %v785 = vpop.permute.xlu0 %784
      %786 = vrot.lane.b32.xlu0 %v611, 4
      %v787 = vpop.permute.xlu0 %786
      %788 = vrot.lane.b32.xlu0 %v614, 4
      %v789 = vpop.permute.xlu0 %788
      %790 = vrot.lane.b32.xlu0 %v616, 4
      %v791 = vpop.permute.xlu0 %790
      %792 = vrot.lane.b32.xlu0 %v619, 4
      %v793 = vpop.permute.xlu0 %792
      %794 = vrot.lane.b32.xlu0 %v621, 4
      %v795 = vpop.permute.xlu0 %794
      %796 = vrot.lane.b32.xlu0 %v624, 4
      %v797 = vpop.permute.xlu0 %796
      %798 = vrot.lane.b32.xlu0 %v626, 4
      %v799 = vpop.permute.xlu0 %798
      %800 = vrot.lane.b32.xlu0 %v629, 4
      %v801 = vpop.permute.xlu0 %800
      %802 = vrot.lane.b32.xlu0 %v631, 4
      %v803 = vpop.permute.xlu0 %802
      %804 = vrot.lane.b32.xlu0 %v634, 4
      %v805 = vpop.permute.xlu0 %804
      %806 = vrot.lane.b32.xlu0 %v636, 4
      %v807 = vpop.permute.xlu0 %806
      %840 = vrot.lane.b32.xlu0 %v640, 8
      %v841 = vpop.permute.xlu0 %840
      %842 = vrot.lane.b32.xlu0 %v642, 8
      %v843 = vpop.permute.xlu0 %842
      %844 = vrot.lane.b32.xlu0 %v645, 8
      %v845 = vpop.permute.xlu0 %844
      %846 = vrot.lane.b32.xlu0 %v647, 8
      %v847 = vpop.permute.xlu0 %846
      %848 = vrot.lane.b32.xlu0 %v650, 8
      %v849 = vpop.permute.xlu0 %848
      %850 = vrot.lane.b32.xlu0 %v652, 8
      %v851 = vpop.permute.xlu0 %850
      %852 = vrot.lane.b32.xlu0 %v655, 8
      %v853 = vpop.permute.xlu0 %852
      %854 = vrot.lane.b32.xlu0 %v657, 8
      %v855 = vpop.permute.xlu0 %854
      %856 = vrot.lane.b32.xlu0 %v660, 8
      %v857 = vpop.permute.xlu0 %856
      %858 = vrot.lane.b32.xlu0 %v662, 8
      %v859 = vpop.permute.xlu0 %858
      %860 = vrot.lane.b32.xlu0 %v665, 8
      %v861 = vpop.permute.xlu0 %860
      %862 = vrot.lane.b32.xlu0 %v667, 8
      %v863 = vpop.permute.xlu0 %862
      %864 = vrot.lane.b32.xlu0 %v670, 8
      %v865 = vpop.permute.xlu0 %864
      %866 = vrot.lane.b32.xlu0 %v672, 8
      %v867 = vpop.permute.xlu0 %866
      %868 = vrot.lane.b32.xlu0 %v675, 8
      %v869 = vpop.permute.xlu0 %868
      %870 = vrot.lane.b32.xlu0 %v677, 8
      %v871 = vpop.permute.xlu0 %870
      %872 = vrot.lane.b32.xlu0 %v680, 8
      %v873 = vpop.permute.xlu0 %872
      %874 = vrot.lane.b32.xlu0 %v682, 8
      %v875 = vpop.permute.xlu0 %874
      %876 = vrot.lane.b32.xlu0 %v685, 8
      %v877 = vpop.permute.xlu0 %876
      %878 = vrot.lane.b32.xlu0 %v687, 8
      %v879 = vpop.permute.xlu0 %878
      %880 = vrot.lane.b32.xlu0 %v690, 8
      %v881 = vpop.permute.xlu0 %880
      %882 = vrot.lane.b32.xlu0 %v692, 8
      %v883 = vpop.permute.xlu0 %882
      %884 = vrot.lane.b32.xlu0 %v695, 8
      %v885 = vpop.permute.xlu0 %884
      %886 = vrot.lane.b32.xlu0 %v697, 8
      %v887 = vpop.permute.xlu0 %886
      %888 = vrot.lane.b32.xlu0 %v700, 8
      %v889 = vpop.permute.xlu0 %888
      %890 = vrot.lane.b32.xlu0 %v702, 8
      %v891 = vpop.permute.xlu0 %890
      %892 = vrot.lane.b32.xlu0 %v705, 8
      %v893 = vpop.permute.xlu0 %892
      %894 = vrot.lane.b32.xlu0 %v707, 8
      %v895 = vpop.permute.xlu0 %894
      %896 = vrot.lane.b32.xlu0 %v710, 8
      %v897 = vpop.permute.xlu0 %896
      %898 = vrot.lane.b32.xlu0 %v712, 8
      %v899 = vpop.permute.xlu0 %898
      %900 = vrot.lane.b32.xlu0 %v715, 8
      %v901 = vpop.permute.xlu0 %900
      %902 = vrot.lane.b32.xlu0 %v717, 8
      %v903 = vpop.permute.xlu0 %902
      %936 = vrot.lane.b32.xlu0 %v457, 12
      %v937 = vpop.permute.xlu0 %936
      %938 = vrot.lane.b32.xlu0 %v458, 12
      %v939 = vpop.permute.xlu0 %938
      %940 = vrot.lane.b32.xlu0 %v460, 12
      %v941 = vpop.permute.xlu0 %940
      %942 = vrot.lane.b32.xlu0 %v461, 12
      %v943 = vpop.permute.xlu0 %942
      %944 = vrot.lane.b32.xlu0 %v463, 12
      %v945 = vpop.permute.xlu0 %944
      %946 = vrot.lane.b32.xlu0 %v464, 12
      %v947 = vpop.permute.xlu0 %946
      %948 = vrot.lane.b32.xlu0 %v466, 12
      %v949 = vpop.permute.xlu0 %948
      %950 = vrot.lane.b32.xlu0 %v467, 12
      %v951 = vpop.permute.xlu0 %950
      %952 = vrot.lane.b32.xlu0 %v469, 12
      %v953 = vpop.permute.xlu0 %952
      %954 = vrot.lane.b32.xlu0 %v470, 12
      %v955 = vpop.permute.xlu0 %954
      %956 = vrot.lane.b32.xlu0 %v472, 12
      %v957 = vpop.permute.xlu0 %956
      %958 = vrot.lane.b32.xlu0 %v473, 12
      %v959 = vpop.permute.xlu0 %958
      %960 = vrot.lane.b32.xlu0 %v475, 12
      %v961 = vpop.permute.xlu0 %960
      %962 = vrot.lane.b32.xlu0 %v476, 12
      %v963 = vpop.permute.xlu0 %962
      %964 = vrot.lane.b32.xlu0 %v478, 12
      %v965 = vpop.permute.xlu0 %964
      %966 = vrot.lane.b32.xlu0 %v479, 12
      %v967 = vpop.permute.xlu0 %966
      %968 = vrot.lane.b32.xlu0 %v481, 12
      %v969 = vpop.permute.xlu0 %968
      %970 = vrot.lane.b32.xlu0 %v482, 12
      %v971 = vpop.permute.xlu0 %970
      %972 = vrot.lane.b32.xlu0 %v484, 12
      %v973 = vpop.permute.xlu0 %972
      %974 = vrot.lane.b32.xlu0 %v485, 12
      %v975 = vpop.permute.xlu0 %974
      %976 = vrot.lane.b32.xlu0 %v487, 12
      %v977 = vpop.permute.xlu0 %976
      %978 = vrot.lane.b32.xlu0 %v488, 12
      %v979 = vpop.permute.xlu0 %978
      %980 = vrot.lane.b32.xlu0 %v490, 12
      %v981 = vpop.permute.xlu0 %980
      %982 = vrot.lane.b32.xlu0 %v491, 12
      %v983 = vpop.permute.xlu0 %982
      %984 = vrot.lane.b32.xlu0 %v493, 12
      %v985 = vpop.permute.xlu0 %984
      %986 = vrot.lane.b32.xlu0 %v494, 12
      %v987 = vpop.permute.xlu0 %986
      %988 = vrot.lane.b32.xlu0 %v496, 12
      %v989 = vpop.permute.xlu0 %988
      %990 = vrot.lane.b32.xlu0 %v497, 12
      %v991 = vpop.permute.xlu0 %990
      %992 = vrot.lane.b32.xlu0 %v499, 12
      %v993 = vpop.permute.xlu0 %992
      %994 = vrot.lane.b32.xlu0 %v500, 12
      %v995 = vpop.permute.xlu0 %994
      %996 = vrot.lane.b32.xlu0 %v502, 12
      %v997 = vpop.permute.xlu0 %996
      %998 = vrot.lane.b32.xlu0 %v503, 12
      %v999 = vpop.permute.xlu0 %998
      %1032 = vrot.lane.b32.xlu0 %v564, 16
      %v1033 = vpop.permute.xlu0 %1032
      %1034 = vrot.lane.b32.xlu0 %v566, 16
      %v1035 = vpop.permute.xlu0 %1034
      %1036 = vrot.lane.b32.xlu0 %v569, 16
      %v1037 = vpop.permute.xlu0 %1036
      %1038 = vrot.lane.b32.xlu0 %v571, 16
      %v1039 = vpop.permute.xlu0 %1038
      %1040 = vrot.lane.b32.xlu0 %v574, 16
      %v1041 = vpop.permute.xlu0 %1040
      %1042 = vrot.lane.b32.xlu0 %v576, 16
      %v1043 = vpop.permute.xlu0 %1042
      %1044 = vrot.lane.b32.xlu0 %v579, 16
      %v1045 = vpop.permute.xlu0 %1044
      %1046 = vrot.lane.b32.xlu0 %v581, 16
      %v1047 = vpop.permute.xlu0 %1046
      %1048 = vrot.lane.b32.xlu0 %v584, 16
      %v1049 = vpop.permute.xlu0 %1048
      %1050 = vrot.lane.b32.xlu0 %v586, 16
      %v1051 = vpop.permute.xlu0 %1050
      %1052 = vrot.lane.b32.xlu0 %v589, 16
      %v1053 = vpop.permute.xlu0 %1052
      %1054 = vrot.lane.b32.xlu0 %v591, 16
      %v1055 = vpop.permute.xlu0 %1054
      %1056 = vrot.lane.b32.xlu0 %v594, 16
      %v1057 = vpop.permute.xlu0 %1056
      %1058 = vrot.lane.b32.xlu0 %v596, 16
      %v1059 = vpop.permute.xlu0 %1058
      %1060 = vrot.lane.b32.xlu0 %v599, 16
      %v1061 = vpop.permute.xlu0 %1060
      %1062 = vrot.lane.b32.xlu0 %v601, 16
      %v1063 = vpop.permute.xlu0 %1062
      %1064 = vrot.lane.b32.xlu0 %v604, 16
      %v1065 = vpop.permute.xlu0 %1064
      %1066 = vrot.lane.b32.xlu0 %v606, 16
      %v1067 = vpop.permute.xlu0 %1066
      %1068 = vrot.lane.b32.xlu0 %v609, 16
      %v1069 = vpop.permute.xlu0 %1068
      %1070 = vrot.lane.b32.xlu0 %v611, 16
      %v1071 = vpop.permute.xlu0 %1070
      %1072 = vrot.lane.b32.xlu0 %v614, 16
      %v1073 = vpop.permute.xlu0 %1072
      %1074 = vrot.lane.b32.xlu0 %v616, 16
      %v1075 = vpop.permute.xlu0 %1074
      %1076 = vrot.lane.b32.xlu0 %v619, 16
      %v1077 = vpop.permute.xlu0 %1076
      %1078 = vrot.lane.b32.xlu0 %v621, 16
      %v1079 = vpop.permute.xlu0 %1078
      %1080 = vrot.lane.b32.xlu0 %v624, 16
      %v1081 = vpop.permute.xlu0 %1080
      %1082 = vrot.lane.b32.xlu0 %v626, 16
      %v1083 = vpop.permute.xlu0 %1082
      %1084 = vrot.lane.b32.xlu0 %v629, 16
      %v1085 = vpop.permute.xlu0 %1084
      %1086 = vrot.lane.b32.xlu0 %v631, 16
      %v1087 = vpop.permute.xlu0 %1086
      %1088 = vrot.lane.b32.xlu0 %v634, 16
      %v1089 = vpop.permute.xlu0 %1088
      %1090 = vrot.lane.b32.xlu0 %v636, 16
      %v1091 = vpop.permute.xlu0 %1090
      %1092 = vrot.lane.b32.xlu0 %v723, 16
      %v1093 = vpop.permute.xlu0 %1092
      %1094 = vrot.lane.b32.xlu0 %v725, 16
      %v1095 = vpop.permute.xlu0 %1094
      %1128 = vrot.lane.b32.xlu0 %v645, 20
      %v1129 = vpop.permute.xlu0 %1128
      %1130 = vrot.lane.b32.xlu0 %v647, 20
      %v1131 = vpop.permute.xlu0 %1130
      %1132 = vrot.lane.b32.xlu0 %v650, 20
      %v1133 = vpop.permute.xlu0 %1132
      %1134 = vrot.lane.b32.xlu0 %v652, 20
      %v1135 = vpop.permute.xlu0 %1134
      %1136 = vrot.lane.b32.xlu0 %v655, 20
      %v1137 = vpop.permute.xlu0 %1136
      %1138 = vrot.lane.b32.xlu0 %v657, 20
      %v1139 = vpop.permute.xlu0 %1138
      %1140 = vrot.lane.b32.xlu0 %v660, 20
      %v1141 = vpop.permute.xlu0 %1140
      %1142 = vrot.lane.b32.xlu0 %v662, 20
      %v1143 = vpop.permute.xlu0 %1142
      %1144 = vrot.lane.b32.xlu0 %v665, 20
      %v1145 = vpop.permute.xlu0 %1144
      %1146 = vrot.lane.b32.xlu0 %v667, 20
      %v1147 = vpop.permute.xlu0 %1146
      %1148 = vrot.lane.b32.xlu0 %v670, 20
      %v1149 = vpop.permute.xlu0 %1148
      %1150 = vrot.lane.b32.xlu0 %v672, 20
      %v1151 = vpop.permute.xlu0 %1150
      %1152 = vrot.lane.b32.xlu0 %v675, 20
      %v1153 = vpop.permute.xlu0 %1152
      %1154 = vrot.lane.b32.xlu0 %v677, 20
      %v1155 = vpop.permute.xlu0 %1154
      %1156 = vrot.lane.b32.xlu0 %v680, 20
      %v1157 = vpop.permute.xlu0 %1156
      %1158 = vrot.lane.b32.xlu0 %v682, 20
      %v1159 = vpop.permute.xlu0 %1158
      %1160 = vrot.lane.b32.xlu0 %v685, 20
      %v1161 = vpop.permute.xlu0 %1160
      %1162 = vrot.lane.b32.xlu0 %v687, 20
      %v1163 = vpop.permute.xlu0 %1162
      %1164 = vrot.lane.b32.xlu0 %v690, 20
      %v1165 = vpop.permute.xlu0 %1164
      %1166 = vrot.lane.b32.xlu0 %v692, 20
      %v1167 = vpop.permute.xlu0 %1166
      %1168 = vrot.lane.b32.xlu0 %v695, 20
      %v1169 = vpop.permute.xlu0 %1168
      %1170 = vrot.lane.b32.xlu0 %v697, 20
      %v1171 = vpop.permute.xlu0 %1170
      %1172 = vrot.lane.b32.xlu0 %v700, 20
      %v1173 = vpop.permute.xlu0 %1172
      %1174 = vrot.lane.b32.xlu0 %v702, 20
      %v1175 = vpop.permute.xlu0 %1174
      %1176 = vrot.lane.b32.xlu0 %v705, 20
      %v1177 = vpop.permute.xlu0 %1176
      %1178 = vrot.lane.b32.xlu0 %v707, 20
      %v1179 = vpop.permute.xlu0 %1178
      %1180 = vrot.lane.b32.xlu0 %v710, 20
      %v1181 = vpop.permute.xlu0 %1180
      %1182 = vrot.lane.b32.xlu0 %v712, 20
      %v1183 = vpop.permute.xlu0 %1182
      %1184 = vrot.lane.b32.xlu0 %v715, 20
      %v1185 = vpop.permute.xlu0 %1184
      %1186 = vrot.lane.b32.xlu0 %v717, 20
      %v1187 = vpop.permute.xlu0 %1186
      %1188 = vrot.lane.b32.xlu0 %v728, 20
      %v1189 = vpop.permute.xlu0 %1188
      %1190 = vrot.lane.b32.xlu0 %v730, 20
      %v1191 = vpop.permute.xlu0 %1190
      %1224 = vrot.lane.b32.xlu0 %v460, 24
      %v1225 = vpop.permute.xlu0 %1224
      %1226 = vrot.lane.b32.xlu0 %v461, 24
      %v1227 = vpop.permute.xlu0 %1226
      %1228 = vrot.lane.b32.xlu0 %v463, 24
      %v1229 = vpop.permute.xlu0 %1228
      %1230 = vrot.lane.b32.xlu0 %v464, 24
      %v1231 = vpop.permute.xlu0 %1230
      %1232 = vrot.lane.b32.xlu0 %v466, 24
      %v1233 = vpop.permute.xlu0 %1232
      %1234 = vrot.lane.b32.xlu0 %v467, 24
      %v1235 = vpop.permute.xlu0 %1234
      %1236 = vrot.lane.b32.xlu0 %v469, 24
      %v1237 = vpop.permute.xlu0 %1236
      %1238 = vrot.lane.b32.xlu0 %v470, 24
      %v1239 = vpop.permute.xlu0 %1238
      %1240 = vrot.lane.b32.xlu0 %v472, 24
      %v1241 = vpop.permute.xlu0 %1240
      %1242 = vrot.lane.b32.xlu0 %v473, 24
      %v1243 = vpop.permute.xlu0 %1242
      %1244 = vrot.lane.b32.xlu0 %v475, 24
      %v1245 = vpop.permute.xlu0 %1244
      %1246 = vrot.lane.b32.xlu0 %v476, 24
      %v1247 = vpop.permute.xlu0 %1246
      %1248 = vrot.lane.b32.xlu0 %v478, 24
      %v1249 = vpop.permute.xlu0 %1248
      %1250 = vrot.lane.b32.xlu0 %v479, 24
      %v1251 = vpop.permute.xlu0 %1250
      %1252 = vrot.lane.b32.xlu0 %v481, 24
      %v1253 = vpop.permute.xlu0 %1252
      %1254 = vrot.lane.b32.xlu0 %v482, 24
      %v1255 = vpop.permute.xlu0 %1254
      %1256 = vrot.lane.b32.xlu0 %v484, 24
      %v1257 = vpop.permute.xlu0 %1256
      %1258 = vrot.lane.b32.xlu0 %v485, 24
      %v1259 = vpop.permute.xlu0 %1258
      %1260 = vrot.lane.b32.xlu0 %v487, 24
      %v1261 = vpop.permute.xlu0 %1260
      %1262 = vrot.lane.b32.xlu0 %v488, 24
      %v1263 = vpop.permute.xlu0 %1262
      %1264 = vrot.lane.b32.xlu0 %v490, 24
      %v1265 = vpop.permute.xlu0 %1264
      %1266 = vrot.lane.b32.xlu0 %v491, 24
      %v1267 = vpop.permute.xlu0 %1266
      %1268 = vrot.lane.b32.xlu0 %v493, 24
      %v1269 = vpop.permute.xlu0 %1268
      %1270 = vrot.lane.b32.xlu0 %v494, 24
      %v1271 = vpop.permute.xlu0 %1270
      %1272 = vrot.lane.b32.xlu0 %v496, 24
      %v1273 = vpop.permute.xlu0 %1272
      %1274 = vrot.lane.b32.xlu0 %v497, 24
      %v1275 = vpop.permute.xlu0 %1274
      %1276 = vrot.lane.b32.xlu0 %v499, 24
      %v1277 = vpop.permute.xlu0 %1276
      %1278 = vrot.lane.b32.xlu0 %v500, 24
      %v1279 = vpop.permute.xlu0 %1278
      %1280 = vrot.lane.b32.xlu0 %v502, 24
      %v1281 = vpop.permute.xlu0 %1280
      %1282 = vrot.lane.b32.xlu0 %v503, 24
      %v1283 = vpop.permute.xlu0 %1282
      %1284 = vrot.lane.b32.xlu0 %v505, 24
      %v1285 = vpop.permute.xlu0 %1284
      %1286 = vrot.lane.b32.xlu0 %v506, 24
      %v1287 = vpop.permute.xlu0 %1286
      %1320 = vrot.lane.b32.xlu0 %v569, 28
      %v1321 = vpop.permute.xlu0 %1320
      %1322 = vrot.lane.b32.xlu0 %v571, 28
      %v1323 = vpop.permute.xlu0 %1322
      %1324 = vrot.lane.b32.xlu0 %v574, 28
      %v1325 = vpop.permute.xlu0 %1324
      %1326 = vrot.lane.b32.xlu0 %v576, 28
      %v1327 = vpop.permute.xlu0 %1326
      %1328 = vrot.lane.b32.xlu0 %v579, 28
      %v1329 = vpop.permute.xlu0 %1328
      %1330 = vrot.lane.b32.xlu0 %v581, 28
      %v1331 = vpop.permute.xlu0 %1330
      %1332 = vrot.lane.b32.xlu0 %v584, 28
      %v1333 = vpop.permute.xlu0 %1332
      %1334 = vrot.lane.b32.xlu0 %v586, 28
      %v1335 = vpop.permute.xlu0 %1334
      %1336 = vrot.lane.b32.xlu0 %v589, 28
      %v1337 = vpop.permute.xlu0 %1336
      %1338 = vrot.lane.b32.xlu0 %v591, 28
      %v1339 = vpop.permute.xlu0 %1338
      %1340 = vrot.lane.b32.xlu0 %v594, 28
      %v1341 = vpop.permute.xlu0 %1340
      %1342 = vrot.lane.b32.xlu0 %v596, 28
      %v1343 = vpop.permute.xlu0 %1342
      %1344 = vrot.lane.b32.xlu0 %v599, 28
      %v1345 = vpop.permute.xlu0 %1344
      %1346 = vrot.lane.b32.xlu0 %v601, 28
      %v1347 = vpop.permute.xlu0 %1346
      %1348 = vrot.lane.b32.xlu0 %v604, 28
      %v1349 = vpop.permute.xlu0 %1348
      %1350 = vrot.lane.b32.xlu0 %v606, 28
      %v1351 = vpop.permute.xlu0 %1350
      %1352 = vrot.lane.b32.xlu0 %v609, 28
      %v1353 = vpop.permute.xlu0 %1352
      %1354 = vrot.lane.b32.xlu0 %v611, 28
      %v1355 = vpop.permute.xlu0 %1354
      %1356 = vrot.lane.b32.xlu0 %v614, 28
      %v1357 = vpop.permute.xlu0 %1356
      %1358 = vrot.lane.b32.xlu0 %v616, 28
      %v1359 = vpop.permute.xlu0 %1358
      %1360 = vrot.lane.b32.xlu0 %v619, 28
      %v1361 = vpop.permute.xlu0 %1360
      %1362 = vrot.lane.b32.xlu0 %v621, 28
      %v1363 = vpop.permute.xlu0 %1362
      %1364 = vrot.lane.b32.xlu0 %v624, 28
      %v1365 = vpop.permute.xlu0 %1364
      %1366 = vrot.lane.b32.xlu0 %v626, 28
      %v1367 = vpop.permute.xlu0 %1366
      %1368 = vrot.lane.b32.xlu0 %v629, 28
      %v1369 = vpop.permute.xlu0 %1368
      %1370 = vrot.lane.b32.xlu0 %v631, 28
      %v1371 = vpop.permute.xlu0 %1370
      %1372 = vrot.lane.b32.xlu0 %v634, 28
      %v1373 = vpop.permute.xlu0 %1372
      %1374 = vrot.lane.b32.xlu0 %v636, 28
      %v1375 = vpop.permute.xlu0 %1374
      %1376 = vrot.lane.b32.xlu0 %v723, 28
      %v1377 = vpop.permute.xlu0 %1376
      %1378 = vrot.lane.b32.xlu0 %v725, 28
      %v1379 = vpop.permute.xlu0 %1378
      %1380 = vrot.lane.b32.xlu0 %v736, 28
      %v1381 = vpop.permute.xlu0 %1380
      %1382 = vrot.lane.b32.xlu0 %v738, 28
      %v1383 = vpop.permute.xlu0 %1382
      %1416 = vrot.lane.b32.xlu0 %v650, 32
      %v1417 = vpop.permute.xlu0 %1416
      %1418 = vrot.lane.b32.xlu0 %v652, 32
      %v1419 = vpop.permute.xlu0 %1418
      %1420 = vrot.lane.b32.xlu0 %v655, 32
      %v1421 = vpop.permute.xlu0 %1420
      %1422 = vrot.lane.b32.xlu0 %v657, 32
      %v1423 = vpop.permute.xlu0 %1422
      %1424 = vrot.lane.b32.xlu0 %v660, 32
      %v1425 = vpop.permute.xlu0 %1424
      %1426 = vrot.lane.b32.xlu0 %v662, 32
      %v1427 = vpop.permute.xlu0 %1426
      %1428 = vrot.lane.b32.xlu0 %v665, 32
      %v1429 = vpop.permute.xlu0 %1428
      %1430 = vrot.lane.b32.xlu0 %v667, 32
      %v1431 = vpop.permute.xlu0 %1430
      %1432 = vrot.lane.b32.xlu0 %v670, 32
      %v1433 = vpop.permute.xlu0 %1432
      %1434 = vrot.lane.b32.xlu0 %v672, 32
      %v1435 = vpop.permute.xlu0 %1434
      %1436 = vrot.lane.b32.xlu0 %v675, 32
      %v1437 = vpop.permute.xlu0 %1436
      %1438 = vrot.lane.b32.xlu0 %v677, 32
      %v1439 = vpop.permute.xlu0 %1438
      %1440 = vrot.lane.b32.xlu0 %v680, 32
      %v1441 = vpop.permute.xlu0 %1440
      %1442 = vrot.lane.b32.xlu0 %v682, 32
      %v1443 = vpop.permute.xlu0 %1442
      %1444 = vrot.lane.b32.xlu0 %v685, 32
      %v1445 = vpop.permute.xlu0 %1444
      %1446 = vrot.lane.b32.xlu0 %v687, 32
      %v1447 = vpop.permute.xlu0 %1446
      %1448 = vrot.lane.b32.xlu0 %v690, 32
      %v1449 = vpop.permute.xlu0 %1448
      %1450 = vrot.lane.b32.xlu0 %v692, 32
      %v1451 = vpop.permute.xlu0 %1450
      %1452 = vrot.lane.b32.xlu0 %v695, 32
      %v1453 = vpop.permute.xlu0 %1452
      %1454 = vrot.lane.b32.xlu0 %v697, 32
      %v1455 = vpop.permute.xlu0 %1454
      %1456 = vrot.lane.b32.xlu0 %v700, 32
      %v1457 = vpop.permute.xlu0 %1456
      %1458 = vrot.lane.b32.xlu0 %v702, 32
      %v1459 = vpop.permute.xlu0 %1458
      %1460 = vrot.lane.b32.xlu0 %v705, 32
      %v1461 = vpop.permute.xlu0 %1460
      %1462 = vrot.lane.b32.xlu0 %v707, 32
      %v1463 = vpop.permute.xlu0 %1462
      %1464 = vrot.lane.b32.xlu0 %v710, 32
      %v1465 = vpop.permute.xlu0 %1464
      %1466 = vrot.lane.b32.xlu0 %v712, 32
      %v1467 = vpop.permute.xlu0 %1466
      %1468 = vrot.lane.b32.xlu0 %v715, 32
      %v1469 = vpop.permute.xlu0 %1468
      %1470 = vrot.lane.b32.xlu0 %v717, 32
      %v1471 = vpop.permute.xlu0 %1470
      %1472 = vrot.lane.b32.xlu0 %v728, 32
      %v1473 = vpop.permute.xlu0 %1472
      %1474 = vrot.lane.b32.xlu0 %v730, 32
      %v1475 = vpop.permute.xlu0 %1474
      %1476 = vrot.lane.b32.xlu0 %v741, 32
      %v1477 = vpop.permute.xlu0 %1476
      %1478 = vrot.lane.b32.xlu0 %v743, 32
      %v1479 = vpop.permute.xlu0 %1478
      %v1512 = vsel %vm365, %v454, %v745
      %v1513 = vsel %vm365, %v455, %v747
      %v1514 = vsel %vm365, %v457, %v749
      %v1515 = vsel %vm365, %v458, %v751
      %v1516 = vsel %vm365, %v460, %v753
      %v1517 = vsel %vm365, %v461, %v755
      %v1518 = vsel %vm365, %v463, %v757
      %v1519 = vsel %vm365, %v464, %v759
      %v1520 = vsel %vm365, %v466, %v761
      %v1521 = vsel %vm365, %v467, %v763
      %v1522 = vsel %vm365, %v469, %v765
      %v1523 = vsel %vm365, %v470, %v767
      %v1524 = vsel %vm365, %v472, %v769
      %v1525 = vsel %vm365, %v473, %v771
      %v1526 = vsel %vm365, %v475, %v773
      %v1527 = vsel %vm365, %v476, %v775
      %v1528 = vsel %vm365, %v478, %v777
      %v1529 = vsel %vm365, %v479, %v779
      %v1530 = vsel %vm365, %v481, %v781
      %v1531 = vsel %vm365, %v482, %v783
      %v1532 = vsel %vm365, %v484, %v785
      %v1533 = vsel %vm365, %v485, %v787
      %v1534 = vsel %vm365, %v487, %v789
      %v1535 = vsel %vm365, %v488, %v791
      %v1536 = vsel %vm365, %v490, %v793
      %v1537 = vsel %vm365, %v491, %v795
      %v1538 = vsel %vm365, %v493, %v797
      %v1539 = vsel %vm365, %v494, %v799
      %v1540 = vsel %vm365, %v496, %v801
      %v1541 = vsel %vm365, %v497, %v803
      %v1542 = vsel %vm365, %v499, %v805
      %v1543 = vsel %vm365, %v500, %v807
      %vm1544 = vcmask 64512
      %v1545 = vsel %vm1544, %v1512, %v841
      %v1546 = vsel %vm1544, %v1513, %v843
      %v1547 = vsel %vm1544, %v1514, %v845
      %v1548 = vsel %vm1544, %v1515, %v847
      %v1549 = vsel %vm1544, %v1516, %v849
      %v1550 = vsel %vm1544, %v1517, %v851
      %v1551 = vsel %vm1544, %v1518, %v853
      %v1552 = vsel %vm1544, %v1519, %v855
      %v1553 = vsel %vm1544, %v1520, %v857
      %v1554 = vsel %vm1544, %v1521, %v859
      %v1555 = vsel %vm1544, %v1522, %v861
      %v1556 = vsel %vm1544, %v1523, %v863
      %v1557 = vsel %vm1544, %v1524, %v865
      %v1558 = vsel %vm1544, %v1525, %v867
      %v1559 = vsel %vm1544, %v1526, %v869
      %v1560 = vsel %vm1544, %v1527, %v871
      %v1561 = vsel %vm1544, %v1528, %v873
      %v1562 = vsel %vm1544, %v1529, %v875
      %v1563 = vsel %vm1544, %v1530, %v877
      %v1564 = vsel %vm1544, %v1531, %v879
      %v1565 = vsel %vm1544, %v1532, %v881
      %v1566 = vsel %vm1544, %v1533, %v883
      %v1567 = vsel %vm1544, %v1534, %v885
      %v1568 = vsel %vm1544, %v1535, %v887
      %v1569 = vsel %vm1544, %v1536, %v889
      %v1570 = vsel %vm1544, %v1537, %v891
      %v1571 = vsel %vm1544, %v1538, %v893
      %v1572 = vsel %vm1544, %v1539, %v895
      %v1573 = vsel %vm1544, %v1540, %v897
      %v1574 = vsel %vm1544, %v1541, %v899
      %v1575 = vsel %vm1544, %v1542, %v901
      %v1576 = vsel %vm1544, %v1543, %v903
      %vm1577 = vcmask 97280
      %v1578 = vsel %vm1577, %v1545, %v937
      %v1579 = vsel %vm1577, %v1546, %v939
      %v1580 = vsel %vm1577, %v1547, %v941
      %v1581 = vsel %vm1577, %v1548, %v943
      %v1582 = vsel %vm1577, %v1549, %v945
      %v1583 = vsel %vm1577, %v1550, %v947
      %v1584 = vsel %vm1577, %v1551, %v949
      %v1585 = vsel %vm1577, %v1552, %v951
      %v1586 = vsel %vm1577, %v1553, %v953
      %v1587 = vsel %vm1577, %v1554, %v955
      %v1588 = vsel %vm1577, %v1555, %v957
      %v1589 = vsel %vm1577, %v1556, %v959
      %v1590 = vsel %vm1577, %v1557, %v961
      %v1591 = vsel %vm1577, %v1558, %v963
      %v1592 = vsel %vm1577, %v1559, %v965
      %v1593 = vsel %vm1577, %v1560, %v967
      %v1594 = vsel %vm1577, %v1561, %v969
      %v1595 = vsel %vm1577, %v1562, %v971
      %v1596 = vsel %vm1577, %v1563, %v973
      %v1597 = vsel %vm1577, %v1564, %v975
      %v1598 = vsel %vm1577, %v1565, %v977
      %v1599 = vsel %vm1577, %v1566, %v979
      %v1600 = vsel %vm1577, %v1567, %v981
      %v1601 = vsel %vm1577, %v1568, %v983
      %v1602 = vsel %vm1577, %v1569, %v985
      %v1603 = vsel %vm1577, %v1570, %v987
      %v1604 = vsel %vm1577, %v1571, %v989
      %v1605 = vsel %vm1577, %v1572, %v991
      %v1606 = vsel %vm1577, %v1573, %v993
      %v1607 = vsel %vm1577, %v1574, %v995
      %v1608 = vsel %vm1577, %v1575, %v997
      %v1609 = vsel %vm1577, %v1576, %v999
      %vm1610 = vcmask 130048
      %v1611 = vsel %vm1610, %v1578, %v1033
      %v1612 = vsel %vm1610, %v1579, %v1035
      %v1613 = vsel %vm1610, %v1580, %v1037
      %v1614 = vsel %vm1610, %v1581, %v1039
      %v1615 = vsel %vm1610, %v1582, %v1041
      %v1616 = vsel %vm1610, %v1583, %v1043
      %v1617 = vsel %vm1610, %v1584, %v1045
      %v1618 = vsel %vm1610, %v1585, %v1047
      %v1619 = vsel %vm1610, %v1586, %v1049
      %v1620 = vsel %vm1610, %v1587, %v1051
      %v1621 = vsel %vm1610, %v1588, %v1053
      %v1622 = vsel %vm1610, %v1589, %v1055
      %v1623 = vsel %vm1610, %v1590, %v1057
      %v1624 = vsel %vm1610, %v1591, %v1059
      %v1625 = vsel %vm1610, %v1592, %v1061
      %v1626 = vsel %vm1610, %v1593, %v1063
      %v1627 = vsel %vm1610, %v1594, %v1065
      %v1628 = vsel %vm1610, %v1595, %v1067
      %v1629 = vsel %vm1610, %v1596, %v1069
      %v1630 = vsel %vm1610, %v1597, %v1071
      %v1631 = vsel %vm1610, %v1598, %v1073
      %v1632 = vsel %vm1610, %v1599, %v1075
      %v1633 = vsel %vm1610, %v1600, %v1077
      %v1634 = vsel %vm1610, %v1601, %v1079
      %v1635 = vsel %vm1610, %v1602, %v1081
      %v1636 = vsel %vm1610, %v1603, %v1083
      %v1637 = vsel %vm1610, %v1604, %v1085
      %v1638 = vsel %vm1610, %v1605, %v1087
      %v1639 = vsel %vm1610, %v1606, %v1089
      %v1640 = vsel %vm1610, %v1607, %v1091
      %v1641 = vsel %vm1610, %v1608, %v1093
      %v1642 = vsel %vm1610, %v1609, %v1095
      %vm1643 = vcmask 162816
      %v1644 = vsel %vm1643, %v1611, %v1129
      %v1645 = vsel %vm1643, %v1612, %v1131
      %v1646 = vsel %vm1643, %v1613, %v1133
      %v1647 = vsel %vm1643, %v1614, %v1135
      %v1648 = vsel %vm1643, %v1615, %v1137
      %v1649 = vsel %vm1643, %v1616, %v1139
      %v1650 = vsel %vm1643, %v1617, %v1141
      %v1651 = vsel %vm1643, %v1618, %v1143
      %v1652 = vsel %vm1643, %v1619, %v1145
      %v1653 = vsel %vm1643, %v1620, %v1147
      %v1654 = vsel %vm1643, %v1621, %v1149
      %v1655 = vsel %vm1643, %v1622, %v1151
      %v1656 = vsel %vm1643, %v1623, %v1153
      %v1657 = vsel %vm1643, %v1624, %v1155
      %v1658 = vsel %vm1643, %v1625, %v1157
      %v1659 = vsel %vm1643, %v1626, %v1159
      %v1660 = vsel %vm1643, %v1627, %v1161
      %v1661 = vsel %vm1643, %v1628, %v1163
      %v1662 = vsel %vm1643, %v1629, %v1165
      %v1663 = vsel %vm1643, %v1630, %v1167
      %v1664 = vsel %vm1643, %v1631, %v1169
      %v1665 = vsel %vm1643, %v1632, %v1171
      %v1666 = vsel %vm1643, %v1633, %v1173
      %v1667 = vsel %vm1643, %v1634, %v1175
      %v1668 = vsel %vm1643, %v1635, %v1177
      %v1669 = vsel %vm1643, %v1636, %v1179
      %v1670 = vsel %vm1643, %v1637, %v1181
      %v1671 = vsel %vm1643, %v1638, %v1183
      %v1672 = vsel %vm1643, %v1639, %v1185
      %v1673 = vsel %vm1643, %v1640, %v1187
      %v1674 = vsel %vm1643, %v1641, %v1189
      %v1675 = vsel %vm1643, %v1642, %v1191
      %vm1676 = vcmask 195584
      %v1677 = vsel %vm1676, %v1644, %v1225
      %v1678 = vsel %vm1676, %v1645, %v1227
      %v1679 = vsel %vm1676, %v1646, %v1229
      %v1680 = vsel %vm1676, %v1647, %v1231
      %v1681 = vsel %vm1676, %v1648, %v1233
      %v1682 = vsel %vm1676, %v1649, %v1235
      %v1683 = vsel %vm1676, %v1650, %v1237
      %v1684 = vsel %vm1676, %v1651, %v1239
      %v1685 = vsel %vm1676, %v1652, %v1241
      %v1686 = vsel %vm1676, %v1653, %v1243
      %v1687 = vsel %vm1676, %v1654, %v1245
      %v1688 = vsel %vm1676, %v1655, %v1247
      %v1689 = vsel %vm1676, %v1656, %v1249
      %v1690 = vsel %vm1676, %v1657, %v1251
      %v1691 = vsel %vm1676, %v1658, %v1253
      %v1692 = vsel %vm1676, %v1659, %v1255
      %v1693 = vsel %vm1676, %v1660, %v1257
      %v1694 = vsel %vm1676, %v1661, %v1259
      %v1695 = vsel %vm1676, %v1662, %v1261
      %v1696 = vsel %vm1676, %v1663, %v1263
      %v1697 = vsel %vm1676, %v1664, %v1265
      %v1698 = vsel %vm1676, %v1665, %v1267
      %v1699 = vsel %vm1676, %v1666, %v1269
      %v1700 = vsel %vm1676, %v1667, %v1271
      %v1701 = vsel %vm1676, %v1668, %v1273
      %v1702 = vsel %vm1676, %v1669, %v1275
      %v1703 = vsel %vm1676, %v1670, %v1277
      %v1704 = vsel %vm1676, %v1671, %v1279
      %v1705 = vsel %vm1676, %v1672, %v1281
      %v1706 = vsel %vm1676, %v1673, %v1283
      %v1707 = vsel %vm1676, %v1674, %v1285
      %v1708 = vsel %vm1676, %v1675, %v1287
      %vm1709 = vcmask 228352
      %v1710 = vsel %vm1709, %v1677, %v1321
      %v1711 = vsel %vm1709, %v1678, %v1323
      %v1712 = vsel %vm1709, %v1679, %v1325
      %v1713 = vsel %vm1709, %v1680, %v1327
      %v1714 = vsel %vm1709, %v1681, %v1329
      %v1715 = vsel %vm1709, %v1682, %v1331
      %v1716 = vsel %vm1709, %v1683, %v1333
      %v1717 = vsel %vm1709, %v1684, %v1335
      %v1718 = vsel %vm1709, %v1685, %v1337
      %v1719 = vsel %vm1709, %v1686, %v1339
      %v1720 = vsel %vm1709, %v1687, %v1341
      %v1721 = vsel %vm1709, %v1688, %v1343
      %v1722 = vsel %vm1709, %v1689, %v1345
      %v1723 = vsel %vm1709, %v1690, %v1347
      %v1724 = vsel %vm1709, %v1691, %v1349
      %v1725 = vsel %vm1709, %v1692, %v1351
      %v1726 = vsel %vm1709, %v1693, %v1353
      %v1727 = vsel %vm1709, %v1694, %v1355
      %v1728 = vsel %vm1709, %v1695, %v1357
      %v1729 = vsel %vm1709, %v1696, %v1359
      %v1730 = vsel %vm1709, %v1697, %v1361
      %v1731 = vsel %vm1709, %v1698, %v1363
      %v1732 = vsel %vm1709, %v1699, %v1365
      %v1733 = vsel %vm1709, %v1700, %v1367
      %v1734 = vsel %vm1709, %v1701, %v1369
      %v1735 = vsel %vm1709, %v1702, %v1371
      %v1736 = vsel %vm1709, %v1703, %v1373
      %v1737 = vsel %vm1709, %v1704, %v1375
      %v1738 = vsel %vm1709, %v1705, %v1377
      %v1739 = vsel %vm1709, %v1706, %v1379
      %v1740 = vsel %vm1709, %v1707, %v1381
      %v1741 = vsel %vm1709, %v1708, %v1383
      %vm1742 = vcmask 261120
      %v1743 = vsel %vm1742, %v1710, %v1417
      %v1744 = vsel %vm1742, %v1711, %v1419
      %v1745 = vsel %vm1742, %v1712, %v1421
      %v1746 = vsel %vm1742, %v1713, %v1423
      %v1747 = vsel %vm1742, %v1714, %v1425
      %v1748 = vsel %vm1742, %v1715, %v1427
      %v1749 = vsel %vm1742, %v1716, %v1429
      %v1750 = vsel %vm1742, %v1717, %v1431
      %v1751 = vsel %vm1742, %v1718, %v1433
      %v1752 = vsel %vm1742, %v1719, %v1435
      %v1753 = vsel %vm1742, %v1720, %v1437
      %v1754 = vsel %vm1742, %v1721, %v1439
      %v1755 = vsel %vm1742, %v1722, %v1441
      %v1756 = vsel %vm1742, %v1723, %v1443
      %v1757 = vsel %vm1742, %v1724, %v1445
      %v1758 = vsel %vm1742, %v1725, %v1447
      %v1759 = vsel %vm1742, %v1726, %v1449
      %v1760 = vsel %vm1742, %v1727, %v1451
      %v1761 = vsel %vm1742, %v1728, %v1453
      %v1762 = vsel %vm1742, %v1729, %v1455
      %v1763 = vsel %vm1742, %v1730, %v1457
      %v1764 = vsel %vm1742, %v1731, %v1459
      %v1765 = vsel %vm1742, %v1732, %v1461
      %v1766 = vsel %vm1742, %v1733, %v1463
      %v1767 = vsel %vm1742, %v1734, %v1465
      %v1768 = vsel %vm1742, %v1735, %v1467
      %v1769 = vsel %vm1742, %v1736, %v1469
      %v1770 = vsel %vm1742, %v1737, %v1471
      %v1771 = vsel %vm1742, %v1738, %v1473
      %v1772 = vsel %vm1742, %v1739, %v1475
      %v1773 = vsel %vm1742, %v1740, %v1477
      %v1774 = vsel %vm1742, %v1741, %v1479
      %v1775 = vld [vmem:[%s1] sm:$0xff]
      %v1776 = vld [vmem:[%s1 + $0x8] sm:$0xff]
      %v1777 = vld [vmem:[%s1 + $0x10] sm:$0xff]
      %v1778 = vld [vmem:[%s1 + $0x18] sm:$0xff]
      %v1779 = vld [vmem:[%s1 + $0x20] sm:$0xf]
      %v1780 = vld [vmem:[%s2] sm:$0x1]
      %v1782 = vlaneseq
      %v1783 = vshrl.u32 %v1782, 7
      %v1784 = vsub.s32 0, %v1783
      %v1785 = vrot.slane %v1780, %v1784
      %vm1787 = vcmask 293888
      %v1789 = vsel %vm1787, %v1743, 0
      %v1792 = vsel %vm1787, %v1744, 0
      %v1795 = vsel %vm1787, %v1745, 0
      %v1798 = vsel %vm1787, %v1746, 0
      %v1801 = vsel %vm1787, %v1747, 0
      %v1804 = vsel %vm1787, %v1748, 0
      %v1807 = vsel %vm1787, %v1749, 0
      %v1810 = vsel %vm1787, %v1750, 0
      %v1813 = vsel %vm1787, %v1751, 0
      %v1816 = vsel %vm1787, %v1752, 0
      %v1819 = vsel %vm1787, %v1753, 0
      %v1822 = vsel %vm1787, %v1754, 0
      %v1825 = vsel %vm1787, %v1755, 0
      %v1828 = vsel %vm1787, %v1756, 0
      %v1831 = vsel %vm1787, %v1757, 0
      %v1834 = vsel %vm1787, %v1758, 0
      %v1837 = vsel %vm1787, %v1759, 0
      %v1840 = vsel %vm1787, %v1760, 0
      %v1843 = vsel %vm1787, %v1761, 0
      %v1846 = vsel %vm1787, %v1762, 0
      %v1849 = vsel %vm1787, %v1763, 0
      %v1852 = vsel %vm1787, %v1764, 0
      %v1855 = vsel %vm1787, %v1765, 0
      %v1858 = vsel %vm1787, %v1766, 0
      %v1861 = vsel %vm1787, %v1767, 0
      %v1864 = vsel %vm1787, %v1768, 0
      %v1867 = vsel %vm1787, %v1769, 0
      %v1870 = vsel %vm1787, %v1770, 0
      %v1873 = vsel %vm1787, %v1771, 0
      %v1876 = vsel %vm1787, %v1772, 0
      %v1879 = vsel %vm1787, %v1773, 0
      %v1882 = vsel %vm1787, %v1774, 0
      %vm1884 = vcmask 1043456
      %v1886 = vsel %vm1884, %v1779, 0
      %1888 = vmatprep.subr.mxu0 0.0
      %1889 = vmatpush1.msra.mxu0 0.0
      %1890 = vmatprep.subr.mxu0 0.0
      %1891 = vmatpush1.msra.mxu0 0.0
      %1892 = vmatprep.subr.mxu0 0.0
      %1893 = vmatpush1.msra.mxu0 0.0
      %1894 = vmatprep.subr.mxu0 0.0
      %1895 = vmatpush1.msra.mxu0 0.0
      %1896 = vmatprep.subr.mxu0 0.0
      %1897 = vmatpush1.msra.mxu0 0.0
      %1898 = vmatprep.subr.mxu0 0.0
      %1899 = vmatpush1.msra.mxu0 0.0
      %1900 = vmatprep.subr.mxu0 0.0
      %1901 = vmatpush1.msra.mxu0 0.0
      %1902 = vmatprep.subr.mxu0 0.0
      %1903 = vmatpush1.msra.mxu0 0.0
      %1904 = vmatprep.subr.mxu0 0.0
      %1905 = vmatpush1.msra.mxu0 0.0
      %1906 = vmatprep.subr.mxu0 0.0
      %1907 = vmatpush1.msra.mxu0 0.0
      %1908 = vmatprep.subr.mxu0 0.0
      %1909 = vmatpush1.msra.mxu0 0.0
      %1910 = vmatprep.subr.mxu0 0.0
      %1911 = vmatpush1.msra.mxu0 %v1886
      %1912 = vmatprep.subr.mxu0 0.0
      %1913 = vmatpush1.msra.mxu0 %v1778
      %1914 = vmatprep.subr.mxu0 0.0
      %1915 = vmatpush1.msra.mxu0 %v1777
      %1916 = vmatprep.subr.mxu0 0.0
      %1917 = vmatpush1.msra.mxu0 %v1776
      %1918 = vmatprep.subr.mxu0 0.0
      %1919 = vmatpush1.msra.mxu0 %v1775
      %1920 = vmatprep.subr.mxu0 0.0
      %1921 = vmatpush2.msra.mxu0 0.0
      %1922 = vmatprep.subr.mxu0 0.0
      %1923 = vmatpush2.msra.mxu0 0.0
      %1924 = vmatprep.subr.mxu0 0.0
      %1925 = vmatpush2.msra.mxu0 0.0
      %1926 = vmatprep.subr.mxu0 0.0
      %1927 = vmatpush2.msra.mxu0 0.0
      %1928 = vmatprep.subr.mxu0 0.0
      %1929 = vmatpush2.msra.mxu0 0.0
      %1930 = vmatprep.subr.mxu0 0.0
      %1931 = vmatpush2.msra.mxu0 0.0
      %1932 = vmatprep.subr.mxu0 0.0
      %1933 = vmatpush2.msra.mxu0 0.0
      %1934 = vmatprep.subr.mxu0 0.0
      %1935 = vmatpush2.msra.mxu0 0.0
      %1936 = vmatprep.subr.mxu0 0.0
      %1937 = vmatpush2.msra.mxu0 0.0
      %1938 = vmatprep.subr.mxu0 0.0
      %1939 = vmatpush2.msra.mxu0 0.0
      %1940 = vmatprep.subr.mxu0 0.0
      %1941 = vmatpush2.msra.mxu0 0.0
      %1942 = vmatprep.subr.mxu0 0.0
      %1943 = vmatpush2.msra.mxu0 0.0
      %1944 = vmatprep.subr.mxu0 0.0
      %1945 = vmatpush2.msra.mxu0 0.0
      %1946 = vmatprep.subr.mxu0 0.0
      %1947 = vmatpush2.msra.mxu0 0.0
      %1948 = vmatprep.subr.mxu0 0.0
      %1949 = vmatpush2.msra.mxu0 0.0
      %1950 = vmatprep.subr.mxu0 0.0
      %1951 = vmatpush2.msra.mxu0 0.0
      %1952 = vmatprep.mubr.f32.mxu0 0.0
      %1953 = vmatmul.mubr.f32.gmra.mxu0 %v1789
      %v1954 = vpop.f32.mrf.mxu0
      %v1955 = vadd.f32 %v1785, %v1954
      %v1956 = vpop.f32.mrf.mxu0
      %1957 = vmatprep.mubr.f32.mxu0 0.0
      %1958 = vmatmul.mubr.f32.gmra.mxu0 %v1792
      %v1959 = vpop.f32.mrf.mxu0
      %v1960 = vadd.f32 %v1785, %v1959
      %v1961 = vpop.f32.mrf.mxu0
      %1962 = vmatprep.mubr.f32.mxu0 0.0
      %1963 = vmatmul.mubr.f32.gmra.mxu0 %v1795
      %v1964 = vpop.f32.mrf.mxu0
      %v1965 = vadd.f32 %v1785, %v1964
      %v1966 = vpop.f32.mrf.mxu0
      %1967 = vmatprep.mubr.f32.mxu0 0.0
      %1968 = vmatmul.mubr.f32.gmra.mxu0 %v1798
      %v1969 = vpop.f32.mrf.mxu0
      %v1970 = vadd.f32 %v1785, %v1969
      %v1971 = vpop.f32.mrf.mxu0
      %1972 = vmatprep.mubr.f32.mxu0 0.0
      %1973 = vmatmul.mubr.f32.gmra.mxu0 %v1801
      %v1974 = vpop.f32.mrf.mxu0
      %v1975 = vadd.f32 %v1785, %v1974
      %v1976 = vpop.f32.mrf.mxu0
      %1977 = vmatprep.mubr.f32.mxu0 0.0
      %1978 = vmatmul.mubr.f32.gmra.mxu0 %v1804
      %v1979 = vpop.f32.mrf.mxu0
      %v1980 = vadd.f32 %v1785, %v1979
      %v1981 = vpop.f32.mrf.mxu0
      %1982 = vmatprep.mubr.f32.mxu0 0.0
      %1983 = vmatmul.mubr.f32.gmra.mxu0 %v1807
      %v1984 = vpop.f32.mrf.mxu0
      %v1985 = vadd.f32 %v1785, %v1984
      %v1986 = vpop.f32.mrf.mxu0
      %1987 = vmatprep.mubr.f32.mxu0 0.0
      %1988 = vmatmul.mubr.f32.gmra.mxu0 %v1810
      %v1989 = vpop.f32.mrf.mxu0
      %v1990 = vadd.f32 %v1785, %v1989
      %v1991 = vpop.f32.mrf.mxu0
      %1992 = vmatprep.mubr.f32.mxu0 0.0
      %1993 = vmatmul.mubr.f32.gmra.mxu0 %v1813
      %v1994 = vpop.f32.mrf.mxu0
      %v1995 = vadd.f32 %v1785, %v1994
      %v1996 = vpop.f32.mrf.mxu0
      %1997 = vmatprep.mubr.f32.mxu0 0.0
      %1998 = vmatmul.mubr.f32.gmra.mxu0 %v1816
      %v1999 = vpop.f32.mrf.mxu0
      %v2000 = vadd.f32 %v1785, %v1999
      %v2001 = vpop.f32.mrf.mxu0
      %2002 = vmatprep.mubr.f32.mxu0 0.0
      %2003 = vmatmul.mubr.f32.gmra.mxu0 %v1819
      %v2004 = vpop.f32.mrf.mxu0
      %v2005 = vadd.f32 %v1785, %v2004
      %v2006 = vpop.f32.mrf.mxu0
      %2007 = vmatprep.mubr.f32.mxu0 0.0
      %2008 = vmatmul.mubr.f32.gmra.mxu0 %v1822
      %v2009 = vpop.f32.mrf.mxu0
      %v2010 = vadd.f32 %v1785, %v2009
      %v2011 = vpop.f32.mrf.mxu0
      %2012 = vmatprep.mubr.f32.mxu0 0.0
      %2013 = vmatmul.mubr.f32.gmra.mxu0 %v1825
      %v2014 = vpop.f32.mrf.mxu0
      %v2015 = vadd.f32 %v1785, %v2014
      %v2016 = vpop.f32.mrf.mxu0
      %2017 = vmatprep.mubr.f32.mxu0 0.0
      %2018 = vmatmul.mubr.f32.gmra.mxu0 %v1828
      %v2019 = vpop.f32.mrf.mxu0
      %v2020 = vadd.f32 %v1785, %v2019
      %v2021 = vpop.f32.mrf.mxu0
      %2022 = vmatprep.mubr.f32.mxu0 0.0
      %2023 = vmatmul.mubr.f32.gmra.mxu0 %v1831
      %v2024 = vpop.f32.mrf.mxu0
      %v2025 = vadd.f32 %v1785, %v2024
      %v2026 = vpop.f32.mrf.mxu0
      %2027 = vmatprep.mubr.f32.mxu0 0.0
      %2028 = vmatmul.mubr.f32.gmra.mxu0 %v1834
      %v2029 = vpop.f32.mrf.mxu0
      %v2030 = vadd.f32 %v1785, %v2029
      %v2031 = vpop.f32.mrf.mxu0
      %2032 = vmatprep.mubr.f32.mxu0 0.0
      %2033 = vmatmul.mubr.f32.gmra.mxu0 %v1837
      %v2034 = vpop.f32.mrf.mxu0
      %v2035 = vadd.f32 %v1785, %v2034
      %v2036 = vpop.f32.mrf.mxu0
      %2037 = vmatprep.mubr.f32.mxu0 0.0
      %2038 = vmatmul.mubr.f32.gmra.mxu0 %v1840
      %v2039 = vpop.f32.mrf.mxu0
      %v2040 = vadd.f32 %v1785, %v2039
      %v2041 = vpop.f32.mrf.mxu0
      %2042 = vmatprep.mubr.f32.mxu0 0.0
      %2043 = vmatmul.mubr.f32.gmra.mxu0 %v1843
      %v2044 = vpop.f32.mrf.mxu0
      %v2045 = vadd.f32 %v1785, %v2044
      %v2046 = vpop.f32.mrf.mxu0
      %2047 = vmatprep.mubr.f32.mxu0 0.0
      %2048 = vmatmul.mubr.f32.gmra.mxu0 %v1846
      %v2049 = vpop.f32.mrf.mxu0
      %v2050 = vadd.f32 %v1785, %v2049
      %v2051 = vpop.f32.mrf.mxu0
      %2052 = vmatprep.mubr.f32.mxu0 0.0
      %2053 = vmatmul.mubr.f32.gmra.mxu0 %v1849
      %v2054 = vpop.f32.mrf.mxu0
      %v2055 = vadd.f32 %v1785, %v2054
      %v2056 = vpop.f32.mrf.mxu0
      %2057 = vmatprep.mubr.f32.mxu0 0.0
      %2058 = vmatmul.mubr.f32.gmra.mxu0 %v1852
      %v2059 = vpop.f32.mrf.mxu0
      %v2060 = vadd.f32 %v1785, %v2059
      %v2061 = vpop.f32.mrf.mxu0
      %2062 = vmatprep.mubr.f32.mxu0 0.0
      %2063 = vmatmul.mubr.f32.gmra.mxu0 %v1855
      %v2064 = vpop.f32.mrf.mxu0
      %v2065 = vadd.f32 %v1785, %v2064
      %v2066 = vpop.f32.mrf.mxu0
      %2067 = vmatprep.mubr.f32.mxu0 0.0
      %2068 = vmatmul.mubr.f32.gmra.mxu0 %v1858
      %v2069 = vpop.f32.mrf.mxu0
      %v2070 = vadd.f32 %v1785, %v2069
      %v2071 = vpop.f32.mrf.mxu0
      %2072 = vmatprep.mubr.f32.mxu0 0.0
      %2073 = vmatmul.mubr.f32.gmra.mxu0 %v1861
      %v2074 = vpop.f32.mrf.mxu0
      %v2075 = vadd.f32 %v1785, %v2074
      %v2076 = vpop.f32.mrf.mxu0
      %2077 = vmatprep.mubr.f32.mxu0 0.0
      %2078 = vmatmul.mubr.f32.gmra.mxu0 %v1864
      %v2079 = vpop.f32.mrf.mxu0
      %v2080 = vadd.f32 %v1785, %v2079
      %v2081 = vpop.f32.mrf.mxu0
      %2082 = vmatprep.mubr.f32.mxu0 0.0
      %2083 = vmatmul.mubr.f32.gmra.mxu0 %v1867
      %v2084 = vpop.f32.mrf.mxu0
      %v2085 = vadd.f32 %v1785, %v2084
      %v2086 = vpop.f32.mrf.mxu0
      %2087 = vmatprep.mubr.f32.mxu0 0.0
      %2088 = vmatmul.mubr.f32.gmra.mxu0 %v1870
      %v2089 = vpop.f32.mrf.mxu0
      %v2090 = vadd.f32 %v1785, %v2089
      %v2091 = vpop.f32.mrf.mxu0
      %2092 = vmatprep.mubr.f32.mxu0 0.0
      %2093 = vmatmul.mubr.f32.gmra.mxu0 %v1873
      %v2094 = vpop.f32.mrf.mxu0
      %v2095 = vadd.f32 %v1785, %v2094
      %v2096 = vpop.f32.mrf.mxu0
      %2097 = vmatprep.mubr.f32.mxu0 0.0
      %2098 = vmatmul.mubr.f32.gmra.mxu0 %v1876
      %v2099 = vpop.f32.mrf.mxu0
      %v2100 = vadd.f32 %v1785, %v2099
      %v2101 = vpop.f32.mrf.mxu0
      %2102 = vmatprep.mubr.f32.mxu0 0.0
      %2103 = vmatmul.mubr.f32.gmra.mxu0 %v1879
      %v2104 = vpop.f32.mrf.mxu0
      %v2105 = vadd.f32 %v1785, %v2104
      %v2106 = vpop.f32.mrf.mxu0
      %2107 = vmatprep.mubr.f32.mxu0 0.0
      %2108 = vmatmul.mubr.f32.gmra.mxu0 %v1882
      %v2109 = vpop.f32.mrf.mxu0
      %v2110 = vadd.f32 %v1785, %v2109
      %v2111 = vpop.f32.mrf.mxu0
      %2112 = vdwg.mxu0
      %v2113 = vsel %vm365, %v1955, 0.0
      %v2114 = vsel %vm365, %v1960, 0.0
      %v2115 = vadd.f32 %v2113, %v2114
      %v2116 = vsel %vm365, %v1965, 0.0
      %v2117 = vadd.f32 %v2115, %v2116
      %v2118 = vsel %vm365, %v1970, 0.0
      %v2119 = vadd.f32 %v2117, %v2118
      %v2120 = vsel %vm365, %v1975, 0.0
      %v2121 = vadd.f32 %v2119, %v2120
      %v2122 = vsel %vm365, %v1980, 0.0
      %v2123 = vadd.f32 %v2121, %v2122
      %v2124 = vsel %vm365, %v1985, 0.0
      %v2125 = vadd.f32 %v2123, %v2124
      %v2126 = vsel %vm365, %v1990, 0.0
      %v2127 = vadd.f32 %v2125, %v2126
      %v2128 = vsel %vm365, %v1995, 0.0
      %v2129 = vadd.f32 %v2127, %v2128
      %v2130 = vsel %vm365, %v2000, 0.0
      %v2131 = vadd.f32 %v2129, %v2130
      %v2132 = vsel %vm365, %v2005, 0.0
      %v2133 = vadd.f32 %v2131, %v2132
      %v2134 = vsel %vm365, %v2010, 0.0
      %v2135 = vadd.f32 %v2133, %v2134
      %v2136 = vsel %vm365, %v2015, 0.0
      %v2137 = vadd.f32 %v2135, %v2136
      %v2138 = vsel %vm365, %v2020, 0.0
      %v2139 = vadd.f32 %v2137, %v2138
      %v2140 = vsel %vm365, %v2025, 0.0
      %v2141 = vadd.f32 %v2139, %v2140
      %v2142 = vsel %vm365, %v2030, 0.0
      %v2143 = vadd.f32 %v2141, %v2142
      %v2144 = vsel %vm365, %v2035, 0.0
      %v2145 = vadd.f32 %v2143, %v2144
      %v2146 = vsel %vm365, %v2040, 0.0
      %v2147 = vadd.f32 %v2145, %v2146
      %v2148 = vsel %vm365, %v2045, 0.0
      %v2149 = vadd.f32 %v2147, %v2148
      %v2150 = vsel %vm365, %v2050, 0.0
      %v2151 = vadd.f32 %v2149, %v2150
      %v2152 = vsel %vm365, %v2055, 0.0
      %v2153 = vadd.f32 %v2151, %v2152
      %v2154 = vsel %vm365, %v2060, 0.0
      %v2155 = vadd.f32 %v2153, %v2154
      %v2156 = vsel %vm365, %v2065, 0.0
      %v2157 = vadd.f32 %v2155, %v2156
      %v2158 = vsel %vm365, %v2070, 0.0
      %v2159 = vadd.f32 %v2157, %v2158
      %v2160 = vsel %vm365, %v2075, 0.0
      %v2161 = vadd.f32 %v2159, %v2160
      %v2162 = vsel %vm365, %v2080, 0.0
      %v2163 = vadd.f32 %v2161, %v2162
      %v2164 = vsel %vm365, %v2085, 0.0
      %v2165 = vadd.f32 %v2163, %v2164
      %v2166 = vsel %vm365, %v2090, 0.0
      %v2167 = vadd.f32 %v2165, %v2166
      %v2168 = vsel %vm365, %v2095, 0.0
      %v2169 = vadd.f32 %v2167, %v2168
      %v2170 = vsel %vm365, %v2100, 0.0
      %v2171 = vadd.f32 %v2169, %v2170
      %v2172 = vsel %vm365, %v2105, 0.0
      %v2173 = vadd.f32 %v2171, %v2172
      %v2174 = vsel %vm365, %v2110, 0.0
      %v2175 = vadd.f32 %v2173, %v2174
      %v2176 = vrot.slane %v2175, 4
      %v2177 = vadd.f32 %v2175, %v2176
      %v2178 = vrot.slane %v2177, 2
      %v2179 = vadd.f32 %v2177, %v2178
      %v2180 = vrot.slane %v2179, 1
      %v2181 = vadd.f32 %v2179, %v2180
      %v2182 = vmul.f32 %v1955, %v1955
      %v2183 = vmul.f32 %v1960, %v1960
      %v2184 = vmul.f32 %v1965, %v1965
      %v2185 = vmul.f32 %v1970, %v1970
      %v2186 = vmul.f32 %v1975, %v1975
      %v2187 = vmul.f32 %v1980, %v1980
      %v2188 = vmul.f32 %v1985, %v1985
      %v2189 = vmul.f32 %v1990, %v1990
      %v2190 = vmul.f32 %v1995, %v1995
      %v2191 = vmul.f32 %v2000, %v2000
      %v2192 = vmul.f32 %v2005, %v2005
      %v2193 = vmul.f32 %v2010, %v2010
      %v2194 = vmul.f32 %v2015, %v2015
      %v2195 = vmul.f32 %v2020, %v2020
      %v2196 = vmul.f32 %v2025, %v2025
      %v2197 = vmul.f32 %v2030, %v2030
      %v2198 = vmul.f32 %v2035, %v2035
      %v2199 = vmul.f32 %v2040, %v2040
      %v2200 = vmul.f32 %v2045, %v2045
      %v2201 = vmul.f32 %v2050, %v2050
      %v2202 = vmul.f32 %v2055, %v2055
      %v2203 = vmul.f32 %v2060, %v2060
      %v2204 = vmul.f32 %v2065, %v2065
      %v2205 = vmul.f32 %v2070, %v2070
      %v2206 = vmul.f32 %v2075, %v2075
      %v2207 = vmul.f32 %v2080, %v2080
      %v2208 = vmul.f32 %v2085, %v2085
      %v2209 = vmul.f32 %v2090, %v2090
      %v2210 = vmul.f32 %v2095, %v2095
      %v2211 = vmul.f32 %v2100, %v2100
      %v2212 = vmul.f32 %v2105, %v2105
      %v2213 = vmul.f32 %v2110, %v2110
      %v2214 = vsel %vm365, %v2182, 0.0
      %v2215 = vsel %vm365, %v2183, 0.0
      %v2216 = vadd.f32 %v2214, %v2215
      %v2217 = vsel %vm365, %v2184, 0.0
      %v2218 = vadd.f32 %v2216, %v2217
      %v2219 = vsel %vm365, %v2185, 0.0
      %v2220 = vadd.f32 %v2218, %v2219
      %v2221 = vsel %vm365, %v2186, 0.0
      %v2222 = vadd.f32 %v2220, %v2221
      %v2223 = vsel %vm365, %v2187, 0.0
      %v2224 = vadd.f32 %v2222, %v2223
      %v2225 = vsel %vm365, %v2188, 0.0
      %v2226 = vadd.f32 %v2224, %v2225
      %v2227 = vsel %vm365, %v2189, 0.0
      %v2228 = vadd.f32 %v2226, %v2227
      %v2229 = vsel %vm365, %v2190, 0.0
      %v2230 = vadd.f32 %v2228, %v2229
      %v2231 = vsel %vm365, %v2191, 0.0
      %v2232 = vadd.f32 %v2230, %v2231
      %v2233 = vsel %vm365, %v2192, 0.0
      %v2234 = vadd.f32 %v2232, %v2233
      %v2235 = vsel %vm365, %v2193, 0.0
      %v2236 = vadd.f32 %v2234, %v2235
      %v2237 = vsel %vm365, %v2194, 0.0
      %v2238 = vadd.f32 %v2236, %v2237
      %v2239 = vsel %vm365, %v2195, 0.0
      %v2240 = vadd.f32 %v2238, %v2239
      %v2241 = vsel %vm365, %v2196, 0.0
      %v2242 = vadd.f32 %v2240, %v2241
      %v2243 = vsel %vm365, %v2197, 0.0
      %v2244 = vadd.f32 %v2242, %v2243
      %v2245 = vsel %vm365, %v2198, 0.0
      %v2246 = vadd.f32 %v2244, %v2245
      %v2247 = vsel %vm365, %v2199, 0.0
      %v2248 = vadd.f32 %v2246, %v2247
      %v2249 = vsel %vm365, %v2200, 0.0
      %v2250 = vadd.f32 %v2248, %v2249
      %v2251 = vsel %vm365, %v2201, 0.0
      %v2252 = vadd.f32 %v2250, %v2251
      %v2253 = vsel %vm365, %v2202, 0.0
      %v2254 = vadd.f32 %v2252, %v2253
      %v2255 = vsel %vm365, %v2203, 0.0
      %v2256 = vadd.f32 %v2254, %v2255
      %v2257 = vsel %vm365, %v2204, 0.0
      %v2258 = vadd.f32 %v2256, %v2257
      %v2259 = vsel %vm365, %v2205, 0.0
      %v2260 = vadd.f32 %v2258, %v2259
      %v2261 = vsel %vm365, %v2206, 0.0
      %v2262 = vadd.f32 %v2260, %v2261
      %v2263 = vsel %vm365, %v2207, 0.0
      %v2264 = vadd.f32 %v2262, %v2263
      %v2265 = vsel %vm365, %v2208, 0.0
      %v2266 = vadd.f32 %v2264, %v2265
      %v2267 = vsel %vm365, %v2209, 0.0
      %v2268 = vadd.f32 %v2266, %v2267
      %v2269 = vsel %vm365, %v2210, 0.0
      %v2270 = vadd.f32 %v2268, %v2269
      %v2271 = vsel %vm365, %v2211, 0.0
      %v2272 = vadd.f32 %v2270, %v2271
      %v2273 = vsel %vm365, %v2212, 0.0
      %v2274 = vadd.f32 %v2272, %v2273
      %v2275 = vsel %vm365, %v2213, 0.0
      %v2276 = vadd.f32 %v2274, %v2275
      %v2277 = vrot.slane %v2276, 4
      %v2278 = vadd.f32 %v2276, %v2277
      %v2279 = vrot.slane %v2278, 2
      %v2280 = vadd.f32 %v2278, %v2279
      %v2281 = vrot.slane %v2280, 1
      %v2282 = vadd.f32 %v2280, %v2281
      %v2283 = vmul.f32 %v2181, 0.00390625
      %v2284 = vmul.f32 %v2282, 0.00390625
      %v2285 = vmul.f32 %v2283, %v2283
      %v2286 = vsub.f32 %v2284, %v2285
      %v2287 = vmax.f32 %v2286, 0.0
      %v2288 = vsub.f32 %v1955, %v2283
      %v2289 = vsub.f32 %v1960, %v2283
      %v2290 = vsub.f32 %v1965, %v2283
      %v2291 = vsub.f32 %v1970, %v2283
      %v2292 = vsub.f32 %v1975, %v2283
      %v2293 = vsub.f32 %v1980, %v2283
      %v2294 = vsub.f32 %v1985, %v2283
      %v2295 = vsub.f32 %v1990, %v2283
      %v2296 = vsub.f32 %v1995, %v2283
      %v2297 = vsub.f32 %v2000, %v2283
      %v2298 = vsub.f32 %v2005, %v2283
      %v2299 = vsub.f32 %v2010, %v2283
      %v2300 = vsub.f32 %v2015, %v2283
      %v2301 = vsub.f32 %v2020, %v2283
      %v2302 = vsub.f32 %v2025, %v2283
      %v2303 = vsub.f32 %v2030, %v2283
      %v2304 = vsub.f32 %v2035, %v2283
      %v2305 = vsub.f32 %v2040, %v2283
      %v2306 = vsub.f32 %v2045, %v2283
      %v2307 = vsub.f32 %v2050, %v2283
      %v2308 = vsub.f32 %v2055, %v2283
      %v2309 = vsub.f32 %v2060, %v2283
      %v2310 = vsub.f32 %v2065, %v2283
      %v2311 = vsub.f32 %v2070, %v2283
      %v2312 = vsub.f32 %v2075, %v2283
      %v2313 = vsub.f32 %v2080, %v2283
      %v2314 = vsub.f32 %v2085, %v2283
      %v2315 = vsub.f32 %v2090, %v2283
      %v2316 = vsub.f32 %v2095, %v2283
      %v2317 = vsub.f32 %v2100, %v2283
      %v2318 = vsub.f32 %v2105, %v2283
      %v2319 = vsub.f32 %v2110, %v2283
      %v2320 = vadd.f32 %v2287, 1e-05
      %v2321 = vrsqrt.pop %v2320
      %v2322 = vmul.f32 %v2288, %v2321
      %v2323 = vmul.f32 %v2289, %v2321
      %v2324 = vmul.f32 %v2290, %v2321
      %v2325 = vmul.f32 %v2291, %v2321
      %v2326 = vmul.f32 %v2292, %v2321
      %v2327 = vmul.f32 %v2293, %v2321
      %v2328 = vmul.f32 %v2294, %v2321
      %v2329 = vmul.f32 %v2295, %v2321
      %v2330 = vmul.f32 %v2296, %v2321
      %v2331 = vmul.f32 %v2297, %v2321
      %v2332 = vmul.f32 %v2298, %v2321
      %v2333 = vmul.f32 %v2299, %v2321
      %v2334 = vmul.f32 %v2300, %v2321
      %v2335 = vmul.f32 %v2301, %v2321
      %v2336 = vmul.f32 %v2302, %v2321
      %v2337 = vmul.f32 %v2303, %v2321
      %v2338 = vmul.f32 %v2304, %v2321
      %v2339 = vmul.f32 %v2305, %v2321
      %v2340 = vmul.f32 %v2306, %v2321
      %v2341 = vmul.f32 %v2307, %v2321
      %v2342 = vmul.f32 %v2308, %v2321
      %v2343 = vmul.f32 %v2309, %v2321
      %v2344 = vmul.f32 %v2310, %v2321
      %v2345 = vmul.f32 %v2311, %v2321
      %v2346 = vmul.f32 %v2312, %v2321
      %v2347 = vmul.f32 %v2313, %v2321
      %v2348 = vmul.f32 %v2314, %v2321
      %v2349 = vmul.f32 %v2315, %v2321
      %v2350 = vmul.f32 %v2316, %v2321
      %v2351 = vmul.f32 %v2317, %v2321
      %v2352 = vmul.f32 %v2318, %v2321
      %v2353 = vmul.f32 %v2319, %v2321
      %v2354 = vld [vmem:[%s3] sm:$0x1]
      %v2356 = vlaneseq
      %v2357 = vshrl.u32 %v2356, 7
      %v2358 = vsub.s32 0, %v2357
      %v2359 = vrot.slane %v2354, %v2358
      %v2361 = vmul.f32 %v2322, %v2359
      %v2362 = vmul.f32 %v2323, %v2359
      %v2363 = vmul.f32 %v2324, %v2359
      %v2364 = vmul.f32 %v2325, %v2359
      %v2365 = vmul.f32 %v2326, %v2359
      %v2366 = vmul.f32 %v2327, %v2359
      %v2367 = vmul.f32 %v2328, %v2359
      %v2368 = vmul.f32 %v2329, %v2359
      %v2369 = vmul.f32 %v2330, %v2359
      %v2370 = vmul.f32 %v2331, %v2359
      %v2371 = vmul.f32 %v2332, %v2359
      %v2372 = vmul.f32 %v2333, %v2359
      %v2373 = vmul.f32 %v2334, %v2359
      %v2374 = vmul.f32 %v2335, %v2359
      %v2375 = vmul.f32 %v2336, %v2359
      %v2376 = vmul.f32 %v2337, %v2359
      %v2377 = vmul.f32 %v2338, %v2359
      %v2378 = vmul.f32 %v2339, %v2359
      %v2379 = vmul.f32 %v2340, %v2359
      %v2380 = vmul.f32 %v2341, %v2359
      %v2381 = vmul.f32 %v2342, %v2359
      %v2382 = vmul.f32 %v2343, %v2359
      %v2383 = vmul.f32 %v2344, %v2359
      %v2384 = vmul.f32 %v2345, %v2359
      %v2385 = vmul.f32 %v2346, %v2359
      %v2386 = vmul.f32 %v2347, %v2359
      %v2387 = vmul.f32 %v2348, %v2359
      %v2388 = vmul.f32 %v2349, %v2359
      %v2389 = vmul.f32 %v2350, %v2359
      %v2390 = vmul.f32 %v2351, %v2359
      %v2391 = vmul.f32 %v2352, %v2359
      %v2392 = vmul.f32 %v2353, %v2359
      %v2393 = vld [vmem:[%s4] sm:$0x1]
      %v2395 = vlaneseq
      %v2396 = vshrl.u32 %v2395, 7
      %v2397 = vsub.s32 0, %v2396
      %v2398 = vrot.slane %v2393, %v2397
      %v2400 = vadd.f32 %v2361, %v2398
      %v2401 = vadd.f32 %v2362, %v2398
      %v2402 = vadd.f32 %v2363, %v2398
      %v2403 = vadd.f32 %v2364, %v2398
      %v2404 = vadd.f32 %v2365, %v2398
      %v2405 = vadd.f32 %v2366, %v2398
      %v2406 = vadd.f32 %v2367, %v2398
      %v2407 = vadd.f32 %v2368, %v2398
      %v2408 = vadd.f32 %v2369, %v2398
      %v2409 = vadd.f32 %v2370, %v2398
      %v2410 = vadd.f32 %v2371, %v2398
      %v2411 = vadd.f32 %v2372, %v2398
      %v2412 = vadd.f32 %v2373, %v2398
      %v2413 = vadd.f32 %v2374, %v2398
      %v2414 = vadd.f32 %v2375, %v2398
      %v2415 = vadd.f32 %v2376, %v2398
      %v2416 = vadd.f32 %v2377, %v2398
      %v2417 = vadd.f32 %v2378, %v2398
      %v2418 = vadd.f32 %v2379, %v2398
      %v2419 = vadd.f32 %v2380, %v2398
      %v2420 = vadd.f32 %v2381, %v2398
      %v2421 = vadd.f32 %v2382, %v2398
      %v2422 = vadd.f32 %v2383, %v2398
      %v2423 = vadd.f32 %v2384, %v2398
      %v2424 = vadd.f32 %v2385, %v2398
      %v2425 = vadd.f32 %v2386, %v2398
      %v2426 = vadd.f32 %v2387, %v2398
      %v2427 = vadd.f32 %v2388, %v2398
      %v2428 = vadd.f32 %v2389, %v2398
      %v2429 = vadd.f32 %v2390, %v2398
      %v2430 = vadd.f32 %v2391, %v2398
      %v2431 = vadd.f32 %v2392, %v2398
      %v2432 = vmax.f32 %v2400, 0.0
      %v2433 = vmax.f32 %v2401, 0.0
      %v2434 = vmax.f32 %v2402, 0.0
      %v2435 = vmax.f32 %v2403, 0.0
      %v2436 = vmax.f32 %v2404, 0.0
      %v2437 = vmax.f32 %v2405, 0.0
      %v2438 = vmax.f32 %v2406, 0.0
      %v2439 = vmax.f32 %v2407, 0.0
      %v2440 = vmax.f32 %v2408, 0.0
      %v2441 = vmax.f32 %v2409, 0.0
      %v2442 = vmax.f32 %v2410, 0.0
      %v2443 = vmax.f32 %v2411, 0.0
      %v2444 = vmax.f32 %v2412, 0.0
      %v2445 = vmax.f32 %v2413, 0.0
      %v2446 = vmax.f32 %v2414, 0.0
      %v2447 = vmax.f32 %v2415, 0.0
      %v2448 = vmax.f32 %v2416, 0.0
      %v2449 = vmax.f32 %v2417, 0.0
      %v2450 = vmax.f32 %v2418, 0.0
      %v2451 = vmax.f32 %v2419, 0.0
      %v2452 = vmax.f32 %v2420, 0.0
      %v2453 = vmax.f32 %v2421, 0.0
      %v2454 = vmax.f32 %v2422, 0.0
      %v2455 = vmax.f32 %v2423, 0.0
      %v2456 = vmax.f32 %v2424, 0.0
      %v2457 = vmax.f32 %v2425, 0.0
      %v2458 = vmax.f32 %v2426, 0.0
      %v2459 = vmax.f32 %v2427, 0.0
      %v2460 = vmax.f32 %v2428, 0.0
      %v2461 = vmax.f32 %v2429, 0.0
      %v2462 = vmax.f32 %v2430, 0.0
      %v2463 = vmax.f32 %v2431, 0.0
      %2464 = vst.msk [vmem:[%s421 + $0x1] sm:$0xff] %vm365, %v2432
      %2465 = vst.msk [vmem:[%s421 + $0x9] sm:$0xff] %vm365, %v2433
      %2466 = vst.msk [vmem:[%s421 + $0x19] sm:$0xff] %vm365, %v2434
      %2467 = vst.msk [vmem:[%s421 + $0x21] sm:$0xff] %vm365, %v2435
      %2468 = vst.msk [vmem:[%s421 + $0x31] sm:$0xff] %vm365, %v2436
      %2469 = vst.msk [vmem:[%s421 + $0x39] sm:$0xff] %vm365, %v2437
      %2470 = vst.msk [vmem:[%s421 + $0x49] sm:$0xff] %vm365, %v2438
      %2471 = vst.msk [vmem:[%s421 + $0x51] sm:$0xff] %vm365, %v2439
      %2472 = vst.msk [vmem:[%s421 + $0x61] sm:$0xff] %vm365, %v2440
      %2473 = vst.msk [vmem:[%s421 + $0x69] sm:$0xff] %vm365, %v2441
      %2474 = vst.msk [vmem:[%s421 + $0x79] sm:$0xff] %vm365, %v2442
      %2475 = vst.msk [vmem:[%s421 + $0x81] sm:$0xff] %vm365, %v2443
      %2476 = vst.msk [vmem:[%s421 + $0x91] sm:$0xff] %vm365, %v2444
      %2477 = vst.msk [vmem:[%s421 + $0x99] sm:$0xff] %vm365, %v2445
      %2478 = vst.msk [vmem:[%s421 + $0xa9] sm:$0xff] %vm365, %v2446
      %2479 = vst.msk [vmem:[%s421 + $0xb1] sm:$0xff] %vm365, %v2447
      %2480 = vst.msk [vmem:[%s421 + $0xc1] sm:$0xff] %vm365, %v2448
      %2481 = vst.msk [vmem:[%s421 + $0xc9] sm:$0xff] %vm365, %v2449
      %2482 = vst.msk [vmem:[%s421 + $0xd9] sm:$0xff] %vm365, %v2450
      %2483 = vst.msk [vmem:[%s421 + $0xe1] sm:$0xff] %vm365, %v2451
      %2484 = vst.msk [vmem:[%s421 + $0xf1] sm:$0xff] %vm365, %v2452
      %2485 = vst.msk [vmem:[%s421 + $0xf9] sm:$0xff] %vm365, %v2453
      %2486 = vst.msk [vmem:[%s421 + $0x109] sm:$0xff] %vm365, %v2454
      %2487 = vst.msk [vmem:[%s421 + $0x111] sm:$0xff] %vm365, %v2455
      %2488 = vst.msk [vmem:[%s421 + $0x121] sm:$0xff] %vm365, %v2456
      %2489 = vst.msk [vmem:[%s421 + $0x129] sm:$0xff] %vm365, %v2457
      %2490 = vst.msk [vmem:[%s421 + $0x139] sm:$0xff] %vm365, %v2458
      %2491 = vst.msk [vmem:[%s421 + $0x141] sm:$0xff] %vm365, %v2459
      %2492 = vst.msk [vmem:[%s421 + $0x151] sm:$0xff] %vm365, %v2460
      %2493 = vst.msk [vmem:[%s421 + $0x159] sm:$0xff] %vm365, %v2461
      %2494 = vst.msk [vmem:[%s421 + $0x169] sm:$0xff] %vm365, %v2462
      %2495 = vst.msk [vmem:[%s421 + $0x171] sm:$0xff] %vm365, %v2463
      %v2496 = vld [vmem:[#allocation2] sm:$0xff]
      %v2497 = vld [vmem:[#allocation2 + $0x8] sm:$0xff]
      %v2498 = vld [vmem:[#allocation2 + $0x10] sm:$0x3]
      %v2499 = vld [vmem:[#allocation2 + $0x18] sm:$0xff]
      %v2500 = vld [vmem:[#allocation2 + $0x20] sm:$0xff]
      %v2501 = vld [vmem:[#allocation2 + $0x28] sm:$0x3]
      %v2502 = vld [vmem:[#allocation2 + $0x30] sm:$0xff]
      %v2503 = vld [vmem:[#allocation2 + $0x38] sm:$0xff]
      %v2504 = vld [vmem:[#allocation2 + $0x40] sm:$0x3]
      %v2505 = vld [vmem:[#allocation2 + $0x48] sm:$0xff]
      %v2506 = vld [vmem:[#allocation2 + $0x50] sm:$0xff]
      %v2507 = vld [vmem:[#allocation2 + $0x58] sm:$0x3]
      %v2508 = vld [vmem:[#allocation2 + $0x60] sm:$0xff]
      %v2509 = vld [vmem:[#allocation2 + $0x68] sm:$0xff]
      %v2510 = vld [vmem:[#allocation2 + $0x70] sm:$0x3]
      %v2511 = vld [vmem:[#allocation2 + $0x78] sm:$0xff]
      %v2512 = vld [vmem:[#allocation2 + $0x80] sm:$0xff]
      %v2513 = vld [vmem:[#allocation2 + $0x88] sm:$0x3]
      %v2514 = vld [vmem:[#allocation2 + $0x90] sm:$0xff]
      %v2515 = vld [vmem:[#allocation2 + $0x98] sm:$0xff]
      %v2516 = vld [vmem:[#allocation2 + $0xa0] sm:$0x3]
      %v2517 = vld [vmem:[#allocation2 + $0xa8] sm:$0xff]
      %v2518 = vld [vmem:[#allocation2 + $0xb0] sm:$0xff]
      %v2519 = vld [vmem:[#allocation2 + $0xb8] sm:$0x3]
      %v2520 = vld [vmem:[#allocation2 + $0xc0] sm:$0xff]
      %v2521 = vld [vmem:[#allocation2 + $0xc8] sm:$0xff]
      %v2522 = vld [vmem:[#allocation2 + $0xd0] sm:$0x3]
      %v2523 = vld [vmem:[#allocation2 + $0xd8] sm:$0xff]
      %v2524 = vld [vmem:[#allocation2 + $0xe0] sm:$0xff]
      %v2525 = vld [vmem:[#allocation2 + $0xe8] sm:$0x3]
      %v2526 = vld [vmem:[#allocation2 + $0xf0] sm:$0xff]
      %v2527 = vld [vmem:[#allocation2 + $0xf8] sm:$0xff]
      %v2528 = vld [vmem:[#allocation2 + $0x100] sm:$0x3]
      %v2529 = vld [vmem:[#allocation2 + $0x108] sm:$0xff]
      %v2530 = vld [vmem:[#allocation2 + $0x110] sm:$0xff]
      %v2531 = vld [vmem:[#allocation2 + $0x118] sm:$0x3]
      %v2532 = vld [vmem:[#allocation2 + $0x120] sm:$0xff]
      %v2533 = vld [vmem:[#allocation2 + $0x128] sm:$0xff]
      %v2534 = vld [vmem:[#allocation2 + $0x130] sm:$0x3]
      %v2535 = vld [vmem:[#allocation2 + $0x138] sm:$0xff]
      %v2536 = vld [vmem:[#allocation2 + $0x140] sm:$0xff]
      %v2537 = vld [vmem:[#allocation2 + $0x148] sm:$0x3]
      %v2538 = vld [vmem:[#allocation2 + $0x150] sm:$0xff]
      %v2539 = vld [vmem:[#allocation2 + $0x158] sm:$0xff]
      %v2540 = vld [vmem:[#allocation2 + $0x160] sm:$0x3]
      %v2541 = vld [vmem:[#allocation2 + $0x168] sm:$0xff]
      %v2542 = vld [vmem:[#allocation2 + $0x170] sm:$0xff]
      %v2543 = vld [vmem:[#allocation2 + $0x178] sm:$0x3]
      %v2544 = vld [vmem:[#allocation2 + $0x180] sm:$0xff]
      %v2545 = vld [vmem:[#allocation2 + $0x188] sm:$0xff]
      %v2546 = vld [vmem:[#allocation2 + $0x190] sm:$0x3]
      %v2547 = vld [vmem:[#allocation2 + $0x198] sm:$0xff]
      %v2548 = vld [vmem:[#allocation2 + $0x1a0] sm:$0xff]
      %v2549 = vld [vmem:[#allocation2 + $0x1a8] sm:$0x3]
      %v2598 = vrot.slane %v2496, 1
      %v2599 = vrot.slane %v2497, 1
      %v2600 = vsel %vm556, %v2598, %v2599
      %v2601 = vrot.slane %v2498, 1
      %v2602 = vsel %vm556, %v2599, %v2601
      %v2603 = vrot.slane %v2499, 1
      %v2604 = vrot.slane %v2500, 1
      %v2605 = vsel %vm556, %v2603, %v2604
      %v2606 = vrot.slane %v2501, 1
      %v2607 = vsel %vm556, %v2604, %v2606
      %v2608 = vrot.slane %v2502, 1
      %v2609 = vrot.slane %v2503, 1
      %v2610 = vsel %vm556, %v2608, %v2609
      %v2611 = vrot.slane %v2504, 1
      %v2612 = vsel %vm556, %v2609, %v2611
      %v2613 = vrot.slane %v2505, 1
      %v2614 = vrot.slane %v2506, 1
      %v2615 = vsel %vm556, %v2613, %v2614
      %v2616 = vrot.slane %v2507, 1
      %v2617 = vsel %vm556, %v2614, %v2616
      %v2618 = vrot.slane %v2508, 1
      %v2619 = vrot.slane %v2509, 1
      %v2620 = vsel %vm556, %v2618, %v2619
      %v2621 = vrot.slane %v2510, 1
      %v2622 = vsel %vm556, %v2619, %v2621
      %v2623 = vrot.slane %v2511, 1
      %v2624 = vrot.slane %v2512, 1
      %v2625 = vsel %vm556, %v2623, %v2624
      %v2626 = vrot.slane %v2513, 1
      %v2627 = vsel %vm556, %v2624, %v2626
      %v2628 = vrot.slane %v2514, 1
      %v2629 = vrot.slane %v2515, 1
      %v2630 = vsel %vm556, %v2628, %v2629
      %v2631 = vrot.slane %v2516, 1
      %v2632 = vsel %vm556, %v2629, %v2631
      %v2633 = vrot.slane %v2517, 1
      %v2634 = vrot.slane %v2518, 1
      %v2635 = vsel %vm556, %v2633, %v2634
      %v2636 = vrot.slane %v2519, 1
      %v2637 = vsel %vm556, %v2634, %v2636
      %v2638 = vrot.slane %v2520, 1
      %v2639 = vrot.slane %v2521, 1
      %v2640 = vsel %vm556, %v2638, %v2639
      %v2641 = vrot.slane %v2522, 1
      %v2642 = vsel %vm556, %v2639, %v2641
      %v2643 = vrot.slane %v2523, 1
      %v2644 = vrot.slane %v2524, 1
      %v2645 = vsel %vm556, %v2643, %v2644
      %v2646 = vrot.slane %v2525, 1
      %v2647 = vsel %vm556, %v2644, %v2646
      %v2648 = vrot.slane %v2526, 1
      %v2649 = vrot.slane %v2527, 1
      %v2650 = vsel %vm556, %v2648, %v2649
      %v2651 = vrot.slane %v2528, 1
      %v2652 = vsel %vm556, %v2649, %v2651
      %v2653 = vrot.slane %v2529, 1
      %v2654 = vrot.slane %v2530, 1
      %v2655 = vsel %vm556, %v2653, %v2654
      %v2656 = vrot.slane %v2531, 1
      %v2657 = vsel %vm556, %v2654, %v2656
      %v2658 = vrot.slane %v2532, 1
      %v2659 = vrot.slane %v2533, 1
      %v2660 = vsel %vm556, %v2658, %v2659
      %v2661 = vrot.slane %v2534, 1
      %v2662 = vsel %vm556, %v2659, %v2661
      %v2663 = vrot.slane %v2535, 1
      %v2664 = vrot.slane %v2536, 1
      %v2665 = vsel %vm556, %v2663, %v2664
      %v2666 = vrot.slane %v2537, 1
      %v2667 = vsel %vm556, %v2664, %v2666
      %v2668 = vrot.slane %v2538, 1
      %v2669 = vrot.slane %v2539, 1
      %v2670 = vsel %vm556, %v2668, %v2669
      %v2671 = vrot.slane %v2540, 1
      %v2672 = vsel %vm556, %v2669, %v2671
      %v2673 = vrot.slane %v2541, 1
      %v2674 = vrot.slane %v2542, 1
      %v2675 = vsel %vm556, %v2673, %v2674
      %v2676 = vrot.slane %v2543, 1
      %v2677 = vsel %vm556, %v2674, %v2676
      %v2678 = vrot.slane %v2496, 2
      %v2679 = vrot.slane %v2497, 2
      %v2680 = vsel %vm637, %v2678, %v2679
      %v2681 = vrot.slane %v2498, 2
      %v2682 = vsel %vm637, %v2679, %v2681
      %v2683 = vrot.slane %v2499, 2
      %v2684 = vrot.slane %v2500, 2
      %v2685 = vsel %vm637, %v2683, %v2684
      %v2686 = vrot.slane %v2501, 2
      %v2687 = vsel %vm637, %v2684, %v2686
      %v2688 = vrot.slane %v2502, 2
      %v2689 = vrot.slane %v2503, 2
      %v2690 = vsel %vm637, %v2688, %v2689
      %v2691 = vrot.slane %v2504, 2
      %v2692 = vsel %vm637, %v2689, %v2691
      %v2693 = vrot.slane %v2505, 2
      %v2694 = vrot.slane %v2506, 2
      %v2695 = vsel %vm637, %v2693, %v2694
      %v2696 = vrot.slane %v2507, 2
      %v2697 = vsel %vm637, %v2694, %v2696
      %v2698 = vrot.slane %v2508, 2
      %v2699 = vrot.slane %v2509, 2
      %v2700 = vsel %vm637, %v2698, %v2699
      %v2701 = vrot.slane %v2510, 2
      %v2702 = vsel %vm637, %v2699, %v2701
      %v2703 = vrot.slane %v2511, 2
      %v2704 = vrot.slane %v2512, 2
      %v2705 = vsel %vm637, %v2703, %v2704
      %v2706 = vrot.slane %v2513, 2
      %v2707 = vsel %vm637, %v2704, %v2706
      %v2708 = vrot.slane %v2514, 2
      %v2709 = vrot.slane %v2515, 2
      %v2710 = vsel %vm637, %v2708, %v2709
      %v2711 = vrot.slane %v2516, 2
      %v2712 = vsel %vm637, %v2709, %v2711
      %v2713 = vrot.slane %v2517, 2
      %v2714 = vrot.slane %v2518, 2
      %v2715 = vsel %vm637, %v2713, %v2714
      %v2716 = vrot.slane %v2519, 2
      %v2717 = vsel %vm637, %v2714, %v2716
      %v2718 = vrot.slane %v2520, 2
      %v2719 = vrot.slane %v2521, 2
      %v2720 = vsel %vm637, %v2718, %v2719
      %v2721 = vrot.slane %v2522, 2
      %v2722 = vsel %vm637, %v2719, %v2721
      %v2723 = vrot.slane %v2523, 2
      %v2724 = vrot.slane %v2524, 2
      %v2725 = vsel %vm637, %v2723, %v2724
      %v2726 = vrot.slane %v2525, 2
      %v2727 = vsel %vm637, %v2724, %v2726
      %v2728 = vrot.slane %v2526, 2
      %v2729 = vrot.slane %v2527, 2
      %v2730 = vsel %vm637, %v2728, %v2729
      %v2731 = vrot.slane %v2528, 2
      %v2732 = vsel %vm637, %v2729, %v2731
      %v2733 = vrot.slane %v2529, 2
      %v2734 = vrot.slane %v2530, 2
      %v2735 = vsel %vm637, %v2733, %v2734
      %v2736 = vrot.slane %v2531, 2
      %v2737 = vsel %vm637, %v2734, %v2736
      %v2738 = vrot.slane %v2532, 2
      %v2739 = vrot.slane %v2533, 2
      %v2740 = vsel %vm637, %v2738, %v2739
      %v2741 = vrot.slane %v2534, 2
      %v2742 = vsel %vm637, %v2739, %v2741
      %v2743 = vrot.slane %v2535, 2
      %v2744 = vrot.slane %v2536, 2
      %v2745 = vsel %vm637, %v2743, %v2744
      %v2746 = vrot.slane %v2537, 2
      %v2747 = vsel %vm637, %v2744, %v2746
      %v2748 = vrot.slane %v2538, 2
      %v2749 = vrot.slane %v2539, 2
      %v2750 = vsel %vm637, %v2748, %v2749
      %v2751 = vrot.slane %v2540, 2
      %v2752 = vsel %vm637, %v2749, %v2751
      %v2753 = vrot.slane %v2541, 2
      %v2754 = vrot.slane %v2542, 2
      %v2755 = vsel %vm637, %v2753, %v2754
      %v2756 = vrot.slane %v2543, 2
      %v2757 = vsel %vm637, %v2754, %v2756
      %v2761 = vrot.slane %v2544, 1
      %v2762 = vrot.slane %v2545, 1
      %v2763 = vsel %vm556, %v2761, %v2762
      %v2764 = vrot.slane %v2546, 1
      %v2765 = vsel %vm556, %v2762, %v2764
      %v2766 = vrot.slane %v2544, 2
      %v2767 = vrot.slane %v2545, 2
      %v2768 = vsel %vm637, %v2766, %v2767
      %v2769 = vrot.slane %v2546, 2
      %v2770 = vsel %vm637, %v2767, %v2769
      %v2774 = vrot.slane %v2547, 1
      %v2775 = vrot.slane %v2548, 1
      %v2776 = vsel %vm556, %v2774, %v2775
      %v2777 = vrot.slane %v2549, 1
      %v2778 = vsel %vm556, %v2775, %v2777
      %v2779 = vrot.slane %v2547, 2
      %v2780 = vrot.slane %v2548, 2
      %v2781 = vsel %vm637, %v2779, %v2780
      %v2782 = vrot.slane %v2549, 2
      %v2783 = vsel %vm637, %v2780, %v2782
      %2784 = vrot.lane.b32.xlu0 %v2600, 4
      %v2785 = vpop.permute.xlu0 %2784
      %2786 = vrot.lane.b32.xlu0 %v2602, 4
      %v2787 = vpop.permute.xlu0 %2786
      %2788 = vrot.lane.b32.xlu0 %v2605, 4
      %v2789 = vpop.permute.xlu0 %2788
      %2790 = vrot.lane.b32.xlu0 %v2607, 4
      %v2791 = vpop.permute.xlu0 %2790
      %2792 = vrot.lane.b32.xlu0 %v2610, 4
      %v2793 = vpop.permute.xlu0 %2792
      %2794 = vrot.lane.b32.xlu0 %v2612, 4
      %v2795 = vpop.permute.xlu0 %2794
      %2796 = vrot.lane.b32.xlu0 %v2615, 4
      %v2797 = vpop.permute.xlu0 %2796
      %2798 = vrot.lane.b32.xlu0 %v2617, 4
      %v2799 = vpop.permute.xlu0 %2798
      %2800 = vrot.lane.b32.xlu0 %v2620, 4
      %v2801 = vpop.permute.xlu0 %2800
      %2802 = vrot.lane.b32.xlu0 %v2622, 4
      %v2803 = vpop.permute.xlu0 %2802
      %2804 = vrot.lane.b32.xlu0 %v2625, 4
      %v2805 = vpop.permute.xlu0 %2804
      %2806 = vrot.lane.b32.xlu0 %v2627, 4
      %v2807 = vpop.permute.xlu0 %2806
      %2808 = vrot.lane.b32.xlu0 %v2630, 4
      %v2809 = vpop.permute.xlu0 %2808
      %2810 = vrot.lane.b32.xlu0 %v2632, 4
      %v2811 = vpop.permute.xlu0 %2810
      %2812 = vrot.lane.b32.xlu0 %v2635, 4
      %v2813 = vpop.permute.xlu0 %2812
      %2814 = vrot.lane.b32.xlu0 %v2637, 4
      %v2815 = vpop.permute.xlu0 %2814
      %2816 = vrot.lane.b32.xlu0 %v2640, 4
      %v2817 = vpop.permute.xlu0 %2816
      %2818 = vrot.lane.b32.xlu0 %v2642, 4
      %v2819 = vpop.permute.xlu0 %2818
      %2820 = vrot.lane.b32.xlu0 %v2645, 4
      %v2821 = vpop.permute.xlu0 %2820
      %2822 = vrot.lane.b32.xlu0 %v2647, 4
      %v2823 = vpop.permute.xlu0 %2822
      %2824 = vrot.lane.b32.xlu0 %v2650, 4
      %v2825 = vpop.permute.xlu0 %2824
      %2826 = vrot.lane.b32.xlu0 %v2652, 4
      %v2827 = vpop.permute.xlu0 %2826
      %2828 = vrot.lane.b32.xlu0 %v2655, 4
      %v2829 = vpop.permute.xlu0 %2828
      %2830 = vrot.lane.b32.xlu0 %v2657, 4
      %v2831 = vpop.permute.xlu0 %2830
      %2832 = vrot.lane.b32.xlu0 %v2660, 4
      %v2833 = vpop.permute.xlu0 %2832
      %2834 = vrot.lane.b32.xlu0 %v2662, 4
      %v2835 = vpop.permute.xlu0 %2834
      %2836 = vrot.lane.b32.xlu0 %v2665, 4
      %v2837 = vpop.permute.xlu0 %2836
      %2838 = vrot.lane.b32.xlu0 %v2667, 4
      %v2839 = vpop.permute.xlu0 %2838
      %2840 = vrot.lane.b32.xlu0 %v2670, 4
      %v2841 = vpop.permute.xlu0 %2840
      %2842 = vrot.lane.b32.xlu0 %v2672, 4
      %v2843 = vpop.permute.xlu0 %2842
      %2844 = vrot.lane.b32.xlu0 %v2675, 4
      %v2845 = vpop.permute.xlu0 %2844
      %2846 = vrot.lane.b32.xlu0 %v2677, 4
      %v2847 = vpop.permute.xlu0 %2846
      %2880 = vrot.lane.b32.xlu0 %v2680, 8
      %v2881 = vpop.permute.xlu0 %2880
      %2882 = vrot.lane.b32.xlu0 %v2682, 8
      %v2883 = vpop.permute.xlu0 %2882
      %2884 = vrot.lane.b32.xlu0 %v2685, 8
      %v2885 = vpop.permute.xlu0 %2884
      %2886 = vrot.lane.b32.xlu0 %v2687, 8
      %v2887 = vpop.permute.xlu0 %2886
      %2888 = vrot.lane.b32.xlu0 %v2690, 8
      %v2889 = vpop.permute.xlu0 %2888
      %2890 = vrot.lane.b32.xlu0 %v2692, 8
      %v2891 = vpop.permute.xlu0 %2890
      %2892 = vrot.lane.b32.xlu0 %v2695, 8
      %v2893 = vpop.permute.xlu0 %2892
      %2894 = vrot.lane.b32.xlu0 %v2697, 8
      %v2895 = vpop.permute.xlu0 %2894
      %2896 = vrot.lane.b32.xlu0 %v2700, 8
      %v2897 = vpop.permute.xlu0 %2896
      %2898 = vrot.lane.b32.xlu0 %v2702, 8
      %v2899 = vpop.permute.xlu0 %2898
      %2900 = vrot.lane.b32.xlu0 %v2705, 8
      %v2901 = vpop.permute.xlu0 %2900
      %2902 = vrot.lane.b32.xlu0 %v2707, 8
      %v2903 = vpop.permute.xlu0 %2902
      %2904 = vrot.lane.b32.xlu0 %v2710, 8
      %v2905 = vpop.permute.xlu0 %2904
      %2906 = vrot.lane.b32.xlu0 %v2712, 8
      %v2907 = vpop.permute.xlu0 %2906
      %2908 = vrot.lane.b32.xlu0 %v2715, 8
      %v2909 = vpop.permute.xlu0 %2908
      %2910 = vrot.lane.b32.xlu0 %v2717, 8
      %v2911 = vpop.permute.xlu0 %2910
      %2912 = vrot.lane.b32.xlu0 %v2720, 8
      %v2913 = vpop.permute.xlu0 %2912
      %2914 = vrot.lane.b32.xlu0 %v2722, 8
      %v2915 = vpop.permute.xlu0 %2914
      %2916 = vrot.lane.b32.xlu0 %v2725, 8
      %v2917 = vpop.permute.xlu0 %2916
      %2918 = vrot.lane.b32.xlu0 %v2727, 8
      %v2919 = vpop.permute.xlu0 %2918
      %2920 = vrot.lane.b32.xlu0 %v2730, 8
      %v2921 = vpop.permute.xlu0 %2920
      %2922 = vrot.lane.b32.xlu0 %v2732, 8
      %v2923 = vpop.permute.xlu0 %2922
      %2924 = vrot.lane.b32.xlu0 %v2735, 8
      %v2925 = vpop.permute.xlu0 %2924
      %2926 = vrot.lane.b32.xlu0 %v2737, 8
      %v2927 = vpop.permute.xlu0 %2926
      %2928 = vrot.lane.b32.xlu0 %v2740, 8
      %v2929 = vpop.permute.xlu0 %2928
      %2930 = vrot.lane.b32.xlu0 %v2742, 8
      %v2931 = vpop.permute.xlu0 %2930
      %2932 = vrot.lane.b32.xlu0 %v2745, 8
      %v2933 = vpop.permute.xlu0 %2932
      %2934 = vrot.lane.b32.xlu0 %v2747, 8
      %v2935 = vpop.permute.xlu0 %2934
      %2936 = vrot.lane.b32.xlu0 %v2750, 8
      %v2937 = vpop.permute.xlu0 %2936
      %2938 = vrot.lane.b32.xlu0 %v2752, 8
      %v2939 = vpop.permute.xlu0 %2938
      %2940 = vrot.lane.b32.xlu0 %v2755, 8
      %v2941 = vpop.permute.xlu0 %2940
      %2942 = vrot.lane.b32.xlu0 %v2757, 8
      %v2943 = vpop.permute.xlu0 %2942
      %2976 = vrot.lane.b32.xlu0 %v2499, 12
      %v2977 = vpop.permute.xlu0 %2976
      %2978 = vrot.lane.b32.xlu0 %v2500, 12
      %v2979 = vpop.permute.xlu0 %2978
      %2980 = vrot.lane.b32.xlu0 %v2502, 12
      %v2981 = vpop.permute.xlu0 %2980
      %2982 = vrot.lane.b32.xlu0 %v2503, 12
      %v2983 = vpop.permute.xlu0 %2982
      %2984 = vrot.lane.b32.xlu0 %v2505, 12
      %v2985 = vpop.permute.xlu0 %2984
      %2986 = vrot.lane.b32.xlu0 %v2506, 12
      %v2987 = vpop.permute.xlu0 %2986
      %2988 = vrot.lane.b32.xlu0 %v2508, 12
      %v2989 = vpop.permute.xlu0 %2988
      %2990 = vrot.lane.b32.xlu0 %v2509, 12
      %v2991 = vpop.permute.xlu0 %2990
      %2992 = vrot.lane.b32.xlu0 %v2511, 12
      %v2993 = vpop.permute.xlu0 %2992
      %2994 = vrot.lane.b32.xlu0 %v2512, 12
      %v2995 = vpop.permute.xlu0 %2994
      %2996 = vrot.lane.b32.xlu0 %v2514, 12
      %v2997 = vpop.permute.xlu0 %2996
      %2998 = vrot.lane.b32.xlu0 %v2515, 12
      %v2999 = vpop.permute.xlu0 %2998
      %3000 = vrot.lane.b32.xlu0 %v2517, 12
      %v3001 = vpop.permute.xlu0 %3000
      %3002 = vrot.lane.b32.xlu0 %v2518, 12
      %v3003 = vpop.permute.xlu0 %3002
      %3004 = vrot.lane.b32.xlu0 %v2520, 12
      %v3005 = vpop.permute.xlu0 %3004
      %3006 = vrot.lane.b32.xlu0 %v2521, 12
      %v3007 = vpop.permute.xlu0 %3006
      %3008 = vrot.lane.b32.xlu0 %v2523, 12
      %v3009 = vpop.permute.xlu0 %3008
      %3010 = vrot.lane.b32.xlu0 %v2524, 12
      %v3011 = vpop.permute.xlu0 %3010
      %3012 = vrot.lane.b32.xlu0 %v2526, 12
      %v3013 = vpop.permute.xlu0 %3012
      %3014 = vrot.lane.b32.xlu0 %v2527, 12
      %v3015 = vpop.permute.xlu0 %3014
      %3016 = vrot.lane.b32.xlu0 %v2529, 12
      %v3017 = vpop.permute.xlu0 %3016
      %3018 = vrot.lane.b32.xlu0 %v2530, 12
      %v3019 = vpop.permute.xlu0 %3018
      %3020 = vrot.lane.b32.xlu0 %v2532, 12
      %v3021 = vpop.permute.xlu0 %3020
      %3022 = vrot.lane.b32.xlu0 %v2533, 12
      %v3023 = vpop.permute.xlu0 %3022
      %3024 = vrot.lane.b32.xlu0 %v2535, 12
      %v3025 = vpop.permute.xlu0 %3024
      %3026 = vrot.lane.b32.xlu0 %v2536, 12
      %v3027 = vpop.permute.xlu0 %3026
      %3028 = vrot.lane.b32.xlu0 %v2538, 12
      %v3029 = vpop.permute.xlu0 %3028
      %3030 = vrot.lane.b32.xlu0 %v2539, 12
      %v3031 = vpop.permute.xlu0 %3030
      %3032 = vrot.lane.b32.xlu0 %v2541, 12
      %v3033 = vpop.permute.xlu0 %3032
      %3034 = vrot.lane.b32.xlu0 %v2542, 12
      %v3035 = vpop.permute.xlu0 %3034
      %3036 = vrot.lane.b32.xlu0 %v2544, 12
      %v3037 = vpop.permute.xlu0 %3036
      %3038 = vrot.lane.b32.xlu0 %v2545, 12
      %v3039 = vpop.permute.xlu0 %3038
      %3072 = vrot.lane.b32.xlu0 %v2605, 16
      %v3073 = vpop.permute.xlu0 %3072
      %3074 = vrot.lane.b32.xlu0 %v2607, 16
      %v3075 = vpop.permute.xlu0 %3074
      %3076 = vrot.lane.b32.xlu0 %v2610, 16
      %v3077 = vpop.permute.xlu0 %3076
      %3078 = vrot.lane.b32.xlu0 %v2612, 16
      %v3079 = vpop.permute.xlu0 %3078
      %3080 = vrot.lane.b32.xlu0 %v2615, 16
      %v3081 = vpop.permute.xlu0 %3080
      %3082 = vrot.lane.b32.xlu0 %v2617, 16
      %v3083 = vpop.permute.xlu0 %3082
      %3084 = vrot.lane.b32.xlu0 %v2620, 16
      %v3085 = vpop.permute.xlu0 %3084
      %3086 = vrot.lane.b32.xlu0 %v2622, 16
      %v3087 = vpop.permute.xlu0 %3086
      %3088 = vrot.lane.b32.xlu0 %v2625, 16
      %v3089 = vpop.permute.xlu0 %3088
      %3090 = vrot.lane.b32.xlu0 %v2627, 16
      %v3091 = vpop.permute.xlu0 %3090
      %3092 = vrot.lane.b32.xlu0 %v2630, 16
      %v3093 = vpop.permute.xlu0 %3092
      %3094 = vrot.lane.b32.xlu0 %v2632, 16
      %v3095 = vpop.permute.xlu0 %3094
      %3096 = vrot.lane.b32.xlu0 %v2635, 16
      %v3097 = vpop.permute.xlu0 %3096
      %3098 = vrot.lane.b32.xlu0 %v2637, 16
      %v3099 = vpop.permute.xlu0 %3098
      %3100 = vrot.lane.b32.xlu0 %v2640, 16
      %v3101 = vpop.permute.xlu0 %3100
      %3102 = vrot.lane.b32.xlu0 %v2642, 16
      %v3103 = vpop.permute.xlu0 %3102
      %3104 = vrot.lane.b32.xlu0 %v2645, 16
      %v3105 = vpop.permute.xlu0 %3104
      %3106 = vrot.lane.b32.xlu0 %v2647, 16
      %v3107 = vpop.permute.xlu0 %3106
      %3108 = vrot.lane.b32.xlu0 %v2650, 16
      %v3109 = vpop.permute.xlu0 %3108
      %3110 = vrot.lane.b32.xlu0 %v2652, 16
      %v3111 = vpop.permute.xlu0 %3110
      %3112 = vrot.lane.b32.xlu0 %v2655, 16
      %v3113 = vpop.permute.xlu0 %3112
      %3114 = vrot.lane.b32.xlu0 %v2657, 16
      %v3115 = vpop.permute.xlu0 %3114
      %3116 = vrot.lane.b32.xlu0 %v2660, 16
      %v3117 = vpop.permute.xlu0 %3116
      %3118 = vrot.lane.b32.xlu0 %v2662, 16
      %v3119 = vpop.permute.xlu0 %3118
      %3120 = vrot.lane.b32.xlu0 %v2665, 16
      %v3121 = vpop.permute.xlu0 %3120
      %3122 = vrot.lane.b32.xlu0 %v2667, 16
      %v3123 = vpop.permute.xlu0 %3122
      %3124 = vrot.lane.b32.xlu0 %v2670, 16
      %v3125 = vpop.permute.xlu0 %3124
      %3126 = vrot.lane.b32.xlu0 %v2672, 16
      %v3127 = vpop.permute.xlu0 %3126
      %3128 = vrot.lane.b32.xlu0 %v2675, 16
      %v3129 = vpop.permute.xlu0 %3128
      %3130 = vrot.lane.b32.xlu0 %v2677, 16
      %v3131 = vpop.permute.xlu0 %3130
      %3132 = vrot.lane.b32.xlu0 %v2763, 16
      %v3133 = vpop.permute.xlu0 %3132
      %3134 = vrot.lane.b32.xlu0 %v2765, 16
      %v3135 = vpop.permute.xlu0 %3134
      %3168 = vrot.lane.b32.xlu0 %v2685, 20
      %v3169 = vpop.permute.xlu0 %3168
      %3170 = vrot.lane.b32.xlu0 %v2687, 20
      %v3171 = vpop.permute.xlu0 %3170
      %3172 = vrot.lane.b32.xlu0 %v2690, 20
      %v3173 = vpop.permute.xlu0 %3172
      %3174 = vrot.lane.b32.xlu0 %v2692, 20
      %v3175 = vpop.permute.xlu0 %3174
      %3176 = vrot.lane.b32.xlu0 %v2695, 20
      %v3177 = vpop.permute.xlu0 %3176
      %3178 = vrot.lane.b32.xlu0 %v2697, 20
      %v3179 = vpop.permute.xlu0 %3178
      %3180 = vrot.lane.b32.xlu0 %v2700, 20
      %v3181 = vpop.permute.xlu0 %3180
      %3182 = vrot.lane.b32.xlu0 %v2702, 20
      %v3183 = vpop.permute.xlu0 %3182
      %3184 = vrot.lane.b32.xlu0 %v2705, 20
      %v3185 = vpop.permute.xlu0 %3184
      %3186 = vrot.lane.b32.xlu0 %v2707, 20
      %v3187 = vpop.permute.xlu0 %3186
      %3188 = vrot.lane.b32.xlu0 %v2710, 20
      %v3189 = vpop.permute.xlu0 %3188
      %3190 = vrot.lane.b32.xlu0 %v2712, 20
      %v3191 = vpop.permute.xlu0 %3190
      %3192 = vrot.lane.b32.xlu0 %v2715, 20
      %v3193 = vpop.permute.xlu0 %3192
      %3194 = vrot.lane.b32.xlu0 %v2717, 20
      %v3195 = vpop.permute.xlu0 %3194
      %3196 = vrot.lane.b32.xlu0 %v2720, 20
      %v3197 = vpop.permute.xlu0 %3196
      %3198 = vrot.lane.b32.xlu0 %v2722, 20
      %v3199 = vpop.permute.xlu0 %3198
      %3200 = vrot.lane.b32.xlu0 %v2725, 20
      %v3201 = vpop.permute.xlu0 %3200
      %3202 = vrot.lane.b32.xlu0 %v2727, 20
      %v3203 = vpop.permute.xlu0 %3202
      %3204 = vrot.lane.b32.xlu0 %v2730, 20
      %v3205 = vpop.permute.xlu0 %3204
      %3206 = vrot.lane.b32.xlu0 %v2732, 20
      %v3207 = vpop.permute.xlu0 %3206
      %3208 = vrot.lane.b32.xlu0 %v2735, 20
      %v3209 = vpop.permute.xlu0 %3208
      %3210 = vrot.lane.b32.xlu0 %v2737, 20
      %v3211 = vpop.permute.xlu0 %3210
      %3212 = vrot.lane.b32.xlu0 %v2740, 20
      %v3213 = vpop.permute.xlu0 %3212
      %3214 = vrot.lane.b32.xlu0 %v2742, 20
      %v3215 = vpop.permute.xlu0 %3214
      %3216 = vrot.lane.b32.xlu0 %v2745, 20
      %v3217 = vpop.permute.xlu0 %3216
      %3218 = vrot.lane.b32.xlu0 %v2747, 20
      %v3219 = vpop.permute.xlu0 %3218
      %3220 = vrot.lane.b32.xlu0 %v2750, 20
      %v3221 = vpop.permute.xlu0 %3220
      %3222 = vrot.lane.b32.xlu0 %v2752, 20
      %v3223 = vpop.permute.xlu0 %3222
      %3224 = vrot.lane.b32.xlu0 %v2755, 20
      %v3225 = vpop.permute.xlu0 %3224
      %3226 = vrot.lane.b32.xlu0 %v2757, 20
      %v3227 = vpop.permute.xlu0 %3226
      %3228 = vrot.lane.b32.xlu0 %v2768, 20
      %v3229 = vpop.permute.xlu0 %3228
      %3230 = vrot.lane.b32.xlu0 %v2770, 20
      %v3231 = vpop.permute.xlu0 %3230
      %3264 = vrot.lane.b32.xlu0 %v2502, 24
      %v3265 = vpop.permute.xlu0 %3264
      %3266 = vrot.lane.b32.xlu0 %v2503, 24
      %v3267 = vpop.permute.xlu0 %3266
      %3268 = vrot.lane.b32.xlu0 %v2505, 24
      %v3269 = vpop.permute.xlu0 %3268
      %3270 = vrot.lane.b32.xlu0 %v2506, 24
      %v3271 = vpop.permute.xlu0 %3270
      %3272 = vrot.lane.b32.xlu0 %v2508, 24
      %v3273 = vpop.permute.xlu0 %3272
      %3274 = vrot.lane.b32.xlu0 %v2509, 24
      %v3275 = vpop.permute.xlu0 %3274
      %3276 = vrot.lane.b32.xlu0 %v2511, 24
      %v3277 = vpop.permute.xlu0 %3276
      %3278 = vrot.lane.b32.xlu0 %v2512, 24
      %v3279 = vpop.permute.xlu0 %3278
      %3280 = vrot.lane.b32.xlu0 %v2514, 24
      %v3281 = vpop.permute.xlu0 %3280
      %3282 = vrot.lane.b32.xlu0 %v2515, 24
      %v3283 = vpop.permute.xlu0 %3282
      %3284 = vrot.lane.b32.xlu0 %v2517, 24
      %v3285 = vpop.permute.xlu0 %3284
      %3286 = vrot.lane.b32.xlu0 %v2518, 24
      %v3287 = vpop.permute.xlu0 %3286
      %3288 = vrot.lane.b32.xlu0 %v2520, 24
      %v3289 = vpop.permute.xlu0 %3288
      %3290 = vrot.lane.b32.xlu0 %v2521, 24
      %v3291 = vpop.permute.xlu0 %3290
      %3292 = vrot.lane.b32.xlu0 %v2523, 24
      %v3293 = vpop.permute.xlu0 %3292
      %3294 = vrot.lane.b32.xlu0 %v2524, 24
      %v3295 = vpop.permute.xlu0 %3294
      %3296 = vrot.lane.b32.xlu0 %v2526, 24
      %v3297 = vpop.permute.xlu0 %3296
      %3298 = vrot.lane.b32.xlu0 %v2527, 24
      %v3299 = vpop.permute.xlu0 %3298
      %3300 = vrot.lane.b32.xlu0 %v2529, 24
      %v3301 = vpop.permute.xlu0 %3300
      %3302 = vrot.lane.b32.xlu0 %v2530, 24
      %v3303 = vpop.permute.xlu0 %3302
      %3304 = vrot.lane.b32.xlu0 %v2532, 24
      %v3305 = vpop.permute.xlu0 %3304
      %3306 = vrot.lane.b32.xlu0 %v2533, 24
      %v3307 = vpop.permute.xlu0 %3306
      %3308 = vrot.lane.b32.xlu0 %v2535, 24
      %v3309 = vpop.permute.xlu0 %3308
      %3310 = vrot.lane.b32.xlu0 %v2536, 24
      %v3311 = vpop.permute.xlu0 %3310
      %3312 = vrot.lane.b32.xlu0 %v2538, 24
      %v3313 = vpop.permute.xlu0 %3312
      %3314 = vrot.lane.b32.xlu0 %v2539, 24
      %v3315 = vpop.permute.xlu0 %3314
      %3316 = vrot.lane.b32.xlu0 %v2541, 24
      %v3317 = vpop.permute.xlu0 %3316
      %3318 = vrot.lane.b32.xlu0 %v2542, 24
      %v3319 = vpop.permute.xlu0 %3318
      %3320 = vrot.lane.b32.xlu0 %v2544, 24
      %v3321 = vpop.permute.xlu0 %3320
      %3322 = vrot.lane.b32.xlu0 %v2545, 24
      %v3323 = vpop.permute.xlu0 %3322
      %3324 = vrot.lane.b32.xlu0 %v2547, 24
      %v3325 = vpop.permute.xlu0 %3324
      %3326 = vrot.lane.b32.xlu0 %v2548, 24
      %v3327 = vpop.permute.xlu0 %3326
      %3360 = vrot.lane.b32.xlu0 %v2610, 28
      %v3361 = vpop.permute.xlu0 %3360
      %3362 = vrot.lane.b32.xlu0 %v2612, 28
      %v3363 = vpop.permute.xlu0 %3362
      %3364 = vrot.lane.b32.xlu0 %v2615, 28
      %v3365 = vpop.permute.xlu0 %3364
      %3366 = vrot.lane.b32.xlu0 %v2617, 28
      %v3367 = vpop.permute.xlu0 %3366
      %3368 = vrot.lane.b32.xlu0 %v2620, 28
      %v3369 = vpop.permute.xlu0 %3368
      %3370 = vrot.lane.b32.xlu0 %v2622, 28
      %v3371 = vpop.permute.xlu0 %3370
      %3372 = vrot.lane.b32.xlu0 %v2625, 28
      %v3373 = vpop.permute.xlu0 %3372
      %3374 = vrot.lane.b32.xlu0 %v2627, 28
      %v3375 = vpop.permute.xlu0 %3374
      %3376 = vrot.lane.b32.xlu0 %v2630, 28
      %v3377 = vpop.permute.xlu0 %3376
      %3378 = vrot.lane.b32.xlu0 %v2632, 28
      %v3379 = vpop.permute.xlu0 %3378
      %3380 = vrot.lane.b32.xlu0 %v2635, 28
      %v3381 = vpop.permute.xlu0 %3380
      %3382 = vrot.lane.b32.xlu0 %v2637, 28
      %v3383 = vpop.permute.xlu0 %3382
      %3384 = vrot.lane.b32.xlu0 %v2640, 28
      %v3385 = vpop.permute.xlu0 %3384
      %3386 = vrot.lane.b32.xlu0 %v2642, 28
      %v3387 = vpop.permute.xlu0 %3386
      %3388 = vrot.lane.b32.xlu0 %v2645, 28
      %v3389 = vpop.permute.xlu0 %3388
      %3390 = vrot.lane.b32.xlu0 %v2647, 28
      %v3391 = vpop.permute.xlu0 %3390
      %3392 = vrot.lane.b32.xlu0 %v2650, 28
      %v3393 = vpop.permute.xlu0 %3392
      %3394 = vrot.lane.b32.xlu0 %v2652, 28
      %v3395 = vpop.permute.xlu0 %3394
      %3396 = vrot.lane.b32.xlu0 %v2655, 28
      %v3397 = vpop.permute.xlu0 %3396
      %3398 = vrot.lane.b32.xlu0 %v2657, 28
      %v3399 = vpop.permute.xlu0 %3398
      %3400 = vrot.lane.b32.xlu0 %v2660, 28
      %v3401 = vpop.permute.xlu0 %3400
      %3402 = vrot.lane.b32.xlu0 %v2662, 28
      %v3403 = vpop.permute.xlu0 %3402
      %3404 = vrot.lane.b32.xlu0 %v2665, 28
      %v3405 = vpop.permute.xlu0 %3404
      %3406 = vrot.lane.b32.xlu0 %v2667, 28
      %v3407 = vpop.permute.xlu0 %3406
      %3408 = vrot.lane.b32.xlu0 %v2670, 28
      %v3409 = vpop.permute.xlu0 %3408
      %3410 = vrot.lane.b32.xlu0 %v2672, 28
      %v3411 = vpop.permute.xlu0 %3410
      %3412 = vrot.lane.b32.xlu0 %v2675, 28
      %v3413 = vpop.permute.xlu0 %3412
      %3414 = vrot.lane.b32.xlu0 %v2677, 28
      %v3415 = vpop.permute.xlu0 %3414
      %3416 = vrot.lane.b32.xlu0 %v2763, 28
      %v3417 = vpop.permute.xlu0 %3416
      %3418 = vrot.lane.b32.xlu0 %v2765, 28
      %v3419 = vpop.permute.xlu0 %3418
      %3420 = vrot.lane.b32.xlu0 %v2776, 28
      %v3421 = vpop.permute.xlu0 %3420
      %3422 = vrot.lane.b32.xlu0 %v2778, 28
      %v3423 = vpop.permute.xlu0 %3422
      %3456 = vrot.lane.b32.xlu0 %v2690, 32
      %v3457 = vpop.permute.xlu0 %3456
      %3458 = vrot.lane.b32.xlu0 %v2692, 32
      %v3459 = vpop.permute.xlu0 %3458
      %3460 = vrot.lane.b32.xlu0 %v2695, 32
      %v3461 = vpop.permute.xlu0 %3460
      %3462 = vrot.lane.b32.xlu0 %v2697, 32
      %v3463 = vpop.permute.xlu0 %3462
      %3464 = vrot.lane.b32.xlu0 %v2700, 32
      %v3465 = vpop.permute.xlu0 %3464
      %3466 = vrot.lane.b32.xlu0 %v2702, 32
      %v3467 = vpop.permute.xlu0 %3466
      %3468 = vrot.lane.b32.xlu0 %v2705, 32
      %v3469 = vpop.permute.xlu0 %3468
      %3470 = vrot.lane.b32.xlu0 %v2707, 32
      %v3471 = vpop.permute.xlu0 %3470
      %3472 = vrot.lane.b32.xlu0 %v2710, 32
      %v3473 = vpop.permute.xlu0 %3472
      %3474 = vrot.lane.b32.xlu0 %v2712, 32
      %v3475 = vpop.permute.xlu0 %3474
      %3476 = vrot.lane.b32.xlu0 %v2715, 32
      %v3477 = vpop.permute.xlu0 %3476
      %3478 = vrot.lane.b32.xlu0 %v2717, 32
      %v3479 = vpop.permute.xlu0 %3478
      %3480 = vrot.lane.b32.xlu0 %v2720, 32
      %v3481 = vpop.permute.xlu0 %3480
      %3482 = vrot.lane.b32.xlu0 %v2722, 32
      %v3483 = vpop.permute.xlu0 %3482
      %3484 = vrot.lane.b32.xlu0 %v2725, 32
      %v3485 = vpop.permute.xlu0 %3484
      %3486 = vrot.lane.b32.xlu0 %v2727, 32
      %v3487 = vpop.permute.xlu0 %3486
      %3488 = vrot.lane.b32.xlu0 %v2730, 32
      %v3489 = vpop.permute.xlu0 %3488
      %3490 = vrot.lane.b32.xlu0 %v2732, 32
      %v3491 = vpop.permute.xlu0 %3490
      %3492 = vrot.lane.b32.xlu0 %v2735, 32
      %v3493 = vpop.permute.xlu0 %3492
      %3494 = vrot.lane.b32.xlu0 %v2737, 32
      %v3495 = vpop.permute.xlu0 %3494
      %3496 = vrot.lane.b32.xlu0 %v2740, 32
      %v3497 = vpop.permute.xlu0 %3496
      %3498 = vrot.lane.b32.xlu0 %v2742, 32
      %v3499 = vpop.permute.xlu0 %3498
      %3500 = vrot.lane.b32.xlu0 %v2745, 32
      %v3501 = vpop.permute.xlu0 %3500
      %3502 = vrot.lane.b32.xlu0 %v2747, 32
      %v3503 = vpop.permute.xlu0 %3502
      %3504 = vrot.lane.b32.xlu0 %v2750, 32
      %v3505 = vpop.permute.xlu0 %3504
      %3506 = vrot.lane.b32.xlu0 %v2752, 32
      %v3507 = vpop.permute.xlu0 %3506
      %3508 = vrot.lane.b32.xlu0 %v2755, 32
      %v3509 = vpop.permute.xlu0 %3508
      %3510 = vrot.lane.b32.xlu0 %v2757, 32
      %v3511 = vpop.permute.xlu0 %3510
      %3512 = vrot.lane.b32.xlu0 %v2768, 32
      %v3513 = vpop.permute.xlu0 %3512
      %3514 = vrot.lane.b32.xlu0 %v2770, 32
      %v3515 = vpop.permute.xlu0 %3514
      %3516 = vrot.lane.b32.xlu0 %v2781, 32
      %v3517 = vpop.permute.xlu0 %3516
      %3518 = vrot.lane.b32.xlu0 %v2783, 32
      %v3519 = vpop.permute.xlu0 %3518
      %v3552 = vsel %vm365, %v2496, %v2785
      %v3553 = vsel %vm365, %v2497, %v2787
      %v3554 = vsel %vm365, %v2499, %v2789
      %v3555 = vsel %vm365, %v2500, %v2791
      %v3556 = vsel %vm365, %v2502, %v2793
      %v3557 = vsel %vm365, %v2503, %v2795
      %v3558 = vsel %vm365, %v2505, %v2797
      %v3559 = vsel %vm365, %v2506, %v2799
      %v3560 = vsel %vm365, %v2508, %v2801
      %v3561 = vsel %vm365, %v2509, %v2803
      %v3562 = vsel %vm365, %v2511, %v2805
      %v3563 = vsel %vm365, %v2512, %v2807
      %v3564 = vsel %vm365, %v2514, %v2809
      %v3565 = vsel %vm365, %v2515, %v2811
      %v3566 = vsel %vm365, %v2517, %v2813
      %v3567 = vsel %vm365, %v2518, %v2815
      %v3568 = vsel %vm365, %v2520, %v2817
      %v3569 = vsel %vm365, %v2521, %v2819
      %v3570 = vsel %vm365, %v2523, %v2821
      %v3571 = vsel %vm365, %v2524, %v2823
      %v3572 = vsel %vm365, %v2526, %v2825
      %v3573 = vsel %vm365, %v2527, %v2827
      %v3574 = vsel %vm365, %v2529, %v2829
      %v3575 = vsel %vm365, %v2530, %v2831
      %v3576 = vsel %vm365, %v2532, %v2833
      %v3577 = vsel %vm365, %v2533, %v2835
      %v3578 = vsel %vm365, %v2535, %v2837
      %v3579 = vsel %vm365, %v2536, %v2839
      %v3580 = vsel %vm365, %v2538, %v2841
      %v3581 = vsel %vm365, %v2539, %v2843
      %v3582 = vsel %vm365, %v2541, %v2845
      %v3583 = vsel %vm365, %v2542, %v2847
      %v3584 = vsel %vm1544, %v3552, %v2881
      %v3585 = vsel %vm1544, %v3553, %v2883
      %v3586 = vsel %vm1544, %v3554, %v2885
      %v3587 = vsel %vm1544, %v3555, %v2887
      %v3588 = vsel %vm1544, %v3556, %v2889
      %v3589 = vsel %vm1544, %v3557, %v2891
      %v3590 = vsel %vm1544, %v3558, %v2893
      %v3591 = vsel %vm1544, %v3559, %v2895
      %v3592 = vsel %vm1544, %v3560, %v2897
      %v3593 = vsel %vm1544, %v3561, %v2899
      %v3594 = vsel %vm1544, %v3562, %v2901
      %v3595 = vsel %vm1544, %v3563, %v2903
      %v3596 = vsel %vm1544, %v3564, %v2905
      %v3597 = vsel %vm1544, %v3565, %v2907
      %v3598 = vsel %vm1544, %v3566, %v2909
      %v3599 = vsel %vm1544, %v3567, %v2911
      %v3600 = vsel %vm1544, %v3568, %v2913
      %v3601 = vsel %vm1544, %v3569, %v2915
      %v3602 = vsel %vm1544, %v3570, %v2917
      %v3603 = vsel %vm1544, %v3571, %v2919
      %v3604 = vsel %vm1544, %v3572, %v2921
      %v3605 = vsel %vm1544, %v3573, %v2923
      %v3606 = vsel %vm1544, %v3574, %v2925
      %v3607 = vsel %vm1544, %v3575, %v2927
      %v3608 = vsel %vm1544, %v3576, %v2929
      %v3609 = vsel %vm1544, %v3577, %v2931
      %v3610 = vsel %vm1544, %v3578, %v2933
      %v3611 = vsel %vm1544, %v3579, %v2935
      %v3612 = vsel %vm1544, %v3580, %v2937
      %v3613 = vsel %vm1544, %v3581, %v2939
      %v3614 = vsel %vm1544, %v3582, %v2941
      %v3615 = vsel %vm1544, %v3583, %v2943
      %v3616 = vsel %vm1577, %v3584, %v2977
      %v3617 = vsel %vm1577, %v3585, %v2979
      %v3618 = vsel %vm1577, %v3586, %v2981
      %v3619 = vsel %vm1577, %v3587, %v2983
      %v3620 = vsel %vm1577, %v3588, %v2985
      %v3621 = vsel %vm1577, %v3589, %v2987
      %v3622 = vsel %vm1577, %v3590, %v2989
      %v3623 = vsel %vm1577, %v3591, %v2991
      %v3624 = vsel %vm1577, %v3592, %v2993
      %v3625 = vsel %vm1577, %v3593, %v2995
      %v3626 = vsel %vm1577, %v3594, %v2997
      %v3627 = vsel %vm1577, %v3595, %v2999
      %v3628 = vsel %vm1577, %v3596, %v3001
      %v3629 = vsel %vm1577, %v3597, %v3003
      %v3630 = vsel %vm1577, %v3598, %v3005
      %v3631 = vsel %vm1577, %v3599, %v3007
      %v3632 = vsel %vm1577, %v3600, %v3009
      %v3633 = vsel %vm1577, %v3601, %v3011
      %v3634 = vsel %vm1577, %v3602, %v3013
      %v3635 = vsel %vm1577, %v3603, %v3015
      %v3636 = vsel %vm1577, %v3604, %v3017
      %v3637 = vsel %vm1577, %v3605, %v3019
      %v3638 = vsel %vm1577, %v3606, %v3021
      %v3639 = vsel %vm1577, %v3607, %v3023
      %v3640 = vsel %vm1577, %v3608, %v3025
      %v3641 = vsel %vm1577, %v3609, %v3027
      %v3642 = vsel %vm1577, %v3610, %v3029
      %v3643 = vsel %vm1577, %v3611, %v3031
      %v3644 = vsel %vm1577, %v3612, %v3033
      %v3645 = vsel %vm1577, %v3613, %v3035
      %v3646 = vsel %vm1577, %v3614, %v3037
      %v3647 = vsel %vm1577, %v3615, %v3039
      %v3648 = vsel %vm1610, %v3616, %v3073
      %v3649 = vsel %vm1610, %v3617, %v3075
      %v3650 = vsel %vm1610, %v3618, %v3077
      %v3651 = vsel %vm1610, %v3619, %v3079
      %v3652 = vsel %vm1610, %v3620, %v3081
      %v3653 = vsel %vm1610, %v3621, %v3083
      %v3654 = vsel %vm1610, %v3622, %v3085
      %v3655 = vsel %vm1610, %v3623, %v3087
      %v3656 = vsel %vm1610, %v3624, %v3089
      %v3657 = vsel %vm1610, %v3625, %v3091
      %v3658 = vsel %vm1610, %v3626, %v3093
      %v3659 = vsel %vm1610, %v3627, %v3095
      %v3660 = vsel %vm1610, %v3628, %v3097
      %v3661 = vsel %vm1610, %v3629, %v3099
      %v3662 = vsel %vm1610, %v3630, %v3101
      %v3663 = vsel %vm1610, %v3631, %v3103
      %v3664 = vsel %vm1610, %v3632, %v3105
      %v3665 = vsel %vm1610, %v3633, %v3107
      %v3666 = vsel %vm1610, %v3634, %v3109
      %v3667 = vsel %vm1610, %v3635, %v3111
      %v3668 = vsel %vm1610, %v3636, %v3113
      %v3669 = vsel %vm1610, %v3637, %v3115
      %v3670 = vsel %vm1610, %v3638, %v3117
      %v3671 = vsel %vm1610, %v3639, %v3119
      %v3672 = vsel %vm1610, %v3640, %v3121
      %v3673 = vsel %vm1610, %v3641, %v3123
      %v3674 = vsel %vm1610, %v3642, %v3125
      %v3675 = vsel %vm1610, %v3643, %v3127
      %v3676 = vsel %vm1610, %v3644, %v3129
      %v3677 = vsel %vm1610, %v3645, %v3131
      %v3678 = vsel %vm1610, %v3646, %v3133
      %v3679 = vsel %vm1610, %v3647, %v3135
      %v3680 = vsel %vm1643, %v3648, %v3169
      %v3681 = vsel %vm1643, %v3649, %v3171
      %v3682 = vsel %vm1643, %v3650, %v3173
      %v3683 = vsel %vm1643, %v3651, %v3175
      %v3684 = vsel %vm1643, %v3652, %v3177
      %v3685 = vsel %vm1643, %v3653, %v3179
      %v3686 = vsel %vm1643, %v3654, %v3181
      %v3687 = vsel %vm1643, %v3655, %v3183
      %v3688 = vsel %vm1643, %v3656, %v3185
      %v3689 = vsel %vm1643, %v3657, %v3187
      %v3690 = vsel %vm1643, %v3658, %v3189
      %v3691 = vsel %vm1643, %v3659, %v3191
      %v3692 = vsel %vm1643, %v3660, %v3193
      %v3693 = vsel %vm1643, %v3661, %v3195
      %v3694 = vsel %vm1643, %v3662, %v3197
      %v3695 = vsel %vm1643, %v3663, %v3199
      %v3696 = vsel %vm1643, %v3664, %v3201
      %v3697 = vsel %vm1643, %v3665, %v3203
      %v3698 = vsel %vm1643, %v3666, %v3205
      %v3699 = vsel %vm1643, %v3667, %v3207
      %v3700 = vsel %vm1643, %v3668, %v3209
      %v3701 = vsel %vm1643, %v3669, %v3211
      %v3702 = vsel %vm1643, %v3670, %v3213
      %v3703 = vsel %vm1643, %v3671, %v3215
      %v3704 = vsel %vm1643, %v3672, %v3217
      %v3705 = vsel %vm1643, %v3673, %v3219
      %v3706 = vsel %vm1643, %v3674, %v3221
      %v3707 = vsel %vm1643, %v3675, %v3223
      %v3708 = vsel %vm1643, %v3676, %v3225
      %v3709 = vsel %vm1643, %v3677, %v3227
      %v3710 = vsel %vm1643, %v3678, %v3229
      %v3711 = vsel %vm1643, %v3679, %v3231
      %v3712 = vsel %vm1676, %v3680, %v3265
      %v3713 = vsel %vm1676, %v3681, %v3267
      %v3714 = vsel %vm1676, %v3682, %v3269
      %v3715 = vsel %vm1676, %v3683, %v3271
      %v3716 = vsel %vm1676, %v3684, %v3273
      %v3717 = vsel %vm1676, %v3685, %v3275
      %v3718 = vsel %vm1676, %v3686, %v3277
      %v3719 = vsel %vm1676, %v3687, %v3279
      %v3720 = vsel %vm1676, %v3688, %v3281
      %v3721 = vsel %vm1676, %v3689, %v3283
      %v3722 = vsel %vm1676, %v3690, %v3285
      %v3723 = vsel %vm1676, %v3691, %v3287
      %v3724 = vsel %vm1676, %v3692, %v3289
      %v3725 = vsel %vm1676, %v3693, %v3291
      %v3726 = vsel %vm1676, %v3694, %v3293
      %v3727 = vsel %vm1676, %v3695, %v3295
      %v3728 = vsel %vm1676, %v3696, %v3297
      %v3729 = vsel %vm1676, %v3697, %v3299
      %v3730 = vsel %vm1676, %v3698, %v3301
      %v3731 = vsel %vm1676, %v3699, %v3303
      %v3732 = vsel %vm1676, %v3700, %v3305
      %v3733 = vsel %vm1676, %v3701, %v3307
      %v3734 = vsel %vm1676, %v3702, %v3309
      %v3735 = vsel %vm1676, %v3703, %v3311
      %v3736 = vsel %vm1676, %v3704, %v3313
      %v3737 = vsel %vm1676, %v3705, %v3315
      %v3738 = vsel %vm1676, %v3706, %v3317
      %v3739 = vsel %vm1676, %v3707, %v3319
      %v3740 = vsel %vm1676, %v3708, %v3321
      %v3741 = vsel %vm1676, %v3709, %v3323
      %v3742 = vsel %vm1676, %v3710, %v3325
      %v3743 = vsel %vm1676, %v3711, %v3327
      %v3744 = vsel %vm1709, %v3712, %v3361
      %v3745 = vsel %vm1709, %v3713, %v3363
      %v3746 = vsel %vm1709, %v3714, %v3365
      %v3747 = vsel %vm1709, %v3715, %v3367
      %v3748 = vsel %vm1709, %v3716, %v3369
      %v3749 = vsel %vm1709, %v3717, %v3371
      %v3750 = vsel %vm1709, %v3718, %v3373
      %v3751 = vsel %vm1709, %v3719, %v3375
      %v3752 = vsel %vm1709, %v3720, %v3377
      %v3753 = vsel %vm1709, %v3721, %v3379
      %v3754 = vsel %vm1709, %v3722, %v3381
      %v3755 = vsel %vm1709, %v3723, %v3383
      %v3756 = vsel %vm1709, %v3724, %v3385
      %v3757 = vsel %vm1709, %v3725, %v3387
      %v3758 = vsel %vm1709, %v3726, %v3389
      %v3759 = vsel %vm1709, %v3727, %v3391
      %v3760 = vsel %vm1709, %v3728, %v3393
      %v3761 = vsel %vm1709, %v3729, %v3395
      %v3762 = vsel %vm1709, %v3730, %v3397
      %v3763 = vsel %vm1709, %v3731, %v3399
      %v3764 = vsel %vm1709, %v3732, %v3401
      %v3765 = vsel %vm1709, %v3733, %v3403
      %v3766 = vsel %vm1709, %v3734, %v3405
      %v3767 = vsel %vm1709, %v3735, %v3407
      %v3768 = vsel %vm1709, %v3736, %v3409
      %v3769 = vsel %vm1709, %v3737, %v3411
      %v3770 = vsel %vm1709, %v3738, %v3413
      %v3771 = vsel %vm1709, %v3739, %v3415
      %v3772 = vsel %vm1709, %v3740, %v3417
      %v3773 = vsel %vm1709, %v3741, %v3419
      %v3774 = vsel %vm1709, %v3742, %v3421
      %v3775 = vsel %vm1709, %v3743, %v3423
      %v3776 = vsel %vm1742, %v3744, %v3457
      %v3777 = vsel %vm1742, %v3745, %v3459
      %v3778 = vsel %vm1742, %v3746, %v3461
      %v3779 = vsel %vm1742, %v3747, %v3463
      %v3780 = vsel %vm1742, %v3748, %v3465
      %v3781 = vsel %vm1742, %v3749, %v3467
      %v3782 = vsel %vm1742, %v3750, %v3469
      %v3783 = vsel %vm1742, %v3751, %v3471
      %v3784 = vsel %vm1742, %v3752, %v3473
      %v3785 = vsel %vm1742, %v3753, %v3475
      %v3786 = vsel %vm1742, %v3754, %v3477
      %v3787 = vsel %vm1742, %v3755, %v3479
      %v3788 = vsel %vm1742, %v3756, %v3481
      %v3789 = vsel %vm1742, %v3757, %v3483
      %v3790 = vsel %vm1742, %v3758, %v3485
      %v3791 = vsel %vm1742, %v3759, %v3487
      %v3792 = vsel %vm1742, %v3760, %v3489
      %v3793 = vsel %vm1742, %v3761, %v3491
      %v3794 = vsel %vm1742, %v3762, %v3493
      %v3795 = vsel %vm1742, %v3763, %v3495
      %v3796 = vsel %vm1742, %v3764, %v3497
      %v3797 = vsel %vm1742, %v3765, %v3499
      %v3798 = vsel %vm1742, %v3766, %v3501
      %v3799 = vsel %vm1742, %v3767, %v3503
      %v3800 = vsel %vm1742, %v3768, %v3505
      %v3801 = vsel %vm1742, %v3769, %v3507
      %v3802 = vsel %vm1742, %v3770, %v3509
      %v3803 = vsel %vm1742, %v3771, %v3511
      %v3804 = vsel %vm1742, %v3772, %v3513
      %v3805 = vsel %vm1742, %v3773, %v3515
      %v3806 = vsel %vm1742, %v3774, %v3517
      %v3807 = vsel %vm1742, %v3775, %v3519
      %v3808 = vld [vmem:[%s5] sm:$0xff]
      %v3809 = vld [vmem:[%s5 + $0x8] sm:$0xff]
      %v3810 = vld [vmem:[%s5 + $0x10] sm:$0xff]
      %v3811 = vld [vmem:[%s5 + $0x18] sm:$0xff]
      %v3812 = vld [vmem:[%s5 + $0x20] sm:$0xf]
      %v3813 = vld [vmem:[%s6] sm:$0x1]
      %v3815 = vlaneseq
      %v3816 = vshrl.u32 %v3815, 7
      %v3817 = vsub.s32 0, %v3816
      %v3818 = vrot.slane %v3813, %v3817
      %v3821 = vsel %vm1787, %v3776, 0
      %v3824 = vsel %vm1787, %v3777, 0
      %v3827 = vsel %vm1787, %v3778, 0
      %v3830 = vsel %vm1787, %v3779, 0
      %v3833 = vsel %vm1787, %v3780, 0
      %v3836 = vsel %vm1787, %v3781, 0
      %v3839 = vsel %vm1787, %v3782, 0
      %v3842 = vsel %vm1787, %v3783, 0
      %v3845 = vsel %vm1787, %v3784, 0
      %v3848 = vsel %vm1787, %v3785, 0
      %v3851 = vsel %vm1787, %v3786, 0
      %v3854 = vsel %vm1787, %v3787, 0
      %v3857 = vsel %vm1787, %v3788, 0
      %v3860 = vsel %vm1787, %v3789, 0
      %v3863 = vsel %vm1787, %v3790, 0
      %v3866 = vsel %vm1787, %v3791, 0
      %v3869 = vsel %vm1787, %v3792, 0
      %v3872 = vsel %vm1787, %v3793, 0
      %v3875 = vsel %vm1787, %v3794, 0
      %v3878 = vsel %vm1787, %v3795, 0
      %v3881 = vsel %vm1787, %v3796, 0
      %v3884 = vsel %vm1787, %v3797, 0
      %v3887 = vsel %vm1787, %v3798, 0
      %v3890 = vsel %vm1787, %v3799, 0
      %v3893 = vsel %vm1787, %v3800, 0
      %v3896 = vsel %vm1787, %v3801, 0
      %v3899 = vsel %vm1787, %v3802, 0
      %v3902 = vsel %vm1787, %v3803, 0
      %v3905 = vsel %vm1787, %v3804, 0
      %v3908 = vsel %vm1787, %v3805, 0
      %v3911 = vsel %vm1787, %v3806, 0
      %v3914 = vsel %vm1787, %v3807, 0
      %v3917 = vsel %vm1884, %v3812, 0
      %3919 = vmatprep.subr.mxu0 0.0
      %3920 = vmatpush1.msra.mxu0 0.0
      %3921 = vmatprep.subr.mxu0 0.0
      %3922 = vmatpush1.msra.mxu0 0.0
      %3923 = vmatprep.subr.mxu0 0.0
      %3924 = vmatpush1.msra.mxu0 0.0
      %3925 = vmatprep.subr.mxu0 0.0
      %3926 = vmatpush1.msra.mxu0 0.0
      %3927 = vmatprep.subr.mxu0 0.0
      %3928 = vmatpush1.msra.mxu0 0.0
      %3929 = vmatprep.subr.mxu0 0.0
      %3930 = vmatpush1.msra.mxu0 0.0
      %3931 = vmatprep.subr.mxu0 0.0
      %3932 = vmatpush1.msra.mxu0 0.0
      %3933 = vmatprep.subr.mxu0 0.0
      %3934 = vmatpush1.msra.mxu0 0.0
      %3935 = vmatprep.subr.mxu0 0.0
      %3936 = vmatpush1.msra.mxu0 0.0
      %3937 = vmatprep.subr.mxu0 0.0
      %3938 = vmatpush1.msra.mxu0 0.0
      %3939 = vmatprep.subr.mxu0 0.0
      %3940 = vmatpush1.msra.mxu0 0.0
      %3941 = vmatprep.subr.mxu0 0.0
      %3942 = vmatpush1.msra.mxu0 %v3917
      %3943 = vmatprep.subr.mxu0 0.0
      %3944 = vmatpush1.msra.mxu0 %v3811
      %3945 = vmatprep.subr.mxu0 0.0
      %3946 = vmatpush1.msra.mxu0 %v3810
      %3947 = vmatprep.subr.mxu0 0.0
      %3948 = vmatpush1.msra.mxu0 %v3809
      %3949 = vmatprep.subr.mxu0 0.0
      %3950 = vmatpush1.msra.mxu0 %v3808
      %3951 = vmatprep.subr.mxu0 0.0
      %3952 = vmatpush2.msra.mxu0 0.0
      %3953 = vmatprep.subr.mxu0 0.0
      %3954 = vmatpush2.msra.mxu0 0.0
      %3955 = vmatprep.subr.mxu0 0.0
      %3956 = vmatpush2.msra.mxu0 0.0
      %3957 = vmatprep.subr.mxu0 0.0
      %3958 = vmatpush2.msra.mxu0 0.0
      %3959 = vmatprep.subr.mxu0 0.0
      %3960 = vmatpush2.msra.mxu0 0.0
      %3961 = vmatprep.subr.mxu0 0.0
      %3962 = vmatpush2.msra.mxu0 0.0
      %3963 = vmatprep.subr.mxu0 0.0
      %3964 = vmatpush2.msra.mxu0 0.0
      %3965 = vmatprep.subr.mxu0 0.0
      %3966 = vmatpush2.msra.mxu0 0.0
      %3967 = vmatprep.subr.mxu0 0.0
      %3968 = vmatpush2.msra.mxu0 0.0
      %3969 = vmatprep.subr.mxu0 0.0
      %3970 = vmatpush2.msra.mxu0 0.0
      %3971 = vmatprep.subr.mxu0 0.0
      %3972 = vmatpush2.msra.mxu0 0.0
      %3973 = vmatprep.subr.mxu0 0.0
      %3974 = vmatpush2.msra.mxu0 0.0
      %3975 = vmatprep.subr.mxu0 0.0
      %3976 = vmatpush2.msra.mxu0 0.0
      %3977 = vmatprep.subr.mxu0 0.0
      %3978 = vmatpush2.msra.mxu0 0.0
      %3979 = vmatprep.subr.mxu0 0.0
      %3980 = vmatpush2.msra.mxu0 0.0
      %3981 = vmatprep.subr.mxu0 0.0
      %3982 = vmatpush2.msra.mxu0 0.0
      %3983 = vmatprep.mubr.f32.mxu0 0.0
      %3984 = vmatmul.mubr.f32.gmra.mxu0 %v3821
      %v3985 = vpop.f32.mrf.mxu0
      %v3986 = vadd.f32 %v3818, %v3985
      %v3987 = vpop.f32.mrf.mxu0
      %3988 = vmatprep.mubr.f32.mxu0 0.0
      %3989 = vmatmul.mubr.f32.gmra.mxu0 %v3824
      %v3990 = vpop.f32.mrf.mxu0
      %v3991 = vadd.f32 %v3818, %v3990
      %v3992 = vpop.f32.mrf.mxu0
      %3993 = vmatprep.mubr.f32.mxu0 0.0
      %3994 = vmatmul.mubr.f32.gmra.mxu0 %v3827
      %v3995 = vpop.f32.mrf.mxu0
      %v3996 = vadd.f32 %v3818, %v3995
      %v3997 = vpop.f32.mrf.mxu0
      %3998 = vmatprep.mubr.f32.mxu0 0.0
      %3999 = vmatmul.mubr.f32.gmra.mxu0 %v3830
      %v4000 = vpop.f32.mrf.mxu0
      %v4001 = vadd.f32 %v3818, %v4000
      %v4002 = vpop.f32.mrf.mxu0
      %4003 = vmatprep.mubr.f32.mxu0 0.0
      %4004 = vmatmul.mubr.f32.gmra.mxu0 %v3833
      %v4005 = vpop.f32.mrf.mxu0
      %v4006 = vadd.f32 %v3818, %v4005
      %v4007 = vpop.f32.mrf.mxu0
      %4008 = vmatprep.mubr.f32.mxu0 0.0
      %4009 = vmatmul.mubr.f32.gmra.mxu0 %v3836
      %v4010 = vpop.f32.mrf.mxu0
      %v4011 = vadd.f32 %v3818, %v4010
      %v4012 = vpop.f32.mrf.mxu0
      %4013 = vmatprep.mubr.f32.mxu0 0.0
      %4014 = vmatmul.mubr.f32.gmra.mxu0 %v3839
      %v4015 = vpop.f32.mrf.mxu0
      %v4016 = vadd.f32 %v3818, %v4015
      %v4017 = vpop.f32.mrf.mxu0
      %4018 = vmatprep.mubr.f32.mxu0 0.0
      %4019 = vmatmul.mubr.f32.gmra.mxu0 %v3842
      %v4020 = vpop.f32.mrf.mxu0
      %v4021 = vadd.f32 %v3818, %v4020
      %v4022 = vpop.f32.mrf.mxu0
      %4023 = vmatprep.mubr.f32.mxu0 0.0
      %4024 = vmatmul.mubr.f32.gmra.mxu0 %v3845
      %v4025 = vpop.f32.mrf.mxu0
      %v4026 = vadd.f32 %v3818, %v4025
      %v4027 = vpop.f32.mrf.mxu0
      %4028 = vmatprep.mubr.f32.mxu0 0.0
      %4029 = vmatmul.mubr.f32.gmra.mxu0 %v3848
      %v4030 = vpop.f32.mrf.mxu0
      %v4031 = vadd.f32 %v3818, %v4030
      %v4032 = vpop.f32.mrf.mxu0
      %4033 = vmatprep.mubr.f32.mxu0 0.0
      %4034 = vmatmul.mubr.f32.gmra.mxu0 %v3851
      %v4035 = vpop.f32.mrf.mxu0
      %v4036 = vadd.f32 %v3818, %v4035
      %v4037 = vpop.f32.mrf.mxu0
      %4038 = vmatprep.mubr.f32.mxu0 0.0
      %4039 = vmatmul.mubr.f32.gmra.mxu0 %v3854
      %v4040 = vpop.f32.mrf.mxu0
      %v4041 = vadd.f32 %v3818, %v4040
      %v4042 = vpop.f32.mrf.mxu0
      %4043 = vmatprep.mubr.f32.mxu0 0.0
      %4044 = vmatmul.mubr.f32.gmra.mxu0 %v3857
      %v4045 = vpop.f32.mrf.mxu0
      %v4046 = vadd.f32 %v3818, %v4045
      %v4047 = vpop.f32.mrf.mxu0
      %4048 = vmatprep.mubr.f32.mxu0 0.0
      %4049 = vmatmul.mubr.f32.gmra.mxu0 %v3860
      %v4050 = vpop.f32.mrf.mxu0
      %v4051 = vadd.f32 %v3818, %v4050
      %v4052 = vpop.f32.mrf.mxu0
      %4053 = vmatprep.mubr.f32.mxu0 0.0
      %4054 = vmatmul.mubr.f32.gmra.mxu0 %v3863
      %v4055 = vpop.f32.mrf.mxu0
      %v4056 = vadd.f32 %v3818, %v4055
      %v4057 = vpop.f32.mrf.mxu0
      %4058 = vmatprep.mubr.f32.mxu0 0.0
      %4059 = vmatmul.mubr.f32.gmra.mxu0 %v3866
      %v4060 = vpop.f32.mrf.mxu0
      %v4061 = vadd.f32 %v3818, %v4060
      %v4062 = vpop.f32.mrf.mxu0
      %4063 = vmatprep.mubr.f32.mxu0 0.0
      %4064 = vmatmul.mubr.f32.gmra.mxu0 %v3869
      %v4065 = vpop.f32.mrf.mxu0
      %v4066 = vadd.f32 %v3818, %v4065
      %v4067 = vpop.f32.mrf.mxu0
      %4068 = vmatprep.mubr.f32.mxu0 0.0
      %4069 = vmatmul.mubr.f32.gmra.mxu0 %v3872
      %v4070 = vpop.f32.mrf.mxu0
      %v4071 = vadd.f32 %v3818, %v4070
      %v4072 = vpop.f32.mrf.mxu0
      %4073 = vmatprep.mubr.f32.mxu0 0.0
      %4074 = vmatmul.mubr.f32.gmra.mxu0 %v3875
      %v4075 = vpop.f32.mrf.mxu0
      %v4076 = vadd.f32 %v3818, %v4075
      %v4077 = vpop.f32.mrf.mxu0
      %4078 = vmatprep.mubr.f32.mxu0 0.0
      %4079 = vmatmul.mubr.f32.gmra.mxu0 %v3878
      %v4080 = vpop.f32.mrf.mxu0
      %v4081 = vadd.f32 %v3818, %v4080
      %v4082 = vpop.f32.mrf.mxu0
      %4083 = vmatprep.mubr.f32.mxu0 0.0
      %4084 = vmatmul.mubr.f32.gmra.mxu0 %v3881
      %v4085 = vpop.f32.mrf.mxu0
      %v4086 = vadd.f32 %v3818, %v4085
      %v4087 = vpop.f32.mrf.mxu0
      %4088 = vmatprep.mubr.f32.mxu0 0.0
      %4089 = vmatmul.mubr.f32.gmra.mxu0 %v3884
      %v4090 = vpop.f32.mrf.mxu0
      %v4091 = vadd.f32 %v3818, %v4090
      %v4092 = vpop.f32.mrf.mxu0
      %4093 = vmatprep.mubr.f32.mxu0 0.0
      %4094 = vmatmul.mubr.f32.gmra.mxu0 %v3887
      %v4095 = vpop.f32.mrf.mxu0
      %v4096 = vadd.f32 %v3818, %v4095
      %v4097 = vpop.f32.mrf.mxu0
      %4098 = vmatprep.mubr.f32.mxu0 0.0
      %4099 = vmatmul.mubr.f32.gmra.mxu0 %v3890
      %v4100 = vpop.f32.mrf.mxu0
      %v4101 = vadd.f32 %v3818, %v4100
      %v4102 = vpop.f32.mrf.mxu0
      %4103 = vmatprep.mubr.f32.mxu0 0.0
      %4104 = vmatmul.mubr.f32.gmra.mxu0 %v3893
      %v4105 = vpop.f32.mrf.mxu0
      %v4106 = vadd.f32 %v3818, %v4105
      %v4107 = vpop.f32.mrf.mxu0
      %4108 = vmatprep.mubr.f32.mxu0 0.0
      %4109 = vmatmul.mubr.f32.gmra.mxu0 %v3896
      %v4110 = vpop.f32.mrf.mxu0
      %v4111 = vadd.f32 %v3818, %v4110
      %v4112 = vpop.f32.mrf.mxu0
      %4113 = vmatprep.mubr.f32.mxu0 0.0
      %4114 = vmatmul.mubr.f32.gmra.mxu0 %v3899
      %v4115 = vpop.f32.mrf.mxu0
      %v4116 = vadd.f32 %v3818, %v4115
      %v4117 = vpop.f32.mrf.mxu0
      %4118 = vmatprep.mubr.f32.mxu0 0.0
      %4119 = vmatmul.mubr.f32.gmra.mxu0 %v3902
      %v4120 = vpop.f32.mrf.mxu0
      %v4121 = vadd.f32 %v3818, %v4120
      %v4122 = vpop.f32.mrf.mxu0
      %4123 = vmatprep.mubr.f32.mxu0 0.0
      %4124 = vmatmul.mubr.f32.gmra.mxu0 %v3905
      %v4125 = vpop.f32.mrf.mxu0
      %v4126 = vadd.f32 %v3818, %v4125
      %v4127 = vpop.f32.mrf.mxu0
      %4128 = vmatprep.mubr.f32.mxu0 0.0
      %4129 = vmatmul.mubr.f32.gmra.mxu0 %v3908
      %v4130 = vpop.f32.mrf.mxu0
      %v4131 = vadd.f32 %v3818, %v4130
      %v4132 = vpop.f32.mrf.mxu0
      %4133 = vmatprep.mubr.f32.mxu0 0.0
      %4134 = vmatmul.mubr.f32.gmra.mxu0 %v3911
      %v4135 = vpop.f32.mrf.mxu0
      %v4136 = vadd.f32 %v3818, %v4135
      %v4137 = vpop.f32.mrf.mxu0
      %4138 = vmatprep.mubr.f32.mxu0 0.0
      %4139 = vmatmul.mubr.f32.gmra.mxu0 %v3914
      %v4140 = vpop.f32.mrf.mxu0
      %v4141 = vadd.f32 %v3818, %v4140
      %v4142 = vpop.f32.mrf.mxu0
      %4143 = vdwg.mxu0
      %v4144 = vsel %vm365, %v3986, 0.0
      %v4145 = vsel %vm365, %v3991, 0.0
      %v4146 = vadd.f32 %v4144, %v4145
      %v4147 = vsel %vm365, %v3996, 0.0
      %v4148 = vadd.f32 %v4146, %v4147
      %v4149 = vsel %vm365, %v4001, 0.0
      %v4150 = vadd.f32 %v4148, %v4149
      %v4151 = vsel %vm365, %v4006, 0.0
      %v4152 = vadd.f32 %v4150, %v4151
      %v4153 = vsel %vm365, %v4011, 0.0
      %v4154 = vadd.f32 %v4152, %v4153
      %v4155 = vsel %vm365, %v4016, 0.0
      %v4156 = vadd.f32 %v4154, %v4155
      %v4157 = vsel %vm365, %v4021, 0.0
      %v4158 = vadd.f32 %v4156, %v4157
      %v4159 = vsel %vm365, %v4026, 0.0
      %v4160 = vadd.f32 %v4158, %v4159
      %v4161 = vsel %vm365, %v4031, 0.0
      %v4162 = vadd.f32 %v4160, %v4161
      %v4163 = vsel %vm365, %v4036, 0.0
      %v4164 = vadd.f32 %v4162, %v4163
      %v4165 = vsel %vm365, %v4041, 0.0
      %v4166 = vadd.f32 %v4164, %v4165
      %v4167 = vsel %vm365, %v4046, 0.0
      %v4168 = vadd.f32 %v4166, %v4167
      %v4169 = vsel %vm365, %v4051, 0.0
      %v4170 = vadd.f32 %v4168, %v4169
      %v4171 = vsel %vm365, %v4056, 0.0
      %v4172 = vadd.f32 %v4170, %v4171
      %v4173 = vsel %vm365, %v4061, 0.0
      %v4174 = vadd.f32 %v4172, %v4173
      %v4175 = vsel %vm365, %v4066, 0.0
      %v4176 = vadd.f32 %v4174, %v4175
      %v4177 = vsel %vm365, %v4071, 0.0
      %v4178 = vadd.f32 %v4176, %v4177
      %v4179 = vsel %vm365, %v4076, 0.0
      %v4180 = vadd.f32 %v4178, %v4179
      %v4181 = vsel %vm365, %v4081, 0.0
      %v4182 = vadd.f32 %v4180, %v4181
      %v4183 = vsel %vm365, %v4086, 0.0
      %v4184 = vadd.f32 %v4182, %v4183
      %v4185 = vsel %vm365, %v4091, 0.0
      %v4186 = vadd.f32 %v4184, %v4185
      %v4187 = vsel %vm365, %v4096, 0.0
      %v4188 = vadd.f32 %v4186, %v4187
      %v4189 = vsel %vm365, %v4101, 0.0
      %v4190 = vadd.f32 %v4188, %v4189
      %v4191 = vsel %vm365, %v4106, 0.0
      %v4192 = vadd.f32 %v4190, %v4191
      %v4193 = vsel %vm365, %v4111, 0.0
      %v4194 = vadd.f32 %v4192, %v4193
      %v4195 = vsel %vm365, %v4116, 0.0
      %v4196 = vadd.f32 %v4194, %v4195
      %v4197 = vsel %vm365, %v4121, 0.0
      %v4198 = vadd.f32 %v4196, %v4197
      %v4199 = vsel %vm365, %v4126, 0.0
      %v4200 = vadd.f32 %v4198, %v4199
      %v4201 = vsel %vm365, %v4131, 0.0
      %v4202 = vadd.f32 %v4200, %v4201
      %v4203 = vsel %vm365, %v4136, 0.0
      %v4204 = vadd.f32 %v4202, %v4203
      %v4205 = vsel %vm365, %v4141, 0.0
      %v4206 = vadd.f32 %v4204, %v4205
      %v4207 = vrot.slane %v4206, 4
      %v4208 = vadd.f32 %v4206, %v4207
      %v4209 = vrot.slane %v4208, 2
      %v4210 = vadd.f32 %v4208, %v4209
      %v4211 = vrot.slane %v4210, 1
      %v4212 = vadd.f32 %v4210, %v4211
      %v4213 = vmul.f32 %v3986, %v3986
      %v4214 = vmul.f32 %v3991, %v3991
      %v4215 = vmul.f32 %v3996, %v3996
      %v4216 = vmul.f32 %v4001, %v4001
      %v4217 = vmul.f32 %v4006, %v4006
      %v4218 = vmul.f32 %v4011, %v4011
      %v4219 = vmul.f32 %v4016, %v4016
      %v4220 = vmul.f32 %v4021, %v4021
      %v4221 = vmul.f32 %v4026, %v4026
      %v4222 = vmul.f32 %v4031, %v4031
      %v4223 = vmul.f32 %v4036, %v4036
      %v4224 = vmul.f32 %v4041, %v4041
      %v4225 = vmul.f32 %v4046, %v4046
      %v4226 = vmul.f32 %v4051, %v4051
      %v4227 = vmul.f32 %v4056, %v4056
      %v4228 = vmul.f32 %v4061, %v4061
      %v4229 = vmul.f32 %v4066, %v4066
      %v4230 = vmul.f32 %v4071, %v4071
      %v4231 = vmul.f32 %v4076, %v4076
      %v4232 = vmul.f32 %v4081, %v4081
      %v4233 = vmul.f32 %v4086, %v4086
      %v4234 = vmul.f32 %v4091, %v4091
      %v4235 = vmul.f32 %v4096, %v4096
      %v4236 = vmul.f32 %v4101, %v4101
      %v4237 = vmul.f32 %v4106, %v4106
      %v4238 = vmul.f32 %v4111, %v4111
      %v4239 = vmul.f32 %v4116, %v4116
      %v4240 = vmul.f32 %v4121, %v4121
      %v4241 = vmul.f32 %v4126, %v4126
      %v4242 = vmul.f32 %v4131, %v4131
      %v4243 = vmul.f32 %v4136, %v4136
      %v4244 = vmul.f32 %v4141, %v4141
      %v4245 = vsel %vm365, %v4213, 0.0
      %v4246 = vsel %vm365, %v4214, 0.0
      %v4247 = vadd.f32 %v4245, %v4246
      %v4248 = vsel %vm365, %v4215, 0.0
      %v4249 = vadd.f32 %v4247, %v4248
      %v4250 = vsel %vm365, %v4216, 0.0
      %v4251 = vadd.f32 %v4249, %v4250
      %v4252 = vsel %vm365, %v4217, 0.0
      %v4253 = vadd.f32 %v4251, %v4252
      %v4254 = vsel %vm365, %v4218, 0.0
      %v4255 = vadd.f32 %v4253, %v4254
      %v4256 = vsel %vm365, %v4219, 0.0
      %v4257 = vadd.f32 %v4255, %v4256
      %v4258 = vsel %vm365, %v4220, 0.0
      %v4259 = vadd.f32 %v4257, %v4258
      %v4260 = vsel %vm365, %v4221, 0.0
      %v4261 = vadd.f32 %v4259, %v4260
      %v4262 = vsel %vm365, %v4222, 0.0
      %v4263 = vadd.f32 %v4261, %v4262
      %v4264 = vsel %vm365, %v4223, 0.0
      %v4265 = vadd.f32 %v4263, %v4264
      %v4266 = vsel %vm365, %v4224, 0.0
      %v4267 = vadd.f32 %v4265, %v4266
      %v4268 = vsel %vm365, %v4225, 0.0
      %v4269 = vadd.f32 %v4267, %v4268
      %v4270 = vsel %vm365, %v4226, 0.0
      %v4271 = vadd.f32 %v4269, %v4270
      %v4272 = vsel %vm365, %v4227, 0.0
      %v4273 = vadd.f32 %v4271, %v4272
      %v4274 = vsel %vm365, %v4228, 0.0
      %v4275 = vadd.f32 %v4273, %v4274
      %v4276 = vsel %vm365, %v4229, 0.0
      %v4277 = vadd.f32 %v4275, %v4276
      %v4278 = vsel %vm365, %v4230, 0.0
      %v4279 = vadd.f32 %v4277, %v4278
      %v4280 = vsel %vm365, %v4231, 0.0
      %v4281 = vadd.f32 %v4279, %v4280
      %v4282 = vsel %vm365, %v4232, 0.0
      %v4283 = vadd.f32 %v4281, %v4282
      %v4284 = vsel %vm365, %v4233, 0.0
      %v4285 = vadd.f32 %v4283, %v4284
      %v4286 = vsel %vm365, %v4234, 0.0
      %v4287 = vadd.f32 %v4285, %v4286
      %v4288 = vsel %vm365, %v4235, 0.0
      %v4289 = vadd.f32 %v4287, %v4288
      %v4290 = vsel %vm365, %v4236, 0.0
      %v4291 = vadd.f32 %v4289, %v4290
      %v4292 = vsel %vm365, %v4237, 0.0
      %v4293 = vadd.f32 %v4291, %v4292
      %v4294 = vsel %vm365, %v4238, 0.0
      %v4295 = vadd.f32 %v4293, %v4294
      %v4296 = vsel %vm365, %v4239, 0.0
      %v4297 = vadd.f32 %v4295, %v4296
      %v4298 = vsel %vm365, %v4240, 0.0
      %v4299 = vadd.f32 %v4297, %v4298
      %v4300 = vsel %vm365, %v4241, 0.0
      %v4301 = vadd.f32 %v4299, %v4300
      %v4302 = vsel %vm365, %v4242, 0.0
      %v4303 = vadd.f32 %v4301, %v4302
      %v4304 = vsel %vm365, %v4243, 0.0
      %v4305 = vadd.f32 %v4303, %v4304
      %v4306 = vsel %vm365, %v4244, 0.0
      %v4307 = vadd.f32 %v4305, %v4306
      %v4308 = vrot.slane %v4307, 4
      %v4309 = vadd.f32 %v4307, %v4308
      %v4310 = vrot.slane %v4309, 2
      %v4311 = vadd.f32 %v4309, %v4310
      %v4312 = vrot.slane %v4311, 1
      %v4313 = vadd.f32 %v4311, %v4312
      %v4314 = vmul.f32 %v4212, 0.00390625
      %v4315 = vmul.f32 %v4313, 0.00390625
      %v4316 = vmul.f32 %v4314, %v4314
      %v4317 = vsub.f32 %v4315, %v4316
      %v4318 = vmax.f32 %v4317, 0.0
      %v4319 = vsub.f32 %v3986, %v4314
      %v4320 = vsub.f32 %v3991, %v4314
      %v4321 = vsub.f32 %v3996, %v4314
      %v4322 = vsub.f32 %v4001, %v4314
      %v4323 = vsub.f32 %v4006, %v4314
      %v4324 = vsub.f32 %v4011, %v4314
      %v4325 = vsub.f32 %v4016, %v4314
      %v4326 = vsub.f32 %v4021, %v4314
      %v4327 = vsub.f32 %v4026, %v4314
      %v4328 = vsub.f32 %v4031, %v4314
      %v4329 = vsub.f32 %v4036, %v4314
      %v4330 = vsub.f32 %v4041, %v4314
      %v4331 = vsub.f32 %v4046, %v4314
      %v4332 = vsub.f32 %v4051, %v4314
      %v4333 = vsub.f32 %v4056, %v4314
      %v4334 = vsub.f32 %v4061, %v4314
      %v4335 = vsub.f32 %v4066, %v4314
      %v4336 = vsub.f32 %v4071, %v4314
      %v4337 = vsub.f32 %v4076, %v4314
      %v4338 = vsub.f32 %v4081, %v4314
      %v4339 = vsub.f32 %v4086, %v4314
      %v4340 = vsub.f32 %v4091, %v4314
      %v4341 = vsub.f32 %v4096, %v4314
      %v4342 = vsub.f32 %v4101, %v4314
      %v4343 = vsub.f32 %v4106, %v4314
      %v4344 = vsub.f32 %v4111, %v4314
      %v4345 = vsub.f32 %v4116, %v4314
      %v4346 = vsub.f32 %v4121, %v4314
      %v4347 = vsub.f32 %v4126, %v4314
      %v4348 = vsub.f32 %v4131, %v4314
      %v4349 = vsub.f32 %v4136, %v4314
      %v4350 = vsub.f32 %v4141, %v4314
      %v4351 = vadd.f32 %v4318, 1e-05
      %v4352 = vrsqrt.pop %v4351
      %v4353 = vmul.f32 %v4319, %v4352
      %v4354 = vmul.f32 %v4320, %v4352
      %v4355 = vmul.f32 %v4321, %v4352
      %v4356 = vmul.f32 %v4322, %v4352
      %v4357 = vmul.f32 %v4323, %v4352
      %v4358 = vmul.f32 %v4324, %v4352
      %v4359 = vmul.f32 %v4325, %v4352
      %v4360 = vmul.f32 %v4326, %v4352
      %v4361 = vmul.f32 %v4327, %v4352
      %v4362 = vmul.f32 %v4328, %v4352
      %v4363 = vmul.f32 %v4329, %v4352
      %v4364 = vmul.f32 %v4330, %v4352
      %v4365 = vmul.f32 %v4331, %v4352
      %v4366 = vmul.f32 %v4332, %v4352
      %v4367 = vmul.f32 %v4333, %v4352
      %v4368 = vmul.f32 %v4334, %v4352
      %v4369 = vmul.f32 %v4335, %v4352
      %v4370 = vmul.f32 %v4336, %v4352
      %v4371 = vmul.f32 %v4337, %v4352
      %v4372 = vmul.f32 %v4338, %v4352
      %v4373 = vmul.f32 %v4339, %v4352
      %v4374 = vmul.f32 %v4340, %v4352
      %v4375 = vmul.f32 %v4341, %v4352
      %v4376 = vmul.f32 %v4342, %v4352
      %v4377 = vmul.f32 %v4343, %v4352
      %v4378 = vmul.f32 %v4344, %v4352
      %v4379 = vmul.f32 %v4345, %v4352
      %v4380 = vmul.f32 %v4346, %v4352
      %v4381 = vmul.f32 %v4347, %v4352
      %v4382 = vmul.f32 %v4348, %v4352
      %v4383 = vmul.f32 %v4349, %v4352
      %v4384 = vmul.f32 %v4350, %v4352
      %v4385 = vld [vmem:[%s7] sm:$0x1]
      %v4387 = vlaneseq
      %v4388 = vshrl.u32 %v4387, 7
      %v4389 = vsub.s32 0, %v4388
      %v4390 = vrot.slane %v4385, %v4389
      %v4392 = vmul.f32 %v4353, %v4390
      %v4393 = vmul.f32 %v4354, %v4390
      %v4394 = vmul.f32 %v4355, %v4390
      %v4395 = vmul.f32 %v4356, %v4390
      %v4396 = vmul.f32 %v4357, %v4390
      %v4397 = vmul.f32 %v4358, %v4390
      %v4398 = vmul.f32 %v4359, %v4390
      %v4399 = vmul.f32 %v4360, %v4390
      %v4400 = vmul.f32 %v4361, %v4390
      %v4401 = vmul.f32 %v4362, %v4390
      %v4402 = vmul.f32 %v4363, %v4390
      %v4403 = vmul.f32 %v4364, %v4390
      %v4404 = vmul.f32 %v4365, %v4390
      %v4405 = vmul.f32 %v4366, %v4390
      %v4406 = vmul.f32 %v4367, %v4390
      %v4407 = vmul.f32 %v4368, %v4390
      %v4408 = vmul.f32 %v4369, %v4390
      %v4409 = vmul.f32 %v4370, %v4390
      %v4410 = vmul.f32 %v4371, %v4390
      %v4411 = vmul.f32 %v4372, %v4390
      %v4412 = vmul.f32 %v4373, %v4390
      %v4413 = vmul.f32 %v4374, %v4390
      %v4414 = vmul.f32 %v4375, %v4390
      %v4415 = vmul.f32 %v4376, %v4390
      %v4416 = vmul.f32 %v4377, %v4390
      %v4417 = vmul.f32 %v4378, %v4390
      %v4418 = vmul.f32 %v4379, %v4390
      %v4419 = vmul.f32 %v4380, %v4390
      %v4420 = vmul.f32 %v4381, %v4390
      %v4421 = vmul.f32 %v4382, %v4390
      %v4422 = vmul.f32 %v4383, %v4390
      %v4423 = vmul.f32 %v4384, %v4390
      %v4424 = vld [vmem:[%s8] sm:$0x1]
      %v4426 = vlaneseq
      %v4427 = vshrl.u32 %v4426, 7
      %v4428 = vsub.s32 0, %v4427
      %v4429 = vrot.slane %v4424, %v4428
      %v4431 = vadd.f32 %v4392, %v4429
      %v4432 = vadd.f32 %v4393, %v4429
      %v4433 = vadd.f32 %v4394, %v4429
      %v4434 = vadd.f32 %v4395, %v4429
      %v4435 = vadd.f32 %v4396, %v4429
      %v4436 = vadd.f32 %v4397, %v4429
      %v4437 = vadd.f32 %v4398, %v4429
      %v4438 = vadd.f32 %v4399, %v4429
      %v4439 = vadd.f32 %v4400, %v4429
      %v4440 = vadd.f32 %v4401, %v4429
      %v4441 = vadd.f32 %v4402, %v4429
      %v4442 = vadd.f32 %v4403, %v4429
      %v4443 = vadd.f32 %v4404, %v4429
      %v4444 = vadd.f32 %v4405, %v4429
      %v4445 = vadd.f32 %v4406, %v4429
      %v4446 = vadd.f32 %v4407, %v4429
      %v4447 = vadd.f32 %v4408, %v4429
      %v4448 = vadd.f32 %v4409, %v4429
      %v4449 = vadd.f32 %v4410, %v4429
      %v4450 = vadd.f32 %v4411, %v4429
      %v4451 = vadd.f32 %v4412, %v4429
      %v4452 = vadd.f32 %v4413, %v4429
      %v4453 = vadd.f32 %v4414, %v4429
      %v4454 = vadd.f32 %v4415, %v4429
      %v4455 = vadd.f32 %v4416, %v4429
      %v4456 = vadd.f32 %v4417, %v4429
      %v4457 = vadd.f32 %v4418, %v4429
      %v4458 = vadd.f32 %v4419, %v4429
      %v4459 = vadd.f32 %v4420, %v4429
      %v4460 = vadd.f32 %v4421, %v4429
      %v4461 = vadd.f32 %v4422, %v4429
      %v4462 = vadd.f32 %v4423, %v4429
      %v4463 = vadd.f32 %v4431, %v333
      %v4464 = vadd.f32 %v4432, %v334
      %v4465 = vadd.f32 %v4433, %v335
      %v4466 = vadd.f32 %v4434, %v336
      %v4467 = vadd.f32 %v4435, %v337
      %v4468 = vadd.f32 %v4436, %v338
      %v4469 = vadd.f32 %v4437, %v339
      %v4470 = vadd.f32 %v4438, %v340
      %v4471 = vadd.f32 %v4439, %v341
      %v4472 = vadd.f32 %v4440, %v342
      %v4473 = vadd.f32 %v4441, %v343
      %v4474 = vadd.f32 %v4442, %v344
      %v4475 = vadd.f32 %v4443, %v345
      %v4476 = vadd.f32 %v4444, %v346
      %v4477 = vadd.f32 %v4445, %v347
      %v4478 = vadd.f32 %v4446, %v348
      %v4479 = vadd.f32 %v4447, %v349
      %v4480 = vadd.f32 %v4448, %v350
      %v4481 = vadd.f32 %v4449, %v351
      %v4482 = vadd.f32 %v4450, %v352
      %v4483 = vadd.f32 %v4451, %v353
      %v4484 = vadd.f32 %v4452, %v354
      %v4485 = vadd.f32 %v4453, %v355
      %v4486 = vadd.f32 %v4454, %v356
      %v4487 = vadd.f32 %v4455, %v357
      %v4488 = vadd.f32 %v4456, %v358
      %v4489 = vadd.f32 %v4457, %v359
      %v4490 = vadd.f32 %v4458, %v360
      %v4491 = vadd.f32 %v4459, %v361
      %v4492 = vadd.f32 %v4460, %v362
      %v4493 = vadd.f32 %v4461, %v363
      %v4494 = vadd.f32 %v4462, %v364
      %4495 = vst.msk [vmem:[%s332] sm:$0xff] %vm365, %v4463
      %4496 = vst.msk [vmem:[%s332 + $0x8] sm:$0xff] %vm365, %v4464
      %4497 = vst.msk [vmem:[%s332 + $0x10] sm:$0xff] %vm365, %v4465
      %4498 = vst.msk [vmem:[%s332 + $0x18] sm:$0xff] %vm365, %v4466
      %4499 = vst.msk [vmem:[%s332 + $0x20] sm:$0xff] %vm365, %v4467
      %4500 = vst.msk [vmem:[%s332 + $0x28] sm:$0xff] %vm365, %v4468
      %4501 = vst.msk [vmem:[%s332 + $0x30] sm:$0xff] %vm365, %v4469
      %4502 = vst.msk [vmem:[%s332 + $0x38] sm:$0xff] %vm365, %v4470
      %4503 = vst.msk [vmem:[%s332 + $0x40] sm:$0xff] %vm365, %v4471
      %4504 = vst.msk [vmem:[%s332 + $0x48] sm:$0xff] %vm365, %v4472
      %4505 = vst.msk [vmem:[%s332 + $0x50] sm:$0xff] %vm365, %v4473
      %4506 = vst.msk [vmem:[%s332 + $0x58] sm:$0xff] %vm365, %v4474
      %4507 = vst.msk [vmem:[%s332 + $0x60] sm:$0xff] %vm365, %v4475
      %4508 = vst.msk [vmem:[%s332 + $0x68] sm:$0xff] %vm365, %v4476
      %4509 = vst.msk [vmem:[%s332 + $0x70] sm:$0xff] %vm365, %v4477
      %4510 = vst.msk [vmem:[%s332 + $0x78] sm:$0xff] %vm365, %v4478
      %4511 = vst.msk [vmem:[%s332 + $0x80] sm:$0xff] %vm365, %v4479
      %4512 = vst.msk [vmem:[%s332 + $0x88] sm:$0xff] %vm365, %v4480
      %4513 = vst.msk [vmem:[%s332 + $0x90] sm:$0xff] %vm365, %v4481
      %4514 = vst.msk [vmem:[%s332 + $0x98] sm:$0xff] %vm365, %v4482
      %4515 = vst.msk [vmem:[%s332 + $0xa0] sm:$0xff] %vm365, %v4483
      %4516 = vst.msk [vmem:[%s332 + $0xa8] sm:$0xff] %vm365, %v4484
      %4517 = vst.msk [vmem:[%s332 + $0xb0] sm:$0xff] %vm365, %v4485
      %4518 = vst.msk [vmem:[%s332 + $0xb8] sm:$0xff] %vm365, %v4486
      %4519 = vst.msk [vmem:[%s332 + $0xc0] sm:$0xff] %vm365, %v4487
      %4520 = vst.msk [vmem:[%s332 + $0xc8] sm:$0xff] %vm365, %v4488
      %4521 = vst.msk [vmem:[%s332 + $0xd0] sm:$0xff] %vm365, %v4489
      %4522 = vst.msk [vmem:[%s332 + $0xd8] sm:$0xff] %vm365, %v4490
      %4523 = vst.msk [vmem:[%s332 + $0xe0] sm:$0xff] %vm365, %v4491
      %4524 = vst.msk [vmem:[%s332 + $0xe8] sm:$0xff] %vm365, %v4492
      %4525 = vst.msk [vmem:[%s332 + $0xf0] sm:$0xff] %vm365, %v4493
      %4526 = vst.msk [vmem:[%s332 + $0xf8] sm:$0xff] %vm365, %v4494
      %p4527 = scmp.lt.s32.totalorder %s20, 1
      %s4528 = scalar_select %p4527, %s20, 1
      %s4529 = smul.addr %s4528, 32
      %s4530 = smul.addr %s4529, 8
      %s4531 = scalar_lea.vmem %s9, %s4530
      // Predicated region
      $region57: #{tpu_custom_call.1} parent=55 // pred_check
        %p4532 = pneg %p232
      $region58: #{tpu_custom_call.1} parent=55 // pred_check_branch
        %4534 = sbr.rel (%p4532) target = $region60
      $region59: #{tpu_custom_call.1} parent=55 // pred_region
        _
      $region60: #{tpu_custom_call.1} parent=55 // pred_fallthru
        _
    $region56: #{tpu_custom_call.1} parent=5 // pred_fallthru
      _
    %p4535 = scmp.le.s32.totalorder 2, %s15
    // Predicated region
    $region61: #{tpu_custom_call.1} parent=5 // pred_check
      %p4536 = pneg %p4535
    $region62: #{tpu_custom_call.1} parent=5 // pred_check_branch
      %4538 = sbr.rel (%p4536) target = $region64
    $region63: #{tpu_custom_call.1} parent=5 // pred_region
      %s4539 = ssub.s32 %s15, 2
      // Predicated region
      $region65: #{tpu_custom_call.1} parent=63 // pred_check
        %p4540 = pneg %p238
      $region66: #{tpu_custom_call.1} parent=63 // pred_check_branch
        %4542 = sbr.rel (%p4540) target = $region68
      $region67: #{tpu_custom_call.1} parent=63 // pred_region
        %p4543 = scmp.lt.s32.totalorder %s21, 1
        %s4544 = scalar_select %p4543, %s21, 1
        %s4545 = smul.addr %s4544, 32
        %s4546 = smul.addr %s4545, 8
        %s4547 = scalar_lea.vmem %s9, %s4546
      $region68: #{tpu_custom_call.1} parent=63 // pred_fallthru
        _
    $region64: #{tpu_custom_call.1} parent=5 // pred_fallthru
      _
  $region6: #{tpu_custom_call.1} parent=0 // loop_footer
    %s19 = sadd.s32 1, %s15
  $region7: #{tpu_custom_call.1} parent=0 // loop_footer_branch
    %14 = sbr.rel target = $region3
  $region8: #{tpu_custom_call.1} parent=0 // loop_exit
    _

</llo_original>
